<compile_context>
chip_gen: v7x
topology: tpu7x:2x2x1
jax: 0.10.0
libtpu: 0.0.40
codegen_flags: <defaults>
</compile_context>

<pallas_src>
import functools

import jax
import jax.numpy as jnp
from jax import lax
from jax.experimental import pallas as pl
from jax.experimental.pallas import tpu as pltpu

NEG_SLOPE = 0.1  # LeakyReLU negative slope used throughout the PyTorch model.


# ---------------------------------------------------------------------------
# VMEM budget (per-generation: v7x 64 MiB/TC, v5e/v6e 128 MiB; keep headroom).
# ---------------------------------------------------------------------------
@functools.lru_cache(maxsize=None)
def _vmem_budget_bytes():
    cap = 64 << 20
    try:
        info = pltpu.get_tpu_info()
        cap = int(getattr(info, "vmem_capacity_bytes", 0)) or (64 << 20)
    except Exception:
        pass
    return max(cap - (16 << 20), 32 << 20)


def _image_spec(block_shape, index_map, single_buffer):
    """BlockSpec for a VMEM-resident padded image.

    The block index never changes along the inner (row-tile) grid axis, so
    large images (> 4 MiB, i.e. realistic resolutions, never hit at the toy
    test sizes) are single-buffered to halve their VMEM residency on v7x.
    Falls back to the default double-buffered spec if this Pallas build does
    not accept pipeline_mode / Buffered(1).
    """
    if single_buffer:
        try:
            return pl.BlockSpec(block_shape, index_map,
                                pipeline_mode=pl.Buffered(1))
        except Exception:
            pass
    return pl.BlockSpec(block_shape, index_map)


# ---------------------------------------------------------------------------
# Pallas kernel: fused 3x3 'same' conv over the (virtual) channel concat of
# one or more inputs, + folded (conv-bias + eval-BatchNorm) per-channel affine,
# + optional LeakyReLU(0.1).
#
# packed=True : build the (row_tile*W, 9*sum(Cin)) im2col slab in a VMEM
#               scratch and run ONE MXU dot with K = 9*sum(Cin).
# packed=False: proven fallback -- 9 shift-and-matmul dots per input with
#               K = Cin (only used if the packed store pattern does not lower
#               cleanly on this Mosaic build).
# ---------------------------------------------------------------------------
def _conv3x3_kernel(*refs, row_tile, w_out, cins, apply_leaky, packed):
    n_in = len(cins)
    x_refs = refs[:n_in]
    if packed:
        w_ref = refs[n_in]                              # (9*sum(Cin), Cout)
        scale_ref, shift_ref, o_ref, lhs_ref = refs[n_in + 1:]
    else:
        w_refs = refs[n_in:2 * n_in]                    # per-input (9,Cin,Cout)
        scale_ref, shift_ref, o_ref = refs[2 * n_in:]

    ti = pl.program_id(1)                 # row-tile index (inner grid axis)
    row0 = ti * row_tile                  # first output row of this tile
    m = row_tile * w_out
    cout = o_ref.shape[-1]

    if packed:
        off = 0
        for x_ref, cin in zip(x_refs, cins):
            for kh in range(3):
                rows = x_ref[pl.ds(row0 + kh, row_tile)]   # (TH, W+2, Cin) bf16
                for kw in range(3):
                    lhs_ref[:, off:off + cin] = (
                        rows[:, kw:kw + w_out, :].reshape(m, cin))
                    off += cin
        # One MXU dot with K = 9*sum(Cin); accumulation happens inside the MXU
        # in f32, so there is no loop-carried accumulator to spill.
        acc = jnp.dot(lhs_ref[...], w_ref[...],
                      preferred_element_type=jnp.float32)
    else:
        acc = jnp.zeros((m, cout), jnp.float32)
        for x_ref, wt_ref, cin in zip(x_refs, w_refs, cins):
            for kh in range(3):
                rows = x_ref[pl.ds(row0 + kh, row_tile)]   # (TH, W+2, Cin) bf16
                for kw in range(3):
                    lhs = rows[:, kw:kw + w_out, :].reshape(m, cin)
                    acc = acc + jnp.dot(lhs, wt_ref[kh * 3 + kw],
                                        preferred_element_type=jnp.float32)

    # f32 epilogue on the VPU: folded bias/BN affine (+ LeakyReLU).
    acc = acc * scale_ref[...] + shift_ref[...]
    if apply_leaky:
        acc = jnp.where(acc > 0, acc, NEG_SLOPE * acc)
    o_ref[...] = acc.reshape(row_tile, w_out, cout).astype(o_ref.dtype)


def _conv3x3_pallas(xs, ws, b, scale, shift, *, leaky, out_dtype, row_tile,
                    packed):
    n, h, wd, _ = xs[0].shape
    cins = tuple(int(x.shape[-1]) for x in xs)
    cout = int(ws[0].shape[-1])
    for x, w_, cin in zip(xs, ws, cins):
        assert x.shape[:3] == xs[0].shape[:3], (x.shape, xs[0].shape)
        assert w_.shape == (3, 3, cin, cout), (w_.shape, cin, cout)
    ktot = 9 * sum(cins)
    hp, wp = h + 2, wd + 2
    out_itemsize = jnp.dtype(out_dtype).itemsize

    # Fold conv bias and (optional) eval-mode BN into one per-channel affine:
    #   out = conv_result * eff_scale + eff_shift
    if scale is None:
        eff_scale = jnp.ones((cout,), jnp.float32)
        eff_shift = b.astype(jnp.float32)
    else:
        eff_scale = scale.astype(jnp.float32)
        eff_shift = (b.astype(jnp.float32) * eff_scale
                     + shift.astype(jnp.float32))

    # bf16 operands for the MXU; spatial zero padding for the 'same' conv.
    xps = [jnp.pad(x.astype(jnp.bfloat16), ((0, 0), (1, 1), (1, 1), (0, 0)))
           for x in xs]

    # --- honest VMEM accounting -------------------------------------------
    budget = _vmem_budget_bytes()
    res_bytes = 2 * ktot * cout * 2 + 2 * 2 * cout * 4   # weights + affine
    img_specs = []
    for cin in cins:
        img_bytes = hp * wp * cin * 2
        single = img_bytes > (4 << 20)
        res_bytes += (1 if single else 2) * img_bytes
        img_specs.append(_image_spec((pl.Squeezed(), hp, wp, cin),
                                     lambda bi, ti: (bi, 0, 0, 0), single))

    def _tile_bytes(th):
        m = th * wd
        return (2 * m * cout * out_itemsize          # double-buffered out tile
                + (m * ktot * 2 if packed else 0)    # packed-lhs VMEM scratch
                + 2 * m * cout * 4                   # f32 acc + epilogue temps
                + 2 * 3 * th * wp * max(cins) * 2)   # row-band load temps

    if row_tile is None:
        # Largest divisor of H whose footprint fits the per-chip budget
        # (bigger tiles amortize per-grid-step overhead on v5e/v6e's 128 MiB).
        th = 1
        for cand in range(1, h + 1):
            if h % cand == 0 and res_bytes + _tile_bytes(cand) <= budget:
                th = cand
    else:
        th = row_tile
    assert h % th == 0, (h, th)
    n_tiles = h // th

    vmem_needed = res_bytes + _tile_bytes(th) + (2 << 20)
    vmem_limit = int(min(budget, max(vmem_needed, 32 << 20)))

    # Weight operands: one packed (9*sum(Cin), Cout) slab, or per-input
    # (9, Cin, Cout) tap-major slabs for the fallback path.
    if packed:
        w_ops = [jnp.concatenate(
            [w_.astype(jnp.bfloat16).reshape(9 * cin, cout)
             for w_, cin in zip(ws, cins)], axis=0)]
        w_specs = [pl.BlockSpec((ktot, cout), lambda bi, ti: (0, 0))]
        scratch = [pltpu.VMEM((th * wd, ktot), jnp.bfloat16)]
    else:
        w_ops = [w_.astype(jnp.bfloat16).reshape(9, cin, cout)
                 for w_, cin in zip(ws, cins)]
        w_specs = [pl.BlockSpec((9, cin, cout), lambda bi, ti: (0, 0, 0))
                   for cin in cins]
        scratch = []

    kernel = functools.partial(_conv3x3_kernel, row_tile=th, w_out=wd,
                               cins=cins, apply_leaky=leaky, packed=packed)

    cost = pl.CostEstimate(
        flops=2 * n * h * wd * ktot * cout,
        transcendentals=0,
        bytes_accessed=(sum(n * hp * wp * cin * 2 for cin in cins)
                        + ktot * cout * 2
                        + n * h * wd * cout * out_itemsize))

    out = pl.pallas_call(
        kernel,
        out_shape=jax.ShapeDtypeStruct((n, h, wd, cout), out_dtype),
        grid_spec=pltpu.PrefetchScalarGridSpec(
            num_scalar_prefetch=0,
            # Batch outer (megacore-parallel across images), row tiles inner so
            # the resident image / weights / affine are fetched once per image.
            grid=(n, n_tiles),
            in_specs=(img_specs + w_specs + [
                pl.BlockSpec((1, cout), lambda bi, ti: (0, 0)),
                pl.BlockSpec((1, cout), lambda bi, ti: (0, 0)),
            ]),
            out_specs=pl.BlockSpec((pl.Squeezed(), th, wd, cout),
                                   lambda bi, ti: (bi, ti, 0, 0)),
            scratch_shapes=scratch,
        ),
        compiler_params=pltpu.CompilerParams(
            dimension_semantics=("parallel", "arbitrary"),
            vmem_limit_bytes=vmem_limit),
        cost_estimate=cost,
    )(*xps, *w_ops, eff_scale.reshape(1, cout), eff_shift.reshape(1, cout))
    return out


# ---------------------------------------------------------------------------
# Packed-lhs feature/numerics probe + public conv wrapper
# ---------------------------------------------------------------------------
_PACKED_LHS_OK = None


def _packed_lhs_supported():
    """One-off probe: check that the packed-lhs scratch stores (sub-slab writes
    at arbitrary, lane-tile-crossing channel offsets) lower and compute
    correctly on this Mosaic build; otherwise use the proven 9-dot path."""
    global _PACKED_LHS_OK
    if _PACKED_LHS_OK is None:
        try:
            pk = jax.random.PRNGKey(1234)
            ka, kb_, kw1, kw2 = jax.random.split(pk, 4)
            xa = jax.random.normal(ka, (1, 8, 8, 3), jnp.float32)
            xb = jax.random.normal(kb_, (1, 8, 8, 48), jnp.float32)
            wa = 0.05 * jax.random.normal(kw1, (3, 3, 3, 16), jnp.float32)
            wb = 0.05 * jax.random.normal(kw2, (3, 3, 48, 16), jnp.float32)
            bb = jnp.zeros((16,), jnp.float32)
            got = _conv3x3_pallas((xa, xb), (wa, wb), bb, None, None,
                                  leaky=True, out_dtype=jnp.float32,
                                  row_tile=4, packed=True)
            got = jax.block_until_ready(got)
            want = _conv3x3_reference(jnp.concatenate([xa, xb], axis=-1),
                                      jnp.concatenate([wa, wb], axis=2), bb,
                                      leaky=True)
            _PACKED_LHS_OK = bool(jnp.max(jnp.abs(got - want)) < 2e-2)
        except Exception:
            _PACKED_LHS_OK = False
    return _PACKED_LHS_OK


def conv3x3_layer(x, w, b, scale=None, shift=None, *, leaky=True,
                  out_dtype=jnp.bfloat16, row_tile=None):
    """Fused 3x3 'same' conv (+ folded BN affine, + optional LeakyReLU).

    x, w may be single arrays or matching tuples; a tuple means the conv is
    taken over the channel-concatenation of the inputs with the weight split
    accordingly (conv(concat([a, b])) == conv_a(a) + conv_b(b)), so the concat
    never round-trips through HBM.

    x_i: (N, H, W, Cin_i) NHWC;  w_i: (3, 3, Cin_i, Cout) HWIO;  b: (Cout,).
    scale/shift: optional eval-mode BatchNorm folded per-channel affine.
    """
    xs = tuple(x) if isinstance(x, (tuple, list)) else (x,)
    ws = tuple(w) if isinstance(w, (tuple, list)) else (w,)
    return _conv3x3_pallas(xs, ws, b, scale, shift, leaky=leaky,
                           out_dtype=out_dtype, row_tile=row_tile,
                           packed=_packed_lhs_supported())


# ---------------------------------------------------------------------------
# Glue: pooling / upsampling (cheap layout ops; NHWC, bf16)
# ---------------------------------------------------------------------------
def maxpool2(x):
    n, h, w, c = x.shape
    return jnp.max(x.reshape(n, h // 2, 2, w // 2, 2, c), axis=(2, 4))


def upsample2_nearest(x):
    return jnp.repeat(jnp.repeat(x, 2, axis=1), 2, axis=2)


# ---------------------------------------------------------------------------
# Parameter init (deterministic, shapes per the module's __init__)
# ---------------------------------------------------------------------------
def _conv_init(key, cin, cout):
    kw, kb = jax.random.split(key)
    bound = 1.0 / (cin * 9) ** 0.5
    w = jax.random.uniform(kw, (3, 3, cin, cout), jnp.float32, -bound, bound)
    b = jax.random.uniform(kb, (cout,), jnp.float32, -bound, bound)
    return w, b


def _bn_folded(c, eps=1e-5):
    # PyTorch BatchNorm2d default init: gamma=1, beta=0, running_mean=0,
    # running_var=1.  Eval mode -> per-channel affine.
    gamma = jnp.ones((c,), jnp.float32)
    beta = jnp.zeros((c,), jnp.float32)
    mean = jnp.zeros((c,), jnp.float32)
    var = jnp.ones((c,), jnp.float32)
    scale = gamma / jnp.sqrt(var + eps)
    shift = beta - mean * scale
    return scale, shift


def init_params(key, n=3, m=3,
                enc_in=48, enc_out=48, dec_in=96, dec_out=96, deconv_in=144):
    ks = jax.random.split(key, 11)
    p = {}
    p["conv0"] = _conv_init(ks[0], n, enc_in)
    p["enc1"] = _conv_init(ks[1], enc_in, enc_out) + _bn_folded(enc_out)
    p["enc2"] = _conv_init(ks[2], enc_in, enc_out) + _bn_folded(enc_out)
    p["enc3"] = _conv_init(ks[3], enc_in, enc_out) + _bn_folded(enc_out)
    p["dec1"] = _conv_init(ks[4], enc_in, enc_out) + _bn_folded(enc_out)
    p["deconv1"] = _conv_init(ks[5], dec_in, dec_out)
    p["dec2"] = _conv_init(ks[6], dec_in, dec_out) + _bn_folded(dec_out)
    p["deconv2"] = _conv_init(ks[7], deconv_in, dec_out)
    p["dec3"] = _conv_init(ks[8], dec_in, dec_out) + _bn_folded(dec_out)
    p["conv1"] = _conv_init(ks[9], dec_in + n, 64)
    kc2, kc3 = jax.random.split(ks[10])
    p["conv2"] = _conv_init(kc2, 64, 32)
    p["conv3"] = _conv_init(kc3, 32, m)
    return p


# ---------------------------------------------------------------------------
# Forward pass (matches Noise2Noise.forward, eval mode)
# ---------------------------------------------------------------------------
def _encoding_block(x, w, b, scale, shift):
    # conv -> BN -> LeakyReLU (fused in the Pallas kernel) -> Dropout(identity)
    # -> MaxPool2d(2).
    # TODO(synk): fuse the 2x2 max-pool into the conv epilogue to save one HBM
    #             round-trip per encoder block.
    y = conv3x3_layer(x, w, b, scale, shift, leaky=True)
    return maxpool2(y)


def _decoding_block(x, w, b, scale, shift):
    # conv -> BN -> LeakyReLU (fused) -> Upsample(nearest,2x) -> Dropout(id).
    # TODO(synk): fold the nearest upsample into the consuming conv's input
    #             indexing instead of materializing a 4x tensor.
    y = conv3x3_layer(x, w, b, scale, shift, leaky=True)
    return upsample2_nearest(y)


def noise2noise_forward(x_nchw, params):
    # Public layout matches PyTorch (NCHW); compute runs in NHWC with bf16
    # activations between layers, f32 final output.
    x = jnp.transpose(x_nchw, (0, 2, 3, 1)).astype(jnp.float32)
    input_ = x

    x = conv3x3_layer(x, *params["conv0"], leaky=True)

    pool1 = _encoding_block(x, *params["enc1"])
    pool2 = _encoding_block(pool1, *params["enc2"])
    pool3 = _encoding_block(pool2, *params["enc3"])

    upsample3 = _decoding_block(pool3, *params["dec1"])
    # deconv1(concat([upsample3, pool2])) without the HBM concat.
    w, b = params["deconv1"]
    c = upsample3.shape[-1]
    dec_conv3a = conv3x3_layer((upsample3, pool2),
                               (w[:, :, :c, :], w[:, :, c:, :]), b, leaky=True)

    upsample2_ = _decoding_block(dec_conv3a, *params["dec2"])
    w, b = params["deconv2"]
    c = upsample2_.shape[-1]
    dec_conv2a = conv3x3_layer((upsample2_, pool1),
                               (w[:, :, :c, :], w[:, :, c:, :]), b, leaky=True)

    upsample1 = _decoding_block(dec_conv2a, *params["dec3"])
    w, b = params["conv1"]
    c = upsample1.shape[-1]
    r = conv3x3_layer((upsample1, input_),
                      (w[:, :, :c, :], w[:, :, c:, :]), b, leaky=True)

    r = conv3x3_layer(r, *params["conv2"], leaky=True)
    # Final conv: no activation; store f32.
    r = conv3x3_layer(r, *params["conv3"], leaky=False, out_dtype=jnp.float32)

    return jnp.transpose(r, (0, 3, 1, 2))  # back to NCHW


# ---------------------------------------------------------------------------
# Plain-JAX reference for the fused conv layer (for standalone self-checks)
# ---------------------------------------------------------------------------
def _conv3x3_reference(x, w, b, scale=None, shift=None, *, leaky=True):
    xb = x.astype(jnp.bfloat16).astype(jnp.float32)
    wb = w.astype(jnp.bfloat16).astype(jnp.float32)
    y = lax.conv_general_dilated(
        xb, wb, window_strides=(1, 1), padding="SAME",
        dimension_numbers=("NHWC", "HWIO", "NHWC"),
        precision=lax.Precision.HIGHEST)
    y = y + b.astype(jnp.float32)
    if scale is not None:
        y = y * scale + shift
    if leaky:
        y = jnp.where(y > 0, y, NEG_SLOPE * y)
    return y


if __name__ == "__main__":
    key = jax.random.PRNGKey(0)
    params = init_params(key)

    # --- standalone correctness self-checks of the fused conv kernel --------
    # 1) single input, folded BN affine, multi-row-tile path, non-aligned Cin.
    kx = jax.random.normal(jax.random.fold_in(key, 1), (2, 16, 16, 5),
                           jnp.float32)
    cw, cb = _conv_init(jax.random.fold_in(key, 2), 5, 48)
    csc, csh = _bn_folded(48)
    csc = csc * 1.3
    csh = csh + 0.1
    got = conv3x3_layer(kx, cw, cb, csc, csh, leaky=True,
                        out_dtype=jnp.float32, row_tile=8)
    want = _conv3x3_reference(kx, cw, cb, csc, csh, leaky=True)
    err = float(jnp.max(jnp.abs(got - want)))
    assert err < 5e-2, f"conv kernel mismatch: max abs err {err}"

    # 2) dual-input (concat-elimination) path vs conv over the real concat.
    xa = jax.random.normal(jax.random.fold_in(key, 3), (2, 8, 8, 48),
                           jnp.float32)
    xb = jax.random.normal(jax.random.fold_in(key, 4), (2, 8, 8, 16),
                           jnp.float32)
    cw2, cb2 = _conv_init(jax.random.fold_in(key, 5), 64, 32)
    got2 = conv3x3_layer((xa, xb), (cw2[:, :, :48, :], cw2[:, :, 48:, :]), cb2,
                         leaky=True, out_dtype=jnp.float32)
    want2 = _conv3x3_reference(jnp.concatenate([xa, xb], axis=-1), cw2, cb2,
                               leaky=True)
    err2 = float(jnp.max(jnp.abs(got2 - want2)))
    assert err2 < 5e-2, f"dual-input conv mismatch: max abs err {err2}"

    # --- full forward pass ---------------------------------------------------
    # batch=2, channels=3 (n=3), spatial=16 (divisible by 2^3 for the three
    # pool/upsample levels).
    x = jax.random.normal(jax.random.fold_in(key, 999), (2, 3, 16, 16),
                          jnp.float32)
    fwd = jax.jit(functools.partial(noise2noise_forward, params=params))
    out = jax.block_until_ready(fwd(x))

    assert out.shape == (2, 3, 16, 16), out.shape
    assert bool(jnp.all(jnp.isfinite(out)))
    print("KERNEL_OK")
</pallas_src>

<mosaic_0001>
module attributes {stable_mosaic.version = 11 : i64} {
  func.func @_conv3x3_kernel(%arg0: i32, %arg1: i32, %arg2: memref<1x10x10x3xbf16, #tpu.memory_space<vmem>>, %arg3: memref<1x10x10x48xbf16, #tpu.memory_space<vmem>>, %arg4: memref<459x16xbf16, #tpu.memory_space<vmem>>, %arg5: memref<1x16xf32, #tpu.memory_space<vmem>>, %arg6: memref<1x16xf32, #tpu.memory_space<vmem>>, %arg7: memref<1x4x8x16xf32, #tpu.memory_space<vmem>>, %arg8: memref<32x459xbf16, #tpu.memory_space<vmem>>) attributes {dimension_semantics = [#tpu.dimension_semantics<parallel>, #tpu.dimension_semantics<arbitrary>], iteration_bounds = array<i64: 1, 2>, scalar_prefetch = 0 : i64, scratch_operands = 1 : i64, tpu.core_type = #tpu.core_type<tc>, window_params = [{transform_indices = @transform_0, window_bounds = array<i64: 1, 10, 10, 3>}, {transform_indices = @transform_1, window_bounds = array<i64: 1, 10, 10, 48>}, {pipeline_mode = #tpu.pipeline_mode<synchronous>, transform_indices = @transform_2, window_bounds = array<i64: 459, 16>}, {pipeline_mode = #tpu.pipeline_mode<synchronous>, transform_indices = @transform_3, window_bounds = array<i64: 1, 16>}, {pipeline_mode = #tpu.pipeline_mode<synchronous>, transform_indices = @transform_4, window_bounds = array<i64: 1, 16>}, {transform_indices = @transform_5, window_bounds = array<i64: 1, 4, 8, 16>}]} {
    %c4_i32 = arith.constant 4 : i32
    %0 = arith.muli %arg1, %c4_i32 : i32
    %c0_i32 = arith.constant 0 : i32
    %1 = arith.addi %0, %c0_i32 : i32
    %c0 = arith.constant 0 : index
    %2 = arith.index_cast %1 : i32 to index
    %c0_0 = arith.constant 0 : index
    %c0_1 = arith.constant 0 : index
    %3 = vector.load %arg2[%c0, %2, %c0_0, %c0_1] : memref<1x10x10x3xbf16, #tpu.memory_space<vmem>>, vector<1x4x10x3xbf16>
    %4 = vector.shape_cast %3 : vector<1x4x10x3xbf16> to vector<4x10x3xbf16>
    %5 = vector.extract_strided_slice %4 {offsets = [0, 0, 0], sizes = [4, 8, 3], strides = [1, 1, 1]} : vector<4x10x3xbf16> to vector<4x8x3xbf16>
    %6 = vector.shape_cast %5 : vector<4x8x3xbf16> to vector<32x3xbf16>
    %c0_2 = arith.constant 0 : index
    %c0_3 = arith.constant 0 : index
    %7 = vector.load %arg8[%c0_2, %c0_3] : memref<32x459xbf16, #tpu.memory_space<vmem>>, vector<32x3xbf16>
    tpu.vector_store %arg8[%c0_2, %c0_3], %6 {strides = array<i32>} : memref<32x459xbf16, #tpu.memory_space<vmem>>, vector<32x3xbf16>,
    %8 = vector.extract_strided_slice %4 {offsets = [0, 1, 0], sizes = [4, 8, 3], strides = [1, 1, 1]} : vector<4x10x3xbf16> to vector<4x8x3xbf16>
    %9 = vector.shape_cast %8 : vector<4x8x3xbf16> to vector<32x3xbf16>
    %c0_4 = arith.constant 0 : index
    %c3 = arith.constant 3 : index
    %10 = vector.load %arg8[%c0_4, %c3] : memref<32x459xbf16, #tpu.memory_space<vmem>>, vector<32x3xbf16>
    tpu.vector_store %arg8[%c0_4, %c3], %9 {strides = array<i32>} : memref<32x459xbf16, #tpu.memory_space<vmem>>, vector<32x3xbf16>,
    %11 = vector.extract_strided_slice %4 {offsets = [0, 2, 0], sizes = [4, 8, 3], strides = [1, 1, 1]} : vector<4x10x3xbf16> to vector<4x8x3xbf16>
    %12 = vector.shape_cast %11 : vector<4x8x3xbf16> to vector<32x3xbf16>
    %c0_5 = arith.constant 0 : index
    %c6 = arith.constant 6 : index
    %13 = vector.load %arg8[%c0_5, %c6] : memref<32x459xbf16, #tpu.memory_space<vmem>>, vector<32x3xbf16>
    tpu.vector_store %arg8[%c0_5, %c6], %12 {strides = array<i32>} : memref<32x459xbf16, #tpu.memory_space<vmem>>, vector<32x3xbf16>,
    %c1_i32 = arith.constant 1 : i32
    %14 = arith.addi %0, %c1_i32 : i32
    %c0_6 = arith.constant 0 : index
    %15 = arith.index_cast %14 : i32 to index
    %c0_7 = arith.constant 0 : index
    %c0_8 = arith.constant 0 : index
    %16 = vector.load %arg2[%c0_6, %15, %c0_7, %c0_8] : memref<1x10x10x3xbf16, #tpu.memory_space<vmem>>, vector<1x4x10x3xbf16>
    %17 = vector.shape_cast %16 : vector<1x4x10x3xbf16> to vector<4x10x3xbf16>
    %18 = vector.extract_strided_slice %17 {offsets = [0, 0, 0], sizes = [4, 8, 3], strides = [1, 1, 1]} : vector<4x10x3xbf16> to vector<4x8x3xbf16>
    %19 = vector.shape_cast %18 : vector<4x8x3xbf16> to vector<32x3xbf16>
    %c0_9 = arith.constant 0 : index
    %c9 = arith.constant 9 : index
    %20 = vector.load %arg8[%c0_9, %c9] : memref<32x459xbf16, #tpu.memory_space<vmem>>, vector<32x3xbf16>
    tpu.vector_store %arg8[%c0_9, %c9], %19 {strides = array<i32>} : memref<32x459xbf16, #tpu.memory_space<vmem>>, vector<32x3xbf16>,
    %21 = vector.extract_strided_slice %17 {offsets = [0, 1, 0], sizes = [4, 8, 3], strides = [1, 1, 1]} : vector<4x10x3xbf16> to vector<4x8x3xbf16>
    %22 = vector.shape_cast %21 : vector<4x8x3xbf16> to vector<32x3xbf16>
    %c0_10 = arith.constant 0 : index
    %c12 = arith.constant 12 : index
    %23 = vector.load %arg8[%c0_10, %c12] : memref<32x459xbf16, #tpu.memory_space<vmem>>, vector<32x3xbf16>
    tpu.vector_store %arg8[%c0_10, %c12], %22 {strides = array<i32>} : memref<32x459xbf16, #tpu.memory_space<vmem>>, vector<32x3xbf16>,
    %24 = vector.extract_strided_slice %17 {offsets = [0, 2, 0], sizes = [4, 8, 3], strides = [1, 1, 1]} : vector<4x10x3xbf16> to vector<4x8x3xbf16>
    %25 = vector.shape_cast %24 : vector<4x8x3xbf16> to vector<32x3xbf16>
    %c0_11 = arith.constant 0 : index
    %c15 = arith.constant 15 : index
    %26 = vector.load %arg8[%c0_11, %c15] : memref<32x459xbf16, #tpu.memory_space<vmem>>, vector<32x3xbf16>
    tpu.vector_store %arg8[%c0_11, %c15], %25 {strides = array<i32>} : memref<32x459xbf16, #tpu.memory_space<vmem>>, vector<32x3xbf16>,
    %c2_i32 = arith.constant 2 : i32
    %27 = arith.addi %0, %c2_i32 : i32
    %c0_12 = arith.constant 0 : index
    %28 = arith.index_cast %27 : i32 to index
    %c0_13 = arith.constant 0 : index
    %c0_14 = arith.constant 0 : index
    %29 = vector.load %arg2[%c0_12, %28, %c0_13, %c0_14] : memref<1x10x10x3xbf16, #tpu.memory_space<vmem>>, vector<1x4x10x3xbf16>
    %30 = vector.shape_cast %29 : vector<1x4x10x3xbf16> to vector<4x10x3xbf16>
    %31 = vector.extract_strided_slice %30 {offsets = [0, 0, 0], sizes = [4, 8, 3], strides = [1, 1, 1]} : vector<4x10x3xbf16> to vector<4x8x3xbf16>
    %32 = vector.shape_cast %31 : vector<4x8x3xbf16> to vector<32x3xbf16>
    %c0_15 = arith.constant 0 : index
    %c18 = arith.constant 18 : index
    %33 = vector.load %arg8[%c0_15, %c18] : memref<32x459xbf16, #tpu.memory_space<vmem>>, vector<32x3xbf16>
    tpu.vector_store %arg8[%c0_15, %c18], %32 {strides = array<i32>} : memref<32x459xbf16, #tpu.memory_space<vmem>>, vector<32x3xbf16>,
    %34 = vector.extract_strided_slice %30 {offsets = [0, 1, 0], sizes = [4, 8, 3], strides = [1, 1, 1]} : vector<4x10x3xbf16> to vector<4x8x3xbf16>
    %35 = vector.shape_cast %34 : vector<4x8x3xbf16> to vector<32x3xbf16>
    %c0_16 = arith.constant 0 : index
    %c21 = arith.constant 21 : index
    %36 = vector.load %arg8[%c0_16, %c21] : memref<32x459xbf16, #tpu.memory_space<vmem>>, vector<32x3xbf16>
    tpu.vector_store %arg8[%c0_16, %c21], %35 {strides = array<i32>} : memref<32x459xbf16, #tpu.memory_space<vmem>>, vector<32x3xbf16>,
    %37 = vector.extract_strided_slice %30 {offsets = [0, 2, 0], sizes = [4, 8, 3], strides = [1, 1, 1]} : vector<4x10x3xbf16> to vector<4x8x3xbf16>
    %38 = vector.shape_cast %37 : vector<4x8x3xbf16> to vector<32x3xbf16>
    %c0_17 = arith.constant 0 : index
    %c24 = arith.constant 24 : index
    %39 = vector.load %arg8[%c0_17, %c24] : memref<32x459xbf16, #tpu.memory_space<vmem>>, vector<32x3xbf16>
    tpu.vector_store %arg8[%c0_17, %c24], %38 {strides = array<i32>} : memref<32x459xbf16, #tpu.memory_space<vmem>>, vector<32x3xbf16>,
    %c0_i32_18 = arith.constant 0 : i32
    %40 = arith.addi %0, %c0_i32_18 : i32
    %c0_19 = arith.constant 0 : index
    %41 = arith.index_cast %40 : i32 to index
    %c0_20 = arith.constant 0 : index
    %c0_21 = arith.constant 0 : index
    %42 = vector.load %arg3[%c0_19, %41, %c0_20, %c0_21] : memref<1x10x10x48xbf16, #tpu.memory_space<vmem>>, vector<1x4x10x48xbf16>
    %43 = vector.shape_cast %42 : vector<1x4x10x48xbf16> to vector<4x10x48xbf16>
    %44 = vector.extract_strided_slice %43 {offsets = [0, 0, 0], sizes = [4, 8, 48], strides = [1, 1, 1]} : vector<4x10x48xbf16> to vector<4x8x48xbf16>
    %45 = vector.shape_cast %44 : vector<4x8x48xbf16> to vector<32x48xbf16>
    %c0_22 = arith.constant 0 : index
    %c27 = arith.constant 27 : index
    %46 = vector.load %arg8[%c0_22, %c27] : memref<32x459xbf16, #tpu.memory_space<vmem>>, vector<32x48xbf16>
    tpu.vector_store %arg8[%c0_22, %c27], %45 {strides = array<i32>} : memref<32x459xbf16, #tpu.memory_space<vmem>>, vector<32x48xbf16>,
    %47 = vector.extract_strided_slice %43 {offsets = [0, 1, 0], sizes = [4, 8, 48], strides = [1, 1, 1]} : vector<4x10x48xbf16> to vector<4x8x48xbf16>
    %48 = vector.shape_cast %47 : vector<4x8x48xbf16> to vector<32x48xbf16>
    %c0_23 = arith.constant 0 : index
    %c75 = arith.constant 75 : index
    %49 = vector.load %arg8[%c0_23, %c75] : memref<32x459xbf16, #tpu.memory_space<vmem>>, vector<32x48xbf16>
    tpu.vector_store %arg8[%c0_23, %c75], %48 {strides = array<i32>} : memref<32x459xbf16, #tpu.memory_space<vmem>>, vector<32x48xbf16>,
    %50 = vector.extract_strided_slice %43 {offsets = [0, 2, 0], sizes = [4, 8, 48], strides = [1, 1, 1]} : vector<4x10x48xbf16> to vector<4x8x48xbf16>
    %51 = vector.shape_cast %50 : vector<4x8x48xbf16> to vector<32x48xbf16>
    %c0_24 = arith.constant 0 : index
    %c123 = arith.constant 123 : index
    %52 = vector.load %arg8[%c0_24, %c123] : memref<32x459xbf16, #tpu.memory_space<vmem>>, vector<32x48xbf16>
    tpu.vector_store %arg8[%c0_24, %c123], %51 {strides = array<i32>} : memref<32x459xbf16, #tpu.memory_space<vmem>>, vector<32x48xbf16>,
    %c1_i32_25 = arith.constant 1 : i32
    %53 = arith.addi %0, %c1_i32_25 : i32
    %c0_26 = arith.constant 0 : index
    %54 = arith.index_cast %53 : i32 to index
    %c0_27 = arith.constant 0 : index
    %c0_28 = arith.constant 0 : index
    %55 = vector.load %arg3[%c0_26, %54, %c0_27, %c0_28] : memref<1x10x10x48xbf16, #tpu.memory_space<vmem>>, vector<1x4x10x48xbf16>
    %56 = vector.shape_cast %55 : vector<1x4x10x48xbf16> to vector<4x10x48xbf16>
    %57 = vector.extract_strided_slice %56 {offsets = [0, 0, 0], sizes = [4, 8, 48], strides = [1, 1, 1]} : vector<4x10x48xbf16> to vector<4x8x48xbf16>
    %58 = vector.shape_cast %57 : vector<4x8x48xbf16> to vector<32x48xbf16>
    %c0_29 = arith.constant 0 : index
    %c171 = arith.constant 171 : index
    %59 = vector.load %arg8[%c0_29, %c171] : memref<32x459xbf16, #tpu.memory_space<vmem>>, vector<32x48xbf16>
    tpu.vector_store %arg8[%c0_29, %c171], %58 {strides = array<i32>} : memref<32x459xbf16, #tpu.memory_space<vmem>>, vector<32x48xbf16>,
    %60 = vector.extract_strided_slice %56 {offsets = [0, 1, 0], sizes = [4, 8, 48], strides = [1, 1, 1]} : vector<4x10x48xbf16> to vector<4x8x48xbf16>
    %61 = vector.shape_cast %60 : vector<4x8x48xbf16> to vector<32x48xbf16>
    %c0_30 = arith.constant 0 : index
    %c219 = arith.constant 219 : index
    %62 = vector.load %arg8[%c0_30, %c219] : memref<32x459xbf16, #tpu.memory_space<vmem>>, vector<32x48xbf16>
    tpu.vector_store %arg8[%c0_30, %c219], %61 {strides = array<i32>} : memref<32x459xbf16, #tpu.memory_space<vmem>>, vector<32x48xbf16>,
    %63 = vector.extract_strided_slice %56 {offsets = [0, 2, 0], sizes = [4, 8, 48], strides = [1, 1, 1]} : vector<4x10x48xbf16> to vector<4x8x48xbf16>
    %64 = vector.shape_cast %63 : vector<4x8x48xbf16> to vector<32x48xbf16>
    %c0_31 = arith.constant 0 : index
    %c267 = arith.constant 267 : index
    %65 = vector.load %arg8[%c0_31, %c267] : memref<32x459xbf16, #tpu.memory_space<vmem>>, vector<32x48xbf16>
    tpu.vector_store %arg8[%c0_31, %c267], %64 {strides = array<i32>} : memref<32x459xbf16, #tpu.memory_space<vmem>>, vector<32x48xbf16>,
    %c2_i32_32 = arith.constant 2 : i32
    %66 = arith.addi %0, %c2_i32_32 : i32
    %c0_33 = arith.constant 0 : index
    %67 = arith.index_cast %66 : i32 to index
    %c0_34 = arith.constant 0 : index
    %c0_35 = arith.constant 0 : index
    %68 = vector.load %arg3[%c0_33, %67, %c0_34, %c0_35] : memref<1x10x10x48xbf16, #tpu.memory_space<vmem>>, vector<1x4x10x48xbf16>
    %69 = vector.shape_cast %68 : vector<1x4x10x48xbf16> to vector<4x10x48xbf16>
    %70 = vector.extract_strided_slice %69 {offsets = [0, 0, 0], sizes = [4, 8, 48], strides = [1, 1, 1]} : vector<4x10x48xbf16> to vector<4x8x48xbf16>
    %71 = vector.shape_cast %70 : vector<4x8x48xbf16> to vector<32x48xbf16>
    %c0_36 = arith.constant 0 : index
    %c315 = arith.constant 315 : index
    %72 = vector.load %arg8[%c0_36, %c315] : memref<32x459xbf16, #tpu.memory_space<vmem>>, vector<32x48xbf16>
    tpu.vector_store %arg8[%c0_36, %c315], %71 {strides = array<i32>} : memref<32x459xbf16, #tpu.memory_space<vmem>>, vector<32x48xbf16>,
    %73 = vector.extract_strided_slice %69 {offsets = [0, 1, 0], sizes = [4, 8, 48], strides = [1, 1, 1]} : vector<4x10x48xbf16> to vector<4x8x48xbf16>
    %74 = vector.shape_cast %73 : vector<4x8x48xbf16> to vector<32x48xbf16>
    %c0_37 = arith.constant 0 : index
    %c363 = arith.constant 363 : index
    %75 = vector.load %arg8[%c0_37, %c363] : memref<32x459xbf16, #tpu.memory_space<vmem>>, vector<32x48xbf16>
    tpu.vector_store %arg8[%c0_37, %c363], %74 {strides = array<i32>} : memref<32x459xbf16, #tpu.memory_space<vmem>>, vector<32x48xbf16>,
    %76 = vector.extract_strided_slice %69 {offsets = [0, 2, 0], sizes = [4, 8, 48], strides = [1, 1, 1]} : vector<4x10x48xbf16> to vector<4x8x48xbf16>
    %77 = vector.shape_cast %76 : vector<4x8x48xbf16> to vector<32x48xbf16>
    %c0_38 = arith.constant 0 : index
    %c411 = arith.constant 411 : index
    %78 = vector.load %arg8[%c0_38, %c411] : memref<32x459xbf16, #tpu.memory_space<vmem>>, vector<32x48xbf16>
    tpu.vector_store %arg8[%c0_38, %c411], %77 {strides = array<i32>} : memref<32x459xbf16, #tpu.memory_space<vmem>>, vector<32x48xbf16>,
    %c0_39 = arith.constant 0 : index
    %c0_40 = arith.constant 0 : index
    %79 = vector.load %arg8[%c0_39, %c0_40] : memref<32x459xbf16, #tpu.memory_space<vmem>>, vector<32x459xbf16>
    %c0_41 = arith.constant 0 : index
    %c0_42 = arith.constant 0 : index
    %80 = vector.load %arg4[%c0_41, %c0_42] : memref<459x16xbf16, #tpu.memory_space<vmem>>, vector<459x16xbf16>
    %cst = arith.constant dense<0.000000e+00> : vector<32x16xf32>
    %81 = tpu.matmul %79, %80, %cst {dimension_numbers = #tpu.dot_dimension_numbers<[1], [0], [0], [1], [0, 0, 1, 1], [], []>} : vector<32x459xbf16>, vector<459x16xbf16>, vector<32x16xf32> -> vector<32x16xf32>
    %c0_43 = arith.constant 0 : index
    %c0_44 = arith.constant 0 : index
    %82 = vector.load %arg5[%c0_43, %c0_44] : memref<1x16xf32, #tpu.memory_space<vmem>>, vector<1x16xf32>
    %83 = vector.broadcast %82 : vector<1x16xf32> to vector<32x16xf32>
    %84 = arith.mulf %81, %83 : vector<32x16xf32>
    %c0_45 = arith.constant 0 : index
    %c0_46 = arith.constant 0 : index
    %85 = vector.load %arg6[%c0_45, %c0_46] : memref<1x16xf32, #tpu.memory_space<vmem>>, vector<1x16xf32>
    %86 = vector.broadcast %85 : vector<1x16xf32> to vector<32x16xf32>
    %87 = arith.addf %84, %86 : vector<32x16xf32>
    %cst_47 = arith.constant 0.000000e+00 : f32
    %88 = vector.broadcast %cst_47 : f32 to vector<32x16xf32>
    %89 = arith.cmpf ogt, %87, %88 : vector<32x16xf32>
    %cst_48 = arith.constant 1.000000e-01 : f32
    %90 = vector.broadcast %cst_48 : f32 to vector<32x16xf32>
    %91 = arith.mulf %90, %87 : vector<32x16xf32>
    %92 = arith.select %89, %87, %91 : vector<32x16xi1>, vector<32x16xf32>
    %93 = vector.shape_cast %92 : vector<32x16xf32> to vector<4x8x16xf32>
    %c0_49 = arith.constant 0 : index
    %c0_50 = arith.constant 0 : index
    %c0_51 = arith.constant 0 : index
    %c0_52 = arith.constant 0 : index
    %94 = vector.load %arg7[%c0_49, %c0_50, %c0_51, %c0_52] : memref<1x4x8x16xf32, #tpu.memory_space<vmem>>, vector<1x4x8x16xf32>
    %95 = vector.shape_cast %94 : vector<1x4x8x16xf32> to vector<4x8x16xf32>
    %96 = vector.shape_cast %93 : vector<4x8x16xf32> to vector<1x4x8x16xf32>
    tpu.vector_store %arg7[%c0_49, %c0_50, %c0_51, %c0_52], %96 {strides = array<i32>} : memref<1x4x8x16xf32, #tpu.memory_space<vmem>>, vector<1x4x8x16xf32>,
    return
  }
  func.func @transform_0(%arg0: i32, %arg1: i32) -> (i32, i32, i32, i32) {
    %c0_i32 = arith.constant 0 : i32
    %c0_i32_0 = arith.constant 0 : i32
    %c0_i32_1 = arith.constant 0 : i32
    %c0_i32_2 = arith.constant 0 : i32
    return %arg0, %c0_i32, %c0_i32_0, %c0_i32_1 : i32, i32, i32, i32
  }
  func.func @transform_1(%arg0: i32, %arg1: i32) -> (i32, i32, i32, i32) {
    %c0_i32 = arith.constant 0 : i32
    %c0_i32_0 = arith.constant 0 : i32
    %c0_i32_1 = arith.constant 0 : i32
    %c0_i32_2 = arith.constant 0 : i32
    return %arg0, %c0_i32, %c0_i32_0, %c0_i32_1 : i32, i32, i32, i32
  }
  func.func @transform_2(%arg0: i32, %arg1: i32) -> (i32, i32) {
    %c0_i32 = arith.constant 0 : i32
    %c0_i32_0 = arith.constant 0 : i32
    %c0_i32_1 = arith.constant 0 : i32
    return %c0_i32, %c0_i32_0 : i32, i32
  }
  func.func @transform_3(%arg0: i32, %arg1: i32) -> (i32, i32) {
    %c0_i32 = arith.constant 0 : i32
    %c0_i32_0 = arith.constant 0 : i32
    %c0_i32_1 = arith.constant 0 : i32
    return %c0_i32, %c0_i32_0 : i32, i32
  }
  func.func @transform_4(%arg0: i32, %arg1: i32) -> (i32, i32) {
    %c0_i32 = arith.constant 0 : i32
    %c0_i32_0 = arith.constant 0 : i32
    %c0_i32_1 = arith.constant 0 : i32
    return %c0_i32, %c0_i32_0 : i32, i32
  }
  func.func @transform_5(%arg0: i32, %arg1: i32) -> (i32, i32, i32, i32) {
    %c0_i32 = arith.constant 0 : i32
    %c0_i32_0 = arith.constant 0 : i32
    %c0_i32_1 = arith.constant 0 : i32
    return %arg0, %arg1, %c0_i32, %c0_i32_0 : i32, i32, i32, i32
  }
}

module attributes {stable_mosaic.version = 11 : i64} {
  func.func @_conv3x3_kernel(%arg0: i32, %arg1: i32, %arg2: memref<1x18x18x5xbf16, #tpu.memory_space<vmem>>, %arg3: memref<9x5x48xbf16, #tpu.memory_space<vmem>>, %arg4: memref<1x48xf32, #tpu.memory_space<vmem>>, %arg5: memref<1x48xf32, #tpu.memory_space<vmem>>, %arg6: memref<1x8x16x48xf32, #tpu.memory_space<vmem>>) attributes {dimension_semantics = [#tpu.dimension_semantics<parallel>, #tpu.dimension_semantics<arbitrary>], iteration_bounds = array<i64: 2, 2>, scalar_prefetch = 0 : i64, scratch_operands = 0 : i64, tpu.core_type = #tpu.core_type<tc>, window_params = [{transform_indices = @transform_0, window_bounds = array<i64: 1, 18, 18, 5>}, {pipeline_mode = #tpu.pipeline_mode<synchronous>, transform_indices = @transform_1, window_bounds = array<i64: 9, 5, 48>}, {pipeline_mode = #tpu.pipeline_mode<synchronous>, transform_indices = @transform_2, window_bounds = array<i64: 1, 48>}, {pipeline_mode = #tpu.pipeline_mode<synchronous>, transform_indices = @transform_3, window_bounds = array<i64: 1, 48>}, {transform_indices = @transform_4, window_bounds = array<i64: 1, 8, 16, 48>}]} {
    %c8_i32 = arith.constant 8 : i32
    %0 = arith.muli %arg1, %c8_i32 : i32
    %cst = arith.constant 0.000000e+00 : f32
    %1 = vector.broadcast %cst : f32 to vector<128x48xf32>
    %c0_i32 = arith.constant 0 : i32
    %2 = arith.addi %0, %c0_i32 : i32
    %c0 = arith.constant 0 : index
    %3 = arith.index_cast %2 : i32 to index
    %c0_0 = arith.constant 0 : index
    %c0_1 = arith.constant 0 : index
    %4 = vector.load %arg2[%c0, %3, %c0_0, %c0_1] : memref<1x18x18x5xbf16, #tpu.memory_space<vmem>>, vector<1x8x18x5xbf16>
    %5 = vector.shape_cast %4 : vector<1x8x18x5xbf16> to vector<8x18x5xbf16>
    %6 = vector.extract_strided_slice %5 {offsets = [0, 0, 0], sizes = [8, 16, 5], strides = [1, 1, 1]} : vector<8x18x5xbf16> to vector<8x16x5xbf16>
    %7 = vector.shape_cast %6 : vector<8x16x5xbf16> to vector<128x5xbf16>
    %c0_2 = arith.constant 0 : index
    %c0_3 = arith.constant 0 : index
    %c0_4 = arith.constant 0 : index
    %8 = vector.load %arg3[%c0_2, %c0_3, %c0_4] : memref<9x5x48xbf16, #tpu.memory_space<vmem>>, vector<1x5x48xbf16>
    %9 = vector.shape_cast %8 : vector<1x5x48xbf16> to vector<5x48xbf16>
    %cst_5 = arith.constant dense<0.000000e+00> : vector<128x48xf32>
    %10 = tpu.matmul %7, %9, %cst_5 {dimension_numbers = #tpu.dot_dimension_numbers<[1], [0], [0], [1], [0, 0, 1, 1], [], []>} : vector<128x5xbf16>, vector<5x48xbf16>, vector<128x48xf32> -> vector<128x48xf32>
    %11 = arith.addf %1, %10 : vector<128x48xf32>
    %12 = vector.extract_strided_slice %5 {offsets = [0, 1, 0], sizes = [8, 16, 5], strides = [1, 1, 1]} : vector<8x18x5xbf16> to vector<8x16x5xbf16>
    %13 = vector.shape_cast %12 : vector<8x16x5xbf16> to vector<128x5xbf16>
    %c1 = arith.constant 1 : index
    %c0_6 = arith.constant 0 : index
    %c0_7 = arith.constant 0 : index
    %14 = vector.load %arg3[%c1, %c0_6, %c0_7] : memref<9x5x48xbf16, #tpu.memory_space<vmem>>, vector<1x5x48xbf16>
    %15 = vector.shape_cast %14 : vector<1x5x48xbf16> to vector<5x48xbf16>
    %cst_8 = arith.constant dense<0.000000e+00> : vector<128x48xf32>
    %16 = tpu.matmul %13, %15, %cst_8 {dimension_numbers = #tpu.dot_dimension_numbers<[1], [0], [0], [1], [0, 0, 1, 1], [], []>} : vector<128x5xbf16>, vector<5x48xbf16>, vector<128x48xf32> -> vector<128x48xf32>
    %17 = arith.addf %11, %16 : vector<128x48xf32>
    %18 = vector.extract_strided_slice %5 {offsets = [0, 2, 0], sizes = [8, 16, 5], strides = [1, 1, 1]} : vector<8x18x5xbf16> to vector<8x16x5xbf16>
    %19 = vector.shape_cast %18 : vector<8x16x5xbf16> to vector<128x5xbf16>
    %c2 = arith.constant 2 : index
    %c0_9 = arith.constant 0 : index
    %c0_10 = arith.constant 0 : index
    %20 = vector.load %arg3[%c2, %c0_9, %c0_10] : memref<9x5x48xbf16, #tpu.memory_space<vmem>>, vector<1x5x48xbf16>
    %21 = vector.shape_cast %20 : vector<1x5x48xbf16> to vector<5x48xbf16>
    %cst_11 = arith.constant dense<0.000000e+00> : vector<128x48xf32>
    %22 = tpu.matmul %19, %21, %cst_11 {dimension_numbers = #tpu.dot_dimension_numbers<[1], [0], [0], [1], [0, 0, 1, 1], [], []>} : vector<128x5xbf16>, vector<5x48xbf16>, vector<128x48xf32> -> vector<128x48xf32>
    %23 = arith.addf %17, %22 : vector<128x48xf32>
    %c1_i32 = arith.constant 1 : i32
    %24 = arith.addi %0, %c1_i32 : i32
    %c0_12 = arith.constant 0 : index
    %25 = arith.index_cast %24 : i32 to index
    %c0_13 = arith.constant 0 : index
    %c0_14 = arith.constant 0 : index
    %26 = vector.load %arg2[%c0_12, %25, %c0_13, %c0_14] : memref<1x18x18x5xbf16, #tpu.memory_space<vmem>>, vector<1x8x18x5xbf16>
    %27 = vector.shape_cast %26 : vector<1x8x18x5xbf16> to vector<8x18x5xbf16>
    %28 = vector.extract_strided_slice %27 {offsets = [0, 0, 0], sizes = [8, 16, 5], strides = [1, 1, 1]} : vector<8x18x5xbf16> to vector<8x16x5xbf16>
    %29 = vector.shape_cast %28 : vector<8x16x5xbf16> to vector<128x5xbf16>
    %c3 = arith.constant 3 : index
    %c0_15 = arith.constant 0 : index
    %c0_16 = arith.constant 0 : index
    %30 = vector.load %arg3[%c3, %c0_15, %c0_16] : memref<9x5x48xbf16, #tpu.memory_space<vmem>>, vector<1x5x48xbf16>
    %31 = vector.shape_cast %30 : vector<1x5x48xbf16> to vector<5x48xbf16>
    %cst_17 = arith.constant dense<0.000000e+00> : vector<128x48xf32>
    %32 = tpu.matmul %29, %31, %cst_17 {dimension_numbers = #tpu.dot_dimension_numbers<[1], [0], [0], [1], [0, 0, 1, 1], [], []>} : vector<128x5xbf16>, vector<5x48xbf16>, vector<128x48xf32> -> vector<128x48xf32>
    %33 = arith.addf %23, %32 : vector<128x48xf32>
    %34 = vector.extract_strided_slice %27 {offsets = [0, 1, 0], sizes = [8, 16, 5], strides = [1, 1, 1]} : vector<8x18x5xbf16> to vector<8x16x5xbf16>
    %35 = vector.shape_cast %34 : vector<8x16x5xbf16> to vector<128x5xbf16>
    %c4 = arith.constant 4 : index
    %c0_18 = arith.constant 0 : index
    %c0_19 = arith.constant 0 : index
    %36 = vector.load %arg3[%c4, %c0_18, %c0_19] : memref<9x5x48xbf16, #tpu.memory_space<vmem>>, vector<1x5x48xbf16>
    %37 = vector.shape_cast %36 : vector<1x5x48xbf16> to vector<5x48xbf16>
    %cst_20 = arith.constant dense<0.000000e+00> : vector<128x48xf32>
    %38 = tpu.matmul %35, %37, %cst_20 {dimension_numbers = #tpu.dot_dimension_numbers<[1], [0], [0], [1], [0, 0, 1, 1], [], []>} : vector<128x5xbf16>, vector<5x48xbf16>, vector<128x48xf32> -> vector<128x48xf32>
    %39 = arith.addf %33, %38 : vector<128x48xf32>
    %40 = vector.extract_strided_slice %27 {offsets = [0, 2, 0], sizes = [8, 16, 5], strides = [1, 1, 1]} : vector<8x18x5xbf16> to vector<8x16x5xbf16>
    %41 = vector.shape_cast %40 : vector<8x16x5xbf16> to vector<128x5xbf16>
    %c5 = arith.constant 5 : index
    %c0_21 = arith.constant 0 : index
    %c0_22 = arith.constant 0 : index
    %42 = vector.load %arg3[%c5, %c0_21, %c0_22] : memref<9x5x48xbf16, #tpu.memory_space<vmem>>, vector<1x5x48xbf16>
    %43 = vector.shape_cast %42 : vector<1x5x48xbf16> to vector<5x48xbf16>
    %cst_23 = arith.constant dense<0.000000e+00> : vector<128x48xf32>
    %44 = tpu.matmul %41, %43, %cst_23 {dimension_numbers = #tpu.dot_dimension_numbers<[1], [0], [0], [1], [0, 0, 1, 1], [], []>} : vector<128x5xbf16>, vector<5x48xbf16>, vector<128x48xf32> -> vector<128x48xf32>
    %45 = arith.addf %39, %44 : vector<128x48xf32>
    %c2_i32 = arith.constant 2 : i32
    %46 = arith.addi %0, %c2_i32 : i32
    %c0_24 = arith.constant 0 : index
    %47 = arith.index_cast %46 : i32 to index
    %c0_25 = arith.constant 0 : index
    %c0_26 = arith.constant 0 : index
    %48 = vector.load %arg2[%c0_24, %47, %c0_25, %c0_26] : memref<1x18x18x5xbf16, #tpu.memory_space<vmem>>, vector<1x8x18x5xbf16>
    %49 = vector.shape_cast %48 : vector<1x8x18x5xbf16> to vector<8x18x5xbf16>
    %50 = vector.extract_strided_slice %49 {offsets = [0, 0, 0], sizes = [8, 16, 5], strides = [1, 1, 1]} : vector<8x18x5xbf16> to vector<8x16x5xbf16>
    %51 = vector.shape_cast %50 : vector<8x16x5xbf16> to vector<128x5xbf16>
    %c6 = arith.constant 6 : index
    %c0_27 = arith.constant 0 : index
    %c0_28 = arith.constant 0 : index
    %52 = vector.load %arg3[%c6, %c0_27, %c0_28] : memref<9x5x48xbf16, #tpu.memory_space<vmem>>, vector<1x5x48xbf16>
    %53 = vector.shape_cast %52 : vector<1x5x48xbf16> to vector<5x48xbf16>
    %cst_29 = arith.constant dense<0.000000e+00> : vector<128x48xf32>
    %54 = tpu.matmul %51, %53, %cst_29 {dimension_numbers = #tpu.dot_dimension_numbers<[1], [0], [0], [1], [0, 0, 1, 1], [], []>} : vector<128x5xbf16>, vector<5x48xbf16>, vector<128x48xf32> -> vector<128x48xf32>
    %55 = arith.addf %45, %54 : vector<128x48xf32>
    %56 = vector.extract_strided_slice %49 {offsets = [0, 1, 0], sizes = [8, 16, 5], strides = [1, 1, 1]} : vector<8x18x5xbf16> to vector<8x16x5xbf16>
    %57 = vector.shape_cast %56 : vector<8x16x5xbf16> to vector<128x5xbf16>
    %c7 = arith.constant 7 : index
    %c0_30 = arith.constant 0 : index
    %c0_31 = arith.constant 0 : index
    %58 = vector.load %arg3[%c7, %c0_30, %c0_31] : memref<9x5x48xbf16, #tpu.memory_space<vmem>>, vector<1x5x48xbf16>
    %59 = vector.shape_cast %58 : vector<1x5x48xbf16> to vector<5x48xbf16>
    %cst_32 = arith.constant dense<0.000000e+00> : vector<128x48xf32>
    %60 = tpu.matmul %57, %59, %cst_32 {dimension_numbers = #tpu.dot_dimension_numbers<[1], [0], [0], [1], [0, 0, 1, 1], [], []>} : vector<128x5xbf16>, vector<5x48xbf16>, vector<128x48xf32> -> vector<128x48xf32>
    %61 = arith.addf %55, %60 : vector<128x48xf32>
    %62 = vector.extract_strided_slice %49 {offsets = [0, 2, 0], sizes = [8, 16, 5], strides = [1, 1, 1]} : vector<8x18x5xbf16> to vector<8x16x5xbf16>
    %63 = vector.shape_cast %62 : vector<8x16x5xbf16> to vector<128x5xbf16>
    %c8 = arith.constant 8 : index
    %c0_33 = arith.constant 0 : index
    %c0_34 = arith.constant 0 : index
    %64 = vector.load %arg3[%c8, %c0_33, %c0_34] : memref<9x5x48xbf16, #tpu.memory_space<vmem>>, vector<1x5x48xbf16>
    %65 = vector.shape_cast %64 : vector<1x5x48xbf16> to vector<5x48xbf16>
    %cst_35 = arith.constant dense<0.000000e+00> : vector<128x48xf32>
    %66 = tpu.matmul %63, %65, %cst_35 {dimension_numbers = #tpu.dot_dimension_numbers<[1], [0], [0], [1], [0, 0, 1, 1], [], []>} : vector<128x5xbf16>, vector<5x48xbf16>, vector<128x48xf32> -> vector<128x48xf32>
    %67 = arith.addf %61, %66 : vector<128x48xf32>
    %c0_36 = arith.constant 0 : index
    %c0_37 = arith.constant 0 : index
    %68 = vector.load %arg4[%c0_36, %c0_37] : memref<1x48xf32, #tpu.memory_space<vmem>>, vector<1x48xf32>
    %69 = vector.broadcast %68 : vector<1x48xf32> to vector<128x48xf32>
    %70 = arith.mulf %67, %69 : vector<128x48xf32>
    %c0_38 = arith.constant 0 : index
    %c0_39 = arith.constant 0 : index
    %71 = vector.load %arg5[%c0_38, %c0_39] : memref<1x48xf32, #tpu.memory_space<vmem>>, vector<1x48xf32>
    %72 = vector.broadcast %71 : vector<1x48xf32> to vector<128x48xf32>
    %73 = arith.addf %70, %72 : vector<128x48xf32>
    %cst_40 = arith.constant 0.000000e+00 : f32
    %74 = vector.broadcast %cst_40 : f32 to vector<128x48xf32>
    %75 = arith.cmpf ogt, %73, %74 : vector<128x48xf32>
    %cst_41 = arith.constant 1.000000e-01 : f32
    %76 = vector.broadcast %cst_41 : f32 to vector<128x48xf32>
    %77 = arith.mulf %76, %73 : vector<128x48xf32>
    %78 = arith.select %75, %73, %77 : vector<128x48xi1>, vector<128x48xf32>
    %79 = vector.shape_cast %78 : vector<128x48xf32> to vector<8x16x48xf32>
    %c0_42 = arith.constant 0 : index
    %c0_43 = arith.constant 0 : index
    %c0_44 = arith.constant 0 : index
    %c0_45 = arith.constant 0 : index
    %80 = vector.load %arg6[%c0_42, %c0_43, %c0_44, %c0_45] : memref<1x8x16x48xf32, #tpu.memory_space<vmem>>, vector<1x8x16x48xf32>
    %81 = vector.shape_cast %80 : vector<1x8x16x48xf32> to vector<8x16x48xf32>
    %82 = vector.shape_cast %79 : vector<8x16x48xf32> to vector<1x8x16x48xf32>
    tpu.vector_store %arg6[%c0_42, %c0_43, %c0_44, %c0_45], %82 {strides = array<i32>} : memref<1x8x16x48xf32, #tpu.memory_space<vmem>>, vector<1x8x16x48xf32>,
    return
  }
  func.func @transform_0(%arg0: i32, %arg1: i32) -> (i32, i32, i32, i32) {
    %c0_i32 = arith.constant 0 : i32
    %c0_i32_0 = arith.constant 0 : i32
    %c0_i32_1 = arith.constant 0 : i32
    %c0_i32_2 = arith.constant 0 : i32
    return %arg0, %c0_i32, %c0_i32_0, %c0_i32_1 : i32, i32, i32, i32
  }
  func.func @transform_1(%arg0: i32, %arg1: i32) -> (i32, i32, i32) {
    %c0_i32 = arith.constant 0 : i32
    %c0_i32_0 = arith.constant 0 : i32
    %c0_i32_1 = arith.constant 0 : i32
    %c0_i32_2 = arith.constant 0 : i32
    return %c0_i32, %c0_i32_0, %c0_i32_1 : i32, i32, i32
  }
  func.func @transform_2(%arg0: i32, %arg1: i32) -> (i32, i32) {
    %c0_i32 = arith.constant 0 : i32
    %c0_i32_0 = arith.constant 0 : i32
    %c0_i32_1 = arith.constant 0 : i32
    return %c0_i32, %c0_i32_0 : i32, i32
  }
  func.func @transform_3(%arg0: i32, %arg1: i32) -> (i32, i32) {
    %c0_i32 = arith.constant 0 : i32
    %c0_i32_0 = arith.constant 0 : i32
    %c0_i32_1 = arith.constant 0 : i32
    return %c0_i32, %c0_i32_0 : i32, i32
  }
  func.func @transform_4(%arg0: i32, %arg1: i32) -> (i32, i32, i32, i32) {
    %c0_i32 = arith.constant 0 : i32
    %c0_i32_0 = arith.constant 0 : i32
    %c0_i32_1 = arith.constant 0 : i32
    return %arg0, %arg1, %c0_i32, %c0_i32_0 : i32, i32, i32, i32
  }
}

</mosaic_0001>

<llo_original>
// kernel: tpu_custom_call.1
$region0: #{tpu_custom_call.1}
  #allocation0 [shape = 'u32[]', space=smem, size = 0x4, offset = 0x4, fixed_abs, tag = 'smem constant byte address 0x4 - core index']
  #allocation1 [shape = 'u32[144,128]{1,0:T(1,128)}', space=vmem, size = 0x12000, scoped, tag = 'internal scratch']
  #allocation2 [shape = 'bf16[32,459]{1,0:T(16,128)(2,1)}', space=vmem, size = 0x8000, scoped, tag = 'scratch operand']
  %s0 = inlined_call_operand.vmem [shape: bf16[1,10,10,3], index: 0, kind: input, shape index: {}]
  %s1 = inlined_call_operand.vmem [shape: bf16[1,10,10,48], index: 1, kind: input, shape index: {}]
  %s2 = inlined_call_operand.vmem [shape: bf16[459,16], index: 2, kind: input, shape index: {}]
  %s3 = inlined_call_operand.vmem [shape: f32[1,16], index: 3, kind: input, shape index: {}]
  %s4 = inlined_call_operand.vmem [shape: f32[1,16], index: 4, kind: input, shape index: {}]
  %s5 = inlined_call_operand.hbm [shape: f32[1,8,8,16], index: 5, kind: output, shape index: {}]
  %s6 = sld [smem:[#allocation0]]
  $region53: #{tpu_custom_call.1} parent=0
    _
  %s8 = ssub.s32 1, %s6
  %s9 = scalar_select 0, %s8, %s6
  $region1: #{tpu_custom_call.1} parent=0
    #allocation3 [shape = 'u8[32768]{0}', space=vmem, size = 0x8000, scoped, tag = 'output window, operand 0']
    #allocation4 [shape = 's32[2]{0}', space=sflag, size = 0x8, scoped, tag = 'scoped memory for tpu_custom_call.1']
    %10 = vsyncpa [#allocation4], 0
    %s11 = scalar_lea.sflag [#allocation4], 1
    %12 = vsyncpa %s11, 0
    loop: start=0, step=1, limit=4
    $region2: #{tpu_custom_call.1} parent=1 // loop_pre_header
      _
    $region3: #{tpu_custom_call.1} parent=1 // loop_header
      %s14 = sphi 0, %s18
      %p15 = scmp.ge.s32.totalorder %s14, 4
      %s21 = sphi 0, %s33
      %s22 = sphi 0, %s29
      %s23 = sphi 0, %s21
      %s24 = sphi 0, %s22
      %s25 = sphi 0, %s23
      %s26 = sphi 0, %s24
      %s36 = sphi 0, %s38
      %s39 = sphi 0, %s36
      %s40 = sphi 0, %s39
      %s56 = sphi 0, %s40
      %s62 = sphi 0, %s64
      %s65 = sphi 0, %s62
      %s66 = sphi 0, %s65
      %s82 = sphi 0, %s66
      %s86 = sphi 0, %s86
      %s88 = sphi 0, %s86
      %s89 = sphi 0, %s88
      %s103 = sphi 0, %s89
      %s107 = sphi 0, %s107
      %s109 = sphi 0, %s107
      %s110 = sphi 0, %s109
      %s124 = sphi 0, %s110
      %s128 = sphi 0, %s128
      %s130 = sphi 0, %s128
      %s131 = sphi 0, %s130
      %s145 = sphi 0, %s131
      %s153 = sphi 0, %s155
      %s156 = sphi 0, %s153
      %s157 = sphi 0, %s156
      %s173 = sphi 0, %s157
    $region4: #{tpu_custom_call.1} parent=1 // loop_header_branch
      %17 = sbr.rel (%p15) target = $region8
    $region5: #{tpu_custom_call.1} parent=1 // loop_body
      %s19 = ssub.s32 %s14, 1
      %s20 = ssub.s32 %s14, 2
      %s27 = sadd.s32 1, %s22
      %p28 = scmp.ge.s32.totalorder %s27, 2
      %s29 = scalar_select %p28, 0, %s27
      %s30 = sadd.s32 1, %s21
      %s31 = scalar_select %p28, %s30, %s21
      %p32 = scmp.ge.s32.totalorder %s31, 1
      %s33 = scalar_select %p32, 0, %s31
      %s34 = ssub.s32 %s21, %s33
      %p35 = scmp.eq.s32.totalorder %s34, 0
      %s37 = sadd.s32 %s36, 1
      %s38 = scalar_select %p35, %s36, %s37
      %p41 = pneg %p35
      %p42 = scmp.eq.s32.totalorder %s14, 1
      %p43 = por %p41, %p42
      %p44 = scmp.ne.s32.totalorder %s36, %s39
      %p45 = scmp.eq.s32.totalorder %s14, 0
      %p46 = por %p44, %p45
      %p47 = scmp.ne.s32.totalorder %s36, %s39
      %p48 = scmp.eq.s32.totalorder %s19, 1
      %p49 = por %p47, %p48
      %p50 = scmp.ne.s32.totalorder %s39, %s40
      %p51 = scmp.eq.s32.totalorder %s19, 0
      %p52 = por %p50, %p51
      %p53 = scmp.ne.s32.totalorder %s39, %s40
      %p54 = scmp.eq.s32.totalorder %s20, 1
      %p55 = por %p53, %p54
      %p57 = scmp.ne.s32.totalorder %s40, %s56
      %p58 = scmp.eq.s32.totalorder %s20, 0
      %p59 = por %p57, %p58
      %s60 = ssub.s32 %s21, %s33
      %p61 = scmp.eq.s32.totalorder %s60, 0
      %s63 = sadd.s32 %s62, 1
      %s64 = scalar_select %p61, %s62, %s63
      %p67 = pneg %p61
      %p68 = scmp.eq.s32.totalorder %s14, 1
      %p69 = por %p67, %p68
      %p70 = scmp.ne.s32.totalorder %s62, %s65
      %p71 = scmp.eq.s32.totalorder %s14, 0
      %p72 = por %p70, %p71
      %p73 = scmp.ne.s32.totalorder %s62, %s65
      %p74 = scmp.eq.s32.totalorder %s19, 1
      %p75 = por %p73, %p74
      %p76 = scmp.ne.s32.totalorder %s65, %s66
      %p77 = scmp.eq.s32.totalorder %s19, 0
      %p78 = por %p76, %p77
      %p79 = scmp.ne.s32.totalorder %s65, %s66
      %p80 = scmp.eq.s32.totalorder %s20, 1
      %p81 = por %p79, %p80
      %p83 = scmp.ne.s32.totalorder %s66, %s82
      %p84 = scmp.eq.s32.totalorder %s20, 0
      %p85 = por %p83, %p84
      %s87 = sadd.s32 %s86, 1
      %p90 = scmp.eq.s32.totalorder %s14, 1
      %p91 = scmp.ne.s32.totalorder %s86, %s88
      %p92 = scmp.eq.s32.totalorder %s14, 0
      %p93 = por %p91, %p92
      %p94 = scmp.ne.s32.totalorder %s86, %s88
      %p95 = scmp.eq.s32.totalorder %s19, 1
      %p96 = por %p94, %p95
      %p97 = scmp.ne.s32.totalorder %s88, %s89
      %p98 = scmp.eq.s32.totalorder %s19, 0
      %p99 = por %p97, %p98
      %p100 = scmp.ne.s32.totalorder %s88, %s89
      %p101 = scmp.eq.s32.totalorder %s20, 1
      %p102 = por %p100, %p101
      %p104 = scmp.ne.s32.totalorder %s89, %s103
      %p105 = scmp.eq.s32.totalorder %s20, 0
      %p106 = por %p104, %p105
      %s108 = sadd.s32 %s107, 1
      %p111 = scmp.eq.s32.totalorder %s14, 1
      %p112 = scmp.ne.s32.totalorder %s107, %s109
      %p113 = scmp.eq.s32.totalorder %s14, 0
      %p114 = por %p112, %p113
      %p115 = scmp.ne.s32.totalorder %s107, %s109
      %p116 = scmp.eq.s32.totalorder %s19, 1
      %p117 = por %p115, %p116
      %p118 = scmp.ne.s32.totalorder %s109, %s110
      %p119 = scmp.eq.s32.totalorder %s19, 0
      %p120 = por %p118, %p119
      %p121 = scmp.ne.s32.totalorder %s109, %s110
      %p122 = scmp.eq.s32.totalorder %s20, 1
      %p123 = por %p121, %p122
      %p125 = scmp.ne.s32.totalorder %s110, %s124
      %p126 = scmp.eq.s32.totalorder %s20, 0
      %p127 = por %p125, %p126
      %s129 = sadd.s32 %s128, 1
      %p132 = scmp.eq.s32.totalorder %s14, 1
      %p133 = scmp.ne.s32.totalorder %s128, %s130
      %p134 = scmp.eq.s32.totalorder %s14, 0
      %p135 = por %p133, %p134
      %p136 = scmp.ne.s32.totalorder %s128, %s130
      %p137 = scmp.eq.s32.totalorder %s19, 1
      %p138 = por %p136, %p137
      %p139 = scmp.ne.s32.totalorder %s130, %s131
      %p140 = scmp.eq.s32.totalorder %s19, 0
      %p141 = por %p139, %p140
      %p142 = scmp.ne.s32.totalorder %s130, %s131
      %p143 = scmp.eq.s32.totalorder %s20, 1
      %p144 = por %p142, %p143
      %p146 = scmp.ne.s32.totalorder %s131, %s145
      %p147 = scmp.eq.s32.totalorder %s20, 0
      %p148 = por %p146, %p147
      %s149 = ssub.s32 %s21, %s33
      %s150 = ssub.s32 %s22, %s29
      %s151 = sor.u32 %s149, %s150
      %p152 = scmp.eq.s32.totalorder %s151, 0
      %s154 = sadd.s32 %s153, 1
      %s155 = scalar_select %p152, %s153, %s154
      %p158 = pneg %p152
      %p159 = scmp.eq.s32.totalorder %s14, 1
      %p160 = por %p158, %p159
      %p161 = scmp.ne.s32.totalorder %s153, %s156
      %p162 = scmp.eq.s32.totalorder %s14, 0
      %p163 = por %p161, %p162
      %p164 = scmp.ne.s32.totalorder %s153, %s156
      %p165 = scmp.eq.s32.totalorder %s19, 1
      %p166 = por %p164, %p165
      %p167 = scmp.ne.s32.totalorder %s156, %s157
      %p168 = scmp.eq.s32.totalorder %s19, 0
      %p169 = por %p167, %p168
      %p170 = scmp.ne.s32.totalorder %s156, %s157
      %p171 = scmp.eq.s32.totalorder %s20, 1
      %p172 = por %p170, %p171
      %p174 = scmp.ne.s32.totalorder %s157, %s173
      %p175 = scmp.eq.s32.totalorder %s20, 0
      %p176 = por %p174, %p175
      %p177 = scmp.le.s32.totalorder 1, %s14
      %p178 = scmp.lt.s32.totalorder %s14, 3
      %p179 = pnand %p177, %p178
      %p180 = pneg %p179
      // Predicated region
      $region9: #{tpu_custom_call.1} parent=5 // pred_check
        _
      $region10: #{tpu_custom_call.1} parent=5 // pred_check_branch
        %182 = sbr.rel (%p179) target = $region12
      $region11: #{tpu_custom_call.1} parent=5 // pred_region
        %s183 = ssub.s32 %s14, 1
        // Predicated region
        $region13: #{tpu_custom_call.1} parent=11 // pred_check
          %p184 = pneg %p52
        $region14: #{tpu_custom_call.1} parent=11 // pred_check_branch
          %186 = sbr.rel (%p184) target = $region16
        $region15: #{tpu_custom_call.1} parent=11 // pred_region
          %p187 = scmp.lt.s32.totalorder %s23, 0
          %s188 = scalar_select %p187, %s23, 0
          %s189 = smul.addr %s188, 20
          %s190 = smul.addr %s189, 4
          %s191 = scalar_lea.vmem %s0, %s190
        $region16: #{tpu_custom_call.1} parent=11 // pred_fallthru
          _
        // Predicated region
        $region17: #{tpu_custom_call.1} parent=11 // pred_check
          %p192 = pneg %p78
        $region18: #{tpu_custom_call.1} parent=11 // pred_check_branch
          %194 = sbr.rel (%p192) target = $region20
        $region19: #{tpu_custom_call.1} parent=11 // pred_region
          %p195 = scmp.lt.s32.totalorder %s23, 0
          %s196 = scalar_select %p195, %s23, 0
          %s197 = smul.addr %s196, 20
          %s198 = smul.addr %s197, 4
          %s199 = scalar_lea.vmem %s1, %s198
        $region20: #{tpu_custom_call.1} parent=11 // pred_fallthru
          _
        // Predicated region
        $region21: #{tpu_custom_call.1} parent=11 // pred_check
          %p200 = pneg %p99
        $region22: #{tpu_custom_call.1} parent=11 // pred_check_branch
          %202 = sbr.rel (%p200) target = $region24
        $region23: #{tpu_custom_call.1} parent=11 // pred_region
          _
        $region24: #{tpu_custom_call.1} parent=11 // pred_fallthru
          _
        // Predicated region
        $region25: #{tpu_custom_call.1} parent=11 // pred_check
          %p203 = pneg %p120
        $region26: #{tpu_custom_call.1} parent=11 // pred_check_branch
          %205 = sbr.rel (%p203) target = $region28
        $region27: #{tpu_custom_call.1} parent=11 // pred_region
          _
        $region28: #{tpu_custom_call.1} parent=11 // pred_fallthru
          _
        // Predicated region
        $region29: #{tpu_custom_call.1} parent=11 // pred_check
          %p206 = pneg %p141
        $region30: #{tpu_custom_call.1} parent=11 // pred_check_branch
          %208 = sbr.rel (%p206) target = $region32
        $region31: #{tpu_custom_call.1} parent=11 // pred_region
          _
        $region32: #{tpu_custom_call.1} parent=11 // pred_fallthru
          _
      $region12: #{tpu_custom_call.1} parent=5 // pred_fallthru
        _
      %p209 = scmp.lt.s32.totalorder %s14, 2
      // Predicated region
      $region33: #{tpu_custom_call.1} parent=5 // pred_check
        %p210 = pneg %p209
      $region34: #{tpu_custom_call.1} parent=5 // pred_check_branch
        %212 = sbr.rel (%p210) target = $region36
      $region35: #{tpu_custom_call.1} parent=5 // pred_region
        _
      $region36: #{tpu_custom_call.1} parent=5 // pred_fallthru
        _
      %p213 = scmp.le.s32.totalorder 1, %s14
      %p214 = scmp.lt.s32.totalorder %s14, 3
      %p215 = pnand %p213, %p214
      %p216 = pneg %p215
      // Predicated region
      $region37: #{tpu_custom_call.1} parent=5 // pred_check
        _
      $region38: #{tpu_custom_call.1} parent=5 // pred_check_branch
        %218 = sbr.rel (%p215) target = $region40
      $region39: #{tpu_custom_call.1} parent=5 // pred_region
        %s219 = ssub.s32 %s14, 1
        %p220 = scmp.lt.s32.totalorder %s23, 0
        %s221 = scalar_select %p220, %s23, 0
        %s222 = smul.addr %s221, 20
        %s223 = smul.addr %s222, 4
        %s224 = scalar_lea.vmem %s0, %s223
        %p225 = pneg %p52
        %p226 = pneg %p49
        %p227 = scmp.lt.s32.totalorder %s23, 0
        %s228 = scalar_select %p227, %s23, 0
        %s229 = smul.addr %s228, 20
        %s230 = smul.addr %s229, 4
        %s231 = scalar_lea.vmem %s1, %s230
        %p232 = pneg %p78
        %p233 = pneg %p75
        %p234 = pneg %p99
        %p235 = pneg %p96
        %p236 = pneg %p120
        %p237 = pneg %p117
        %p238 = pneg %p141
        %p239 = pneg %p138
        %p240 = pneg %p169
        %p241 = pneg %p166
        %s242 = sand.u32 %s156, 1
        %s243 = scalar_lea.sflag [#allocation4], %s242
        %s244 = sand.u32 %s156, 1
        %s245 = smul.addr %s244, 32
        %s246 = scalar_lea.vmem [#allocation3], %s245
        %p247 = scmp.lt.s32.totalorder %s23, 0
        %s248 = scalar_select %p247, %s23, 0
        %s249 = smul.addr %s248, 20
        %s250 = smul.addr %s249, 4
        %s251 = scalar_lea.vmem %s0, %s250
        %p252 = scmp.lt.s32.totalorder %s23, 0
        %s253 = scalar_select %p252, %s23, 0
        %s254 = smul.addr %s253, 20
        %s255 = smul.addr %s254, 4
        %s256 = scalar_lea.vmem %s1, %s255
        %s257 = smul.u32 4, %s24
        %s259 = smul.u32 %s24, 4
        %s260 = smul.u32 %s259, 2
        %s261 = smul.addr %s260, 4
        %s262 = scalar_lea.vmem %s251, %s261
        %v263 = vld [vmem:[%s262] sm:$0xf]
        %v264 = vld [vmem:[%s262 + $0x4] sm:$0x1]
        %v265 = vld [vmem:[%s262 + $0x8] sm:$0xf]
        %v266 = vld [vmem:[%s262 + $0xc] sm:$0x1]
        %v267 = vld [vmem:[%s262 + $0x10] sm:$0xf]
        %v268 = vld [vmem:[%s262 + $0x14] sm:$0x1]
        %v269 = vld [vmem:[%s262 + $0x18] sm:$0xf]
        %v270 = vld [vmem:[%s262 + $0x1c] sm:$0x1]
        %v275 = vunpack.c.l.b16 %v263
        %v276 = vunpack.c.l.b16 %v265
        %v277 = vunpack.c.l.b16 %v267
        %v278 = vunpack.c.l.b16 %v269
        %v279 = vpack.c.b16 %v276, %v275
        %v280 = vpack.c.b16 %v278, %v277
        %vm283 = vcmask 23552
        %284 = vst.msk [vmem:[#allocation2] sm:$0xff] %vm283, %v279
        %285 = vst.msk [vmem:[#allocation2 + $0x20] sm:$0xff] %vm283, %v280
        %vm286 = vsmask.f32 3328
        %vm287 = vsmask.f32 7440
        %vm288 = vmor %vm286, %vm287
        %v290 = vshrl.u32 %v263, 16
        %v292 = vrot.slane %v290, 4
        %v293 = vshll.u32 %v263, 16
        %v295 = vrot.slane %v293, 5
        %v296 = vor.u32 %v292, %v295
        %v297 = vrot.slane %v296, 4
        %v299 = vshll.u32 %v264, 16
        %v301 = vrot.slane %v299, 5
        %v302 = vsel %vm288, %v297, %v301
        %v304 = vshrl.u32 %v265, 16
        %v306 = vrot.slane %v304, 4
        %v307 = vshll.u32 %v265, 16
        %v309 = vrot.slane %v307, 5
        %v310 = vor.u32 %v306, %v309
        %v311 = vrot.slane %v310, 4
        %v313 = vshll.u32 %v266, 16
        %v315 = vrot.slane %v313, 5
        %v316 = vsel %vm288, %v311, %v315
        %v318 = vshrl.u32 %v267, 16
        %v320 = vrot.slane %v318, 4
        %v321 = vshll.u32 %v267, 16
        %v323 = vrot.slane %v321, 5
        %v324 = vor.u32 %v320, %v323
        %v325 = vrot.slane %v324, 4
        %v327 = vshll.u32 %v268, 16
        %v329 = vrot.slane %v327, 5
        %v330 = vsel %vm288, %v325, %v329
        %v332 = vshrl.u32 %v269, 16
        %v334 = vrot.slane %v332, 4
        %v335 = vshll.u32 %v269, 16
        %v337 = vrot.slane %v335, 5
        %v338 = vor.u32 %v334, %v337
        %v339 = vrot.slane %v338, 4
        %v341 = vshll.u32 %v270, 16
        %v343 = vrot.slane %v341, 5
        %v344 = vsel %vm288, %v339, %v343
        %v345 = vunpack.c.l.b16 %v302
        %v346 = vunpack.c.l.b16 %v316
        %v347 = vunpack.c.l.b16 %v330
        %v348 = vunpack.c.l.b16 %v344
        %v349 = vpack.c.b16 %v346, %v345
        %v350 = vpack.c.b16 %v348, %v347
        %351 = vrot.lane.b32.xlu0 %v349, 3
        %v352 = vpop.permute.xlu0 %351
        %353 = vrot.lane.b32.xlu0 %v350, 3
        %v354 = vpop.permute.xlu0 %353
        %vm357 = vcmask 48152
        %358 = vst.msk [vmem:[#allocation2] sm:$0xff] %vm357, %v352
        %359 = vst.msk [vmem:[#allocation2 + $0x20] sm:$0xff] %vm357, %v354
        %vm364 = vcmask 1042432
        %vm365 = vcmask 1046532
        %vm366 = vmor %vm364, %vm365
        %v367 = vrot.slane %v263, 5
        %v368 = vrot.slane %v367, 4
        %v369 = vrot.slane %v264, 5
        %v370 = vsel %vm366, %v368, %v369
        %v371 = vrot.slane %v265, 5
        %v372 = vrot.slane %v371, 4
        %v373 = vrot.slane %v266, 5
        %v374 = vsel %vm366, %v372, %v373
        %v375 = vrot.slane %v267, 5
        %v376 = vrot.slane %v375, 4
        %v377 = vrot.slane %v268, 5
        %v378 = vsel %vm366, %v376, %v377
        %v379 = vrot.slane %v269, 5
        %v380 = vrot.slane %v379, 4
        %v381 = vrot.slane %v270, 5
        %v382 = vsel %vm366, %v380, %v381
        %v383 = vunpack.c.l.b16 %v370
        %v384 = vunpack.c.l.b16 %v374
        %v385 = vunpack.c.l.b16 %v378
        %v386 = vunpack.c.l.b16 %v382
        %v387 = vpack.c.b16 %v384, %v383
        %v388 = vpack.c.b16 %v386, %v385
        %389 = vrot.lane.b32.xlu0 %v387, 6
        %v390 = vpop.permute.xlu0 %389
        %391 = vrot.lane.b32.xlu0 %v388, 6
        %v392 = vpop.permute.xlu0 %391
        %vm395 = vcmask 72752
        %396 = vst.msk [vmem:[#allocation2] sm:$0xff] %vm395, %v390
        %397 = vst.msk [vmem:[#allocation2 + $0x20] sm:$0xff] %vm395, %v392
        %s398 = sadd.s32 %s259, 1
        %s399 = smul.u32 %s398, 2
        %s400 = smul.addr %s399, 4
        %s401 = scalar_lea.vmem %s251, %s400
        %v402 = vld [vmem:[%s401] sm:$0xf]
        %v403 = vld [vmem:[%s401 + $0x4] sm:$0x1]
        %v404 = vld [vmem:[%s401 + $0x8] sm:$0xf]
        %v405 = vld [vmem:[%s401 + $0xc] sm:$0x1]
        %v406 = vld [vmem:[%s401 + $0x10] sm:$0xf]
        %v407 = vld [vmem:[%s401 + $0x14] sm:$0x1]
        %v408 = vld [vmem:[%s401 + $0x18] sm:$0xf]
        %v409 = vld [vmem:[%s401 + $0x1c] sm:$0x1]
        %v414 = vunpack.c.l.b16 %v402
        %v415 = vunpack.c.l.b16 %v404
        %v416 = vunpack.c.l.b16 %v406
        %v417 = vunpack.c.l.b16 %v408
        %v418 = vpack.c.b16 %v415, %v414
        %v419 = vpack.c.b16 %v417, %v416
        %420 = vrot.lane.b32.xlu0 %v418, 9
        %v421 = vpop.permute.xlu0 %420
        %422 = vrot.lane.b32.xlu0 %v419, 9
        %v423 = vpop.permute.xlu0 %422
        %vm426 = vcmask 97352
        %427 = vst.msk [vmem:[#allocation2] sm:$0xff] %vm426, %v421
        %428 = vst.msk [vmem:[#allocation2 + $0x20] sm:$0xff] %vm426, %v423
        %v430 = vshrl.u32 %v402, 16
        %v432 = vrot.slane %v430, 4
        %v433 = vshll.u32 %v402, 16
        %v435 = vrot.slane %v433, 5
        %v436 = vor.u32 %v432, %v435
        %v437 = vrot.slane %v436, 4
        %v439 = vshll.u32 %v403, 16
        %v441 = vrot.slane %v439, 5
        %v442 = vsel %vm288, %v437, %v441
        %v444 = vshrl.u32 %v404, 16
        %v446 = vrot.slane %v444, 4
        %v447 = vshll.u32 %v404, 16
        %v449 = vrot.slane %v447, 5
        %v450 = vor.u32 %v446, %v449
        %v451 = vrot.slane %v450, 4
        %v453 = vshll.u32 %v405, 16
        %v455 = vrot.slane %v453, 5
        %v456 = vsel %vm288, %v451, %v455
        %v458 = vshrl.u32 %v406, 16
        %v460 = vrot.slane %v458, 4
        %v461 = vshll.u32 %v406, 16
        %v463 = vrot.slane %v461, 5
        %v464 = vor.u32 %v460, %v463
        %v465 = vrot.slane %v464, 4
        %v467 = vshll.u32 %v407, 16
        %v469 = vrot.slane %v467, 5
        %v470 = vsel %vm288, %v465, %v469
        %v472 = vshrl.u32 %v408, 16
        %v474 = vrot.slane %v472, 4
        %v475 = vshll.u32 %v408, 16
        %v477 = vrot.slane %v475, 5
        %v478 = vor.u32 %v474, %v477
        %v479 = vrot.slane %v478, 4
        %v481 = vshll.u32 %v409, 16
        %v483 = vrot.slane %v481, 5
        %v484 = vsel %vm288, %v479, %v483
        %v485 = vunpack.c.l.b16 %v442
        %v486 = vunpack.c.l.b16 %v456
        %v487 = vunpack.c.l.b16 %v470
        %v488 = vunpack.c.l.b16 %v484
        %v489 = vpack.c.b16 %v486, %v485
        %v490 = vpack.c.b16 %v488, %v487
        %491 = vrot.lane.b32.xlu0 %v489, 12
        %v492 = vpop.permute.xlu0 %491
        %493 = vrot.lane.b32.xlu0 %v490, 12
        %v494 = vpop.permute.xlu0 %493
        %vm497 = vcmask 121952
        %498 = vst.msk [vmem:[#allocation2] sm:$0xff] %vm497, %v492
        %499 = vst.msk [vmem:[#allocation2 + $0x20] sm:$0xff] %vm497, %v494
        %v504 = vrot.slane %v402, 5
        %v505 = vrot.slane %v504, 4
        %v506 = vrot.slane %v403, 5
        %v507 = vsel %vm366, %v505, %v506
        %v508 = vrot.slane %v404, 5
        %v509 = vrot.slane %v508, 4
        %v510 = vrot.slane %v405, 5
        %v511 = vsel %vm366, %v509, %v510
        %v512 = vrot.slane %v406, 5
        %v513 = vrot.slane %v512, 4
        %v514 = vrot.slane %v407, 5
        %v515 = vsel %vm366, %v513, %v514
        %v516 = vrot.slane %v408, 5
        %v517 = vrot.slane %v516, 4
        %v518 = vrot.slane %v409, 5
        %v519 = vsel %vm366, %v517, %v518
        %v520 = vunpack.c.l.b16 %v507
        %v521 = vunpack.c.l.b16 %v511
        %v522 = vunpack.c.l.b16 %v515
        %v523 = vunpack.c.l.b16 %v519
        %v524 = vpack.c.b16 %v521, %v520
        %v525 = vpack.c.b16 %v523, %v522
        %526 = vrot.lane.b32.xlu0 %v524, 15
        %v527 = vpop.permute.xlu0 %526
        %528 = vrot.lane.b32.xlu0 %v525, 15
        %v529 = vpop.permute.xlu0 %528
        %vm532 = vcmask 146552
        %533 = vst.msk [vmem:[#allocation2] sm:$0xff] %vm532, %v527
        %534 = vst.msk [vmem:[#allocation2 + $0x20] sm:$0xff] %vm532, %v529
        %s535 = sadd.s32 %s259, 2
        %s536 = smul.u32 %s535, 2
        %s537 = smul.addr %s536, 4
        %s538 = scalar_lea.vmem %s251, %s537
        %v539 = vld [vmem:[%s538] sm:$0xf]
        %v540 = vld [vmem:[%s538 + $0x4] sm:$0x1]
        %v541 = vld [vmem:[%s538 + $0x8] sm:$0xf]
        %v542 = vld [vmem:[%s538 + $0xc] sm:$0x1]
        %v543 = vld [vmem:[%s538 + $0x10] sm:$0xf]
        %v544 = vld [vmem:[%s538 + $0x14] sm:$0x1]
        %v545 = vld [vmem:[%s538 + $0x18] sm:$0xf]
        %v546 = vld [vmem:[%s538 + $0x1c] sm:$0x1]
        %v551 = vunpack.c.l.b16 %v539
        %v552 = vunpack.c.l.b16 %v541
        %v553 = vunpack.c.l.b16 %v543
        %v554 = vunpack.c.l.b16 %v545
        %v555 = vpack.c.b16 %v552, %v551
        %v556 = vpack.c.b16 %v554, %v553
        %557 = vrot.lane.b32.xlu0 %v555, 18
        %v558 = vpop.permute.xlu0 %557
        %559 = vrot.lane.b32.xlu0 %v556, 18
        %v560 = vpop.permute.xlu0 %559
        %vm563 = vcmask 171152
        %564 = vst.msk [vmem:[#allocation2] sm:$0xff] %vm563, %v558
        %565 = vst.msk [vmem:[#allocation2 + $0x20] sm:$0xff] %vm563, %v560
        %v567 = vshrl.u32 %v539, 16
        %v569 = vrot.slane %v567, 4
        %v570 = vshll.u32 %v539, 16
        %v572 = vrot.slane %v570, 5
        %v573 = vor.u32 %v569, %v572
        %v574 = vrot.slane %v573, 4
        %v576 = vshll.u32 %v540, 16
        %v578 = vrot.slane %v576, 5
        %v579 = vsel %vm288, %v574, %v578
        %v581 = vshrl.u32 %v541, 16
        %v583 = vrot.slane %v581, 4
        %v584 = vshll.u32 %v541, 16
        %v586 = vrot.slane %v584, 5
        %v587 = vor.u32 %v583, %v586
        %v588 = vrot.slane %v587, 4
        %v590 = vshll.u32 %v542, 16
        %v592 = vrot.slane %v590, 5
        %v593 = vsel %vm288, %v588, %v592
        %v595 = vshrl.u32 %v543, 16
        %v597 = vrot.slane %v595, 4
        %v598 = vshll.u32 %v543, 16
        %v600 = vrot.slane %v598, 5
        %v601 = vor.u32 %v597, %v600
        %v602 = vrot.slane %v601, 4
        %v604 = vshll.u32 %v544, 16
        %v606 = vrot.slane %v604, 5
        %v607 = vsel %vm288, %v602, %v606
        %v609 = vshrl.u32 %v545, 16
        %v611 = vrot.slane %v609, 4
        %v612 = vshll.u32 %v545, 16
        %v614 = vrot.slane %v612, 5
        %v615 = vor.u32 %v611, %v614
        %v616 = vrot.slane %v615, 4
        %v618 = vshll.u32 %v546, 16
        %v620 = vrot.slane %v618, 5
        %v621 = vsel %vm288, %v616, %v620
        %v622 = vunpack.c.l.b16 %v579
        %v623 = vunpack.c.l.b16 %v593
        %v624 = vunpack.c.l.b16 %v607
        %v625 = vunpack.c.l.b16 %v621
        %v626 = vpack.c.b16 %v623, %v622
        %v627 = vpack.c.b16 %v625, %v624
        %628 = vrot.lane.b32.xlu0 %v626, 21
        %v629 = vpop.permute.xlu0 %628
        %630 = vrot.lane.b32.xlu0 %v627, 21
        %v631 = vpop.permute.xlu0 %630
        %vm634 = vcmask 195752
        %635 = vst.msk [vmem:[#allocation2] sm:$0xff] %vm634, %v629
        %636 = vst.msk [vmem:[#allocation2 + $0x20] sm:$0xff] %vm634, %v631
        %v641 = vrot.slane %v539, 5
        %v642 = vrot.slane %v641, 4
        %v643 = vrot.slane %v540, 5
        %v644 = vsel %vm366, %v642, %v643
        %v645 = vrot.slane %v541, 5
        %v646 = vrot.slane %v645, 4
        %v647 = vrot.slane %v542, 5
        %v648 = vsel %vm366, %v646, %v647
        %v649 = vrot.slane %v543, 5
        %v650 = vrot.slane %v649, 4
        %v651 = vrot.slane %v544, 5
        %v652 = vsel %vm366, %v650, %v651
        %v653 = vrot.slane %v545, 5
        %v654 = vrot.slane %v653, 4
        %v655 = vrot.slane %v546, 5
        %v656 = vsel %vm366, %v654, %v655
        %v657 = vunpack.c.l.b16 %v644
        %v658 = vunpack.c.l.b16 %v648
        %v659 = vunpack.c.l.b16 %v652
        %v660 = vunpack.c.l.b16 %v656
        %v661 = vpack.c.b16 %v658, %v657
        %v662 = vpack.c.b16 %v660, %v659
        %663 = vrot.lane.b32.xlu0 %v661, 24
        %v664 = vpop.permute.xlu0 %663
        %665 = vrot.lane.b32.xlu0 %v662, 24
        %v666 = vpop.permute.xlu0 %665
        %vm669 = vcmask 220352
        %670 = vst.msk [vmem:[#allocation2] sm:$0xff] %vm669, %v664
        %671 = vst.msk [vmem:[#allocation2 + $0x20] sm:$0xff] %vm669, %v666
        %s672 = smul.addr %s260, 4
        %s673 = scalar_lea.vmem %s256, %s672
        %v674 = vld [vmem:[%s673] sm:$0xf]
        %v675 = vld [vmem:[%s673 + $0x4] sm:$0x1]
        %v676 = vld [vmem:[%s673 + $0x8] sm:$0xf]
        %v677 = vld [vmem:[%s673 + $0xc] sm:$0x1]
        %v678 = vld [vmem:[%s673 + $0x10] sm:$0xf]
        %v679 = vld [vmem:[%s673 + $0x14] sm:$0x1]
        %v680 = vld [vmem:[%s673 + $0x18] sm:$0xf]
        %v681 = vld [vmem:[%s673 + $0x1c] sm:$0x1]
        %v686 = vunpack.c.l.b16 %v674
        %v687 = vunpack.c.l.b16 %v676
        %v688 = vunpack.c.l.b16 %v678
        %v689 = vunpack.c.l.b16 %v680
        %v690 = vpack.c.b16 %v687, %v686
        %v691 = vpack.c.b16 %v689, %v688
        %692 = vrot.lane.b32.xlu0 %v690, 27
        %v693 = vpop.permute.xlu0 %692
        %694 = vrot.lane.b32.xlu0 %v691, 27
        %v695 = vpop.permute.xlu0 %694
        %vm698 = vcmask 613592
        %699 = vst.msk [vmem:[#allocation2] sm:$0xff] %vm698, %v693
        %700 = vst.msk [vmem:[#allocation2 + $0x20] sm:$0xff] %vm698, %v695
        %v702 = vshrl.u32 %v674, 16
        %v704 = vrot.slane %v702, 4
        %v705 = vshll.u32 %v674, 16
        %v707 = vrot.slane %v705, 5
        %v708 = vor.u32 %v704, %v707
        %v709 = vrot.slane %v708, 4
        %v711 = vshll.u32 %v675, 16
        %v713 = vrot.slane %v711, 5
        %v714 = vsel %vm288, %v709, %v713
        %v716 = vshrl.u32 %v676, 16
        %v718 = vrot.slane %v716, 4
        %v719 = vshll.u32 %v676, 16
        %v721 = vrot.slane %v719, 5
        %v722 = vor.u32 %v718, %v721
        %v723 = vrot.slane %v722, 4
        %v725 = vshll.u32 %v677, 16
        %v727 = vrot.slane %v725, 5
        %v728 = vsel %vm288, %v723, %v727
        %v730 = vshrl.u32 %v678, 16
        %v732 = vrot.slane %v730, 4
        %v733 = vshll.u32 %v678, 16
        %v735 = vrot.slane %v733, 5
        %v736 = vor.u32 %v732, %v735
        %v737 = vrot.slane %v736, 4
        %v739 = vshll.u32 %v679, 16
        %v741 = vrot.slane %v739, 5
        %v742 = vsel %vm288, %v737, %v741
        %v744 = vshrl.u32 %v680, 16
        %v746 = vrot.slane %v744, 4
        %v747 = vshll.u32 %v680, 16
        %v749 = vrot.slane %v747, 5
        %v750 = vor.u32 %v746, %v749
        %v751 = vrot.slane %v750, 4
        %v753 = vshll.u32 %v681, 16
        %v755 = vrot.slane %v753, 5
        %v756 = vsel %vm288, %v751, %v755
        %v757 = vunpack.c.l.b16 %v714
        %v758 = vunpack.c.l.b16 %v728
        %v759 = vunpack.c.l.b16 %v742
        %v760 = vunpack.c.l.b16 %v756
        %v761 = vpack.c.b16 %v758, %v757
        %v762 = vpack.c.b16 %v760, %v759
        %763 = vrot.lane.b32.xlu0 %v761, 75
        %v764 = vpop.permute.xlu0 %763
        %765 = vrot.lane.b32.xlu0 %v762, 75
        %v766 = vpop.permute.xlu0 %765
        %vm769 = vcmask 1007192
        %770 = vst.msk [vmem:[#allocation2] sm:$0xff] %vm769, %v764
        %771 = vst.msk [vmem:[#allocation2 + $0x20] sm:$0xff] %vm769, %v766
        %v776 = vrot.slane %v674, 5
        %v777 = vrot.slane %v776, 4
        %v778 = vrot.slane %v675, 5
        %v779 = vsel %vm366, %v777, %v778
        %v780 = vrot.slane %v676, 5
        %v781 = vrot.slane %v780, 4
        %v782 = vrot.slane %v677, 5
        %v783 = vsel %vm366, %v781, %v782
        %v784 = vrot.slane %v678, 5
        %v785 = vrot.slane %v784, 4
        %v786 = vrot.slane %v679, 5
        %v787 = vsel %vm366, %v785, %v786
        %v788 = vrot.slane %v680, 5
        %v789 = vrot.slane %v788, 4
        %v790 = vrot.slane %v681, 5
        %v791 = vsel %vm366, %v789, %v790
        %v792 = vunpack.c.l.b16 %v779
        %v793 = vunpack.c.l.b16 %v783
        %v794 = vunpack.c.l.b16 %v787
        %v795 = vunpack.c.l.b16 %v791
        %v796 = vpack.c.b16 %v793, %v792
        %v797 = vpack.c.b16 %v795, %v794
        %798 = vrot.lane.b32.xlu0 %v796, 123
        %v799 = vpop.permute.xlu0 %798
        %800 = vrot.lane.b32.xlu0 %v797, 123
        %v801 = vpop.permute.xlu0 %800
        %vm804 = vcmask 1048536
        %805 = vst.msk [vmem:[#allocation2] sm:$0xff] %vm804, %v799
        %vm806 = vcmask 351232
        %807 = vst.msk [vmem:[#allocation2 + $0x8] sm:$0xff] %vm806, %v799
        %808 = vst.msk [vmem:[#allocation2 + $0x20] sm:$0xff] %vm804, %v801
        %809 = vst.msk [vmem:[#allocation2 + $0x28] sm:$0xff] %vm806, %v801
        %s810 = smul.addr %s399, 4
        %s811 = scalar_lea.vmem %s256, %s810
        %v812 = vld [vmem:[%s811] sm:$0xf]
        %v813 = vld [vmem:[%s811 + $0x4] sm:$0x1]
        %v814 = vld [vmem:[%s811 + $0x8] sm:$0xf]
        %v815 = vld [vmem:[%s811 + $0xc] sm:$0x1]
        %v816 = vld [vmem:[%s811 + $0x10] sm:$0xf]
        %v817 = vld [vmem:[%s811 + $0x14] sm:$0x1]
        %v818 = vld [vmem:[%s811 + $0x18] sm:$0xf]
        %v819 = vld [vmem:[%s811 + $0x1c] sm:$0x1]
        %v824 = vunpack.c.l.b16 %v812
        %v825 = vunpack.c.l.b16 %v814
        %v826 = vunpack.c.l.b16 %v816
        %v827 = vunpack.c.l.b16 %v818
        %v828 = vpack.c.b16 %v825, %v824
        %v829 = vpack.c.b16 %v827, %v826
        %830 = vrot.lane.b32.xlu0 %v828, 43
        %v831 = vpop.permute.xlu0 %830
        %832 = vrot.lane.b32.xlu0 %v829, 43
        %v833 = vpop.permute.xlu0 %832
        %vm836 = vcmask 744792
        %837 = vst.msk [vmem:[#allocation2 + $0x8] sm:$0xff] %vm836, %v831
        %838 = vst.msk [vmem:[#allocation2 + $0x28] sm:$0xff] %vm836, %v833
        %v840 = vshrl.u32 %v812, 16
        %v842 = vrot.slane %v840, 4
        %v843 = vshll.u32 %v812, 16
        %v845 = vrot.slane %v843, 5
        %v846 = vor.u32 %v842, %v845
        %v847 = vrot.slane %v846, 4
        %v849 = vshll.u32 %v813, 16
        %v851 = vrot.slane %v849, 5
        %v852 = vsel %vm288, %v847, %v851
        %v854 = vshrl.u32 %v814, 16
        %v856 = vrot.slane %v854, 4
        %v857 = vshll.u32 %v814, 16
        %v859 = vrot.slane %v857, 5
        %v860 = vor.u32 %v856, %v859
        %v861 = vrot.slane %v860, 4
        %v863 = vshll.u32 %v815, 16
        %v865 = vrot.slane %v863, 5
        %v866 = vsel %vm288, %v861, %v865
        %v868 = vshrl.u32 %v816, 16
        %v870 = vrot.slane %v868, 4
        %v871 = vshll.u32 %v816, 16
        %v873 = vrot.slane %v871, 5
        %v874 = vor.u32 %v870, %v873
        %v875 = vrot.slane %v874, 4
        %v877 = vshll.u32 %v817, 16
        %v879 = vrot.slane %v877, 5
        %v880 = vsel %vm288, %v875, %v879
        %v882 = vshrl.u32 %v818, 16
        %v884 = vrot.slane %v882, 4
        %v885 = vshll.u32 %v818, 16
        %v887 = vrot.slane %v885, 5
        %v888 = vor.u32 %v884, %v887
        %v889 = vrot.slane %v888, 4
        %v891 = vshll.u32 %v819, 16
        %v893 = vrot.slane %v891, 5
        %v894 = vsel %vm288, %v889, %v893
        %v895 = vunpack.c.l.b16 %v852
        %v896 = vunpack.c.l.b16 %v866
        %v897 = vunpack.c.l.b16 %v880
        %v898 = vunpack.c.l.b16 %v894
        %v899 = vpack.c.b16 %v896, %v895
        %v900 = vpack.c.b16 %v898, %v897
        %901 = vrot.lane.b32.xlu0 %v899, 91
        %v902 = vpop.permute.xlu0 %901
        %903 = vrot.lane.b32.xlu0 %v900, 91
        %v904 = vpop.permute.xlu0 %903
        %vm907 = vcmask 1048280
        %908 = vst.msk [vmem:[#allocation2 + $0x8] sm:$0xff] %vm907, %v902
        %vm909 = vcmask 89088
        %910 = vst.msk [vmem:[#allocation2 + $0x10] sm:$0xff] %vm909, %v902
        %911 = vst.msk [vmem:[#allocation2 + $0x28] sm:$0xff] %vm907, %v904
        %912 = vst.msk [vmem:[#allocation2 + $0x30] sm:$0xff] %vm909, %v904
        %v917 = vrot.slane %v812, 5
        %v918 = vrot.slane %v917, 4
        %v919 = vrot.slane %v813, 5
        %v920 = vsel %vm366, %v918, %v919
        %v921 = vrot.slane %v814, 5
        %v922 = vrot.slane %v921, 4
        %v923 = vrot.slane %v815, 5
        %v924 = vsel %vm366, %v922, %v923
        %v925 = vrot.slane %v816, 5
        %v926 = vrot.slane %v925, 4
        %v927 = vrot.slane %v817, 5
        %v928 = vsel %vm366, %v926, %v927
        %v929 = vrot.slane %v818, 5
        %v930 = vrot.slane %v929, 4
        %v931 = vrot.slane %v819, 5
        %v932 = vsel %vm366, %v930, %v931
        %v933 = vunpack.c.l.b16 %v920
        %v934 = vunpack.c.l.b16 %v924
        %v935 = vunpack.c.l.b16 %v928
        %v936 = vunpack.c.l.b16 %v932
        %v937 = vpack.c.b16 %v934, %v933
        %v938 = vpack.c.b16 %v936, %v935
        %939 = vrot.lane.b32.xlu0 %v937, 11
        %v940 = vpop.permute.xlu0 %939
        %941 = vrot.lane.b32.xlu0 %v938, 11
        %v942 = vpop.permute.xlu0 %941
        %vm945 = vcmask 482392
        %946 = vst.msk [vmem:[#allocation2 + $0x10] sm:$0xff] %vm945, %v940
        %947 = vst.msk [vmem:[#allocation2 + $0x30] sm:$0xff] %vm945, %v942
        %s948 = smul.addr %s536, 4
        %s949 = scalar_lea.vmem %s256, %s948
        %v950 = vld [vmem:[%s949] sm:$0xf]
        %v951 = vld [vmem:[%s949 + $0x4] sm:$0x1]
        %v952 = vld [vmem:[%s949 + $0x8] sm:$0xf]
        %v953 = vld [vmem:[%s949 + $0xc] sm:$0x1]
        %v954 = vld [vmem:[%s949 + $0x10] sm:$0xf]
        %v955 = vld [vmem:[%s949 + $0x14] sm:$0x1]
        %v956 = vld [vmem:[%s949 + $0x18] sm:$0xf]
        %v957 = vld [vmem:[%s949 + $0x1c] sm:$0x1]
        %v962 = vunpack.c.l.b16 %v950
        %v963 = vunpack.c.l.b16 %v952
        %v964 = vunpack.c.l.b16 %v954
        %v965 = vunpack.c.l.b16 %v956
        %v966 = vpack.c.b16 %v963, %v962
        %v967 = vpack.c.b16 %v965, %v964
        %968 = vrot.lane.b32.xlu0 %v966, 59
        %v969 = vpop.permute.xlu0 %968
        %970 = vrot.lane.b32.xlu0 %v967, 59
        %v971 = vpop.permute.xlu0 %970
        %vm974 = vcmask 875992
        %975 = vst.msk [vmem:[#allocation2 + $0x10] sm:$0xff] %vm974, %v969
        %976 = vst.msk [vmem:[#allocation2 + $0x30] sm:$0xff] %vm974, %v971
        %v978 = vshrl.u32 %v950, 16
        %v980 = vrot.slane %v978, 4
        %v981 = vshll.u32 %v950, 16
        %v983 = vrot.slane %v981, 5
        %v984 = vor.u32 %v980, %v983
        %v985 = vrot.slane %v984, 4
        %v987 = vshll.u32 %v951, 16
        %v989 = vrot.slane %v987, 5
        %v990 = vsel %vm288, %v985, %v989
        %v992 = vshrl.u32 %v952, 16
        %v994 = vrot.slane %v992, 4
        %v995 = vshll.u32 %v952, 16
        %v997 = vrot.slane %v995, 5
        %v998 = vor.u32 %v994, %v997
        %v999 = vrot.slane %v998, 4
        %v1001 = vshll.u32 %v953, 16
        %v1003 = vrot.slane %v1001, 5
        %v1004 = vsel %vm288, %v999, %v1003
        %v1006 = vshrl.u32 %v954, 16
        %v1008 = vrot.slane %v1006, 4
        %v1009 = vshll.u32 %v954, 16
        %v1011 = vrot.slane %v1009, 5
        %v1012 = vor.u32 %v1008, %v1011
        %v1013 = vrot.slane %v1012, 4
        %v1015 = vshll.u32 %v955, 16
        %v1017 = vrot.slane %v1015, 5
        %v1018 = vsel %vm288, %v1013, %v1017
        %v1020 = vshrl.u32 %v956, 16
        %v1022 = vrot.slane %v1020, 4
        %v1023 = vshll.u32 %v956, 16
        %v1025 = vrot.slane %v1023, 5
        %v1026 = vor.u32 %v1022, %v1025
        %v1027 = vrot.slane %v1026, 4
        %v1029 = vshll.u32 %v957, 16
        %v1031 = vrot.slane %v1029, 5
        %v1032 = vsel %vm288, %v1027, %v1031
        %v1033 = vunpack.c.l.b16 %v990
        %v1034 = vunpack.c.l.b16 %v1004
        %v1035 = vunpack.c.l.b16 %v1018
        %v1036 = vunpack.c.l.b16 %v1032
        %v1037 = vpack.c.b16 %v1034, %v1033
        %v1038 = vpack.c.b16 %v1036, %v1035
        %1039 = vrot.lane.b32.xlu0 %v1037, 107
        %v1040 = vpop.permute.xlu0 %1039
        %1041 = vrot.lane.b32.xlu0 %v1038, 107
        %v1042 = vpop.permute.xlu0 %1041
        %vm1045 = vcmask 1048408
        %1046 = vst.msk [vmem:[#allocation2 + $0x10] sm:$0xff] %vm1045, %v1040
        %vm1047 = vcmask 220160
        %1048 = vst.msk [vmem:[#allocation2 + $0x18] sm:$0xff] %vm1047, %v1040
        %1049 = vst.msk [vmem:[#allocation2 + $0x30] sm:$0xff] %vm1045, %v1042
        %1050 = vst.msk [vmem:[#allocation2 + $0x38] sm:$0xff] %vm1047, %v1042
        %v1055 = vrot.slane %v950, 5
        %v1056 = vrot.slane %v1055, 4
        %v1057 = vrot.slane %v951, 5
        %v1058 = vsel %vm366, %v1056, %v1057
        %v1059 = vrot.slane %v952, 5
        %v1060 = vrot.slane %v1059, 4
        %v1061 = vrot.slane %v953, 5
        %v1062 = vsel %vm366, %v1060, %v1061
        %v1063 = vrot.slane %v954, 5
        %v1064 = vrot.slane %v1063, 4
        %v1065 = vrot.slane %v955, 5
        %v1066 = vsel %vm366, %v1064, %v1065
        %v1067 = vrot.slane %v956, 5
        %v1068 = vrot.slane %v1067, 4
        %v1069 = vrot.slane %v957, 5
        %v1070 = vsel %vm366, %v1068, %v1069
        %v1071 = vunpack.c.l.b16 %v1058
        %v1072 = vunpack.c.l.b16 %v1062
        %v1073 = vunpack.c.l.b16 %v1066
        %v1074 = vunpack.c.l.b16 %v1070
        %v1075 = vpack.c.b16 %v1072, %v1071
        %v1076 = vpack.c.b16 %v1074, %v1073
        %1077 = vrot.lane.b32.xlu0 %v1075, 27
        %v1078 = vpop.permute.xlu0 %1077
        %1079 = vrot.lane.b32.xlu0 %v1076, 27
        %v1080 = vpop.permute.xlu0 %1079
        %1083 = vst.msk [vmem:[#allocation2 + $0x18] sm:$0xff] %vm698, %v1078
        %1084 = vst.msk [vmem:[#allocation2 + $0x38] sm:$0xff] %vm698, %v1080
        %v1085 = vld [vmem:[#allocation2] sm:$0xff]
        %v1086 = vld [vmem:[#allocation2 + $0x8] sm:$0xff]
        %v1087 = vld [vmem:[#allocation2 + $0x10] sm:$0xff]
        %v1088 = vld [vmem:[#allocation2 + $0x18] sm:$0xff]
        %v1089 = vld [vmem:[#allocation2 + $0x20] sm:$0xff]
        %v1090 = vld [vmem:[#allocation2 + $0x28] sm:$0xff]
        %v1091 = vld [vmem:[#allocation2 + $0x30] sm:$0xff]
        %v1092 = vld [vmem:[#allocation2 + $0x38] sm:$0xff]
        %v1093 = vld [vmem:[%s2] sm:$0xf]
        %v1094 = vld [vmem:[%s2 + $0x4] sm:$0xf]
        %v1095 = vld [vmem:[%s2 + $0x8] sm:$0xf]
        %v1096 = vld [vmem:[%s2 + $0xc] sm:$0xf]
        %v1097 = vld [vmem:[%s2 + $0x10] sm:$0xf]
        %v1098 = vld [vmem:[%s2 + $0x14] sm:$0xf]
        %v1099 = vld [vmem:[%s2 + $0x18] sm:$0xf]
        %v1100 = vld [vmem:[%s2 + $0x1c] sm:$0xf]
        %v1101 = vld [vmem:[%s2 + $0x20] sm:$0xf]
        %v1102 = vld [vmem:[%s2 + $0x24] sm:$0xf]
        %v1103 = vld [vmem:[%s2 + $0x28] sm:$0xf]
        %v1104 = vld [vmem:[%s2 + $0x2c] sm:$0xf]
        %v1105 = vld [vmem:[%s2 + $0x30] sm:$0xf]
        %v1106 = vld [vmem:[%s2 + $0x34] sm:$0xf]
        %v1107 = vld [vmem:[%s2 + $0x38] sm:$0xf]
        %v1108 = vld [vmem:[%s2 + $0x3c] sm:$0xf]
        %v1109 = vld [vmem:[%s2 + $0x40] sm:$0xf]
        %v1110 = vld [vmem:[%s2 + $0x44] sm:$0xf]
        %v1111 = vld [vmem:[%s2 + $0x48] sm:$0xf]
        %v1112 = vld [vmem:[%s2 + $0x4c] sm:$0xf]
        %v1113 = vld [vmem:[%s2 + $0x50] sm:$0xf]
        %v1114 = vld [vmem:[%s2 + $0x54] sm:$0xf]
        %v1115 = vld [vmem:[%s2 + $0x58] sm:$0xf]
        %v1116 = vld [vmem:[%s2 + $0x5c] sm:$0xf]
        %v1117 = vld [vmem:[%s2 + $0x60] sm:$0xf]
        %v1118 = vld [vmem:[%s2 + $0x64] sm:$0xf]
        %v1119 = vld [vmem:[%s2 + $0x68] sm:$0xf]
        %v1120 = vld [vmem:[%s2 + $0x6c] sm:$0xf]
        %v1121 = vld [vmem:[%s2 + $0x70] sm:$0xf]
        %v1122 = vld [vmem:[%s2 + $0x74] sm:$0xf]
        %v1123 = vld [vmem:[%s2 + $0x78] sm:$0xf]
        %v1124 = vld [vmem:[%s2 + $0x7c] sm:$0xf]
        %v1125 = vld [vmem:[%s2 + $0x80] sm:$0xf]
        %v1126 = vld [vmem:[%s2 + $0x84] sm:$0xf]
        %v1127 = vld [vmem:[%s2 + $0x88] sm:$0xf]
        %v1128 = vld [vmem:[%s2 + $0x8c] sm:$0xf]
        %v1129 = vld [vmem:[%s2 + $0x90] sm:$0xf]
        %v1130 = vld [vmem:[%s2 + $0x94] sm:$0xf]
        %v1131 = vld [vmem:[%s2 + $0x98] sm:$0xf]
        %v1132 = vld [vmem:[%s2 + $0x9c] sm:$0xf]
        %v1133 = vld [vmem:[%s2 + $0xa0] sm:$0xf]
        %v1134 = vld [vmem:[%s2 + $0xa4] sm:$0xf]
        %v1135 = vld [vmem:[%s2 + $0xa8] sm:$0xf]
        %v1136 = vld [vmem:[%s2 + $0xac] sm:$0xf]
        %v1137 = vld [vmem:[%s2 + $0xb0] sm:$0xf]
        %v1138 = vld [vmem:[%s2 + $0xb4] sm:$0xf]
        %v1139 = vld [vmem:[%s2 + $0xb8] sm:$0xf]
        %v1140 = vld [vmem:[%s2 + $0xbc] sm:$0xf]
        %v1141 = vld [vmem:[%s2 + $0xc0] sm:$0xf]
        %v1142 = vld [vmem:[%s2 + $0xc4] sm:$0xf]
        %v1143 = vld [vmem:[%s2 + $0xc8] sm:$0xf]
        %v1144 = vld [vmem:[%s2 + $0xcc] sm:$0xf]
        %v1145 = vld [vmem:[%s2 + $0xd0] sm:$0xf]
        %v1146 = vld [vmem:[%s2 + $0xd4] sm:$0xf]
        %v1147 = vld [vmem:[%s2 + $0xd8] sm:$0xf]
        %v1148 = vld [vmem:[%s2 + $0xdc] sm:$0xf]
        %v1149 = vld [vmem:[%s2 + $0xe0] sm:$0xf]
        %v1150 = vld [vmem:[%s2 + $0xe4] sm:$0x3]
        %v1209 = vunpack.c.l.b16 %v1093
        %v1210 = vunpack.c.l.b16 %v1094
        %v1211 = vunpack.c.l.b16 %v1095
        %v1212 = vunpack.c.l.b16 %v1096
        %v1213 = vunpack.c.l.b16 %v1097
        %v1214 = vunpack.c.l.b16 %v1098
        %v1215 = vunpack.c.l.b16 %v1099
        %v1216 = vunpack.c.l.b16 %v1100
        %v1217 = vunpack.c.l.b16 %v1101
        %v1218 = vunpack.c.l.b16 %v1102
        %v1219 = vunpack.c.l.b16 %v1103
        %v1220 = vunpack.c.l.b16 %v1104
        %v1221 = vunpack.c.l.b16 %v1105
        %v1222 = vunpack.c.l.b16 %v1106
        %v1223 = vunpack.c.l.b16 %v1107
        %v1224 = vunpack.c.l.b16 %v1108
        %v1225 = vunpack.c.l.b16 %v1109
        %v1226 = vunpack.c.l.b16 %v1110
        %v1227 = vunpack.c.l.b16 %v1111
        %v1228 = vunpack.c.l.b16 %v1112
        %v1229 = vunpack.c.l.b16 %v1113
        %v1230 = vunpack.c.l.b16 %v1114
        %v1231 = vunpack.c.l.b16 %v1115
        %v1232 = vunpack.c.l.b16 %v1116
        %v1233 = vunpack.c.l.b16 %v1117
        %v1234 = vunpack.c.l.b16 %v1118
        %v1235 = vunpack.c.l.b16 %v1119
        %v1236 = vunpack.c.l.b16 %v1120
        %v1237 = vunpack.c.l.b16 %v1121
        %v1238 = vunpack.c.l.b16 %v1122
        %v1239 = vunpack.c.l.b16 %v1123
        %v1240 = vunpack.c.l.b16 %v1124
        %v1241 = vunpack.c.l.b16 %v1125
        %v1242 = vunpack.c.l.b16 %v1126
        %v1243 = vunpack.c.l.b16 %v1127
        %v1244 = vunpack.c.l.b16 %v1128
        %v1245 = vunpack.c.l.b16 %v1129
        %v1246 = vunpack.c.l.b16 %v1130
        %v1247 = vunpack.c.l.b16 %v1131
        %v1248 = vunpack.c.l.b16 %v1132
        %v1249 = vunpack.c.l.b16 %v1133
        %v1250 = vunpack.c.l.b16 %v1134
        %v1251 = vunpack.c.l.b16 %v1135
        %v1252 = vunpack.c.l.b16 %v1136
        %v1253 = vunpack.c.l.b16 %v1137
        %v1254 = vunpack.c.l.b16 %v1138
        %v1255 = vunpack.c.l.b16 %v1139
        %v1256 = vunpack.c.l.b16 %v1140
        %v1257 = vunpack.c.l.b16 %v1141
        %v1258 = vunpack.c.l.b16 %v1142
        %v1259 = vunpack.c.l.b16 %v1143
        %v1260 = vunpack.c.l.b16 %v1144
        %v1261 = vunpack.c.l.b16 %v1145
        %v1262 = vunpack.c.l.b16 %v1146
        %v1263 = vunpack.c.l.b16 %v1147
        %v1264 = vunpack.c.l.b16 %v1148
        %v1265 = vunpack.c.l.b16 %v1149
        %v1266 = vunpack.c.l.b16 %v1150
        %v1267 = vpack.c.b16 %v1210, %v1209
        %v1268 = vpack.c.b16 %v1212, %v1211
        %v1269 = vpack.c.b16 %v1214, %v1213
        %v1270 = vpack.c.b16 %v1216, %v1215
        %v1271 = vpack.c.b16 %v1218, %v1217
        %v1272 = vpack.c.b16 %v1220, %v1219
        %v1273 = vpack.c.b16 %v1222, %v1221
        %v1274 = vpack.c.b16 %v1224, %v1223
        %v1275 = vpack.c.b16 %v1226, %v1225
        %v1276 = vpack.c.b16 %v1228, %v1227
        %v1277 = vpack.c.b16 %v1230, %v1229
        %v1278 = vpack.c.b16 %v1232, %v1231
        %v1279 = vpack.c.b16 %v1234, %v1233
        %v1280 = vpack.c.b16 %v1236, %v1235
        %v1281 = vpack.c.b16 %v1238, %v1237
        %v1282 = vpack.c.b16 %v1240, %v1239
        %v1283 = vpack.c.b16 %v1242, %v1241
        %v1284 = vpack.c.b16 %v1244, %v1243
        %v1285 = vpack.c.b16 %v1246, %v1245
        %v1286 = vpack.c.b16 %v1248, %v1247
        %v1287 = vpack.c.b16 %v1250, %v1249
        %v1288 = vpack.c.b16 %v1252, %v1251
        %v1289 = vpack.c.b16 %v1254, %v1253
        %v1290 = vpack.c.b16 %v1256, %v1255
        %v1291 = vpack.c.b16 %v1258, %v1257
        %v1292 = vpack.c.b16 %v1260, %v1259
        %v1293 = vpack.c.b16 %v1262, %v1261
        %v1294 = vpack.c.b16 %v1264, %v1263
        %v1295 = vpack.c.b16 %v1266, %v1265
        %vm1324 = vcmask 613376
        %v1326 = vsel %vm1324, %v1088, 0
        %v1329 = vsel %vm1324, %v1092, 0
        %vm1331 = vcmask 1044480
        %vm1332 = vcmask 1045504
        %v1333 = vsel %vm1331, 4294967295, 65535
        %v1334 = vsel %vm1332, %v1333, 0
        %v1336 = vand.u32 %v1295, %v1334
        %1338 = vmatprep.subr.bf16.mxu0 0
        %1339 = vmatpush1.bf16.msra.mxu0 %v1267
        %1340 = vmatprep.subr.bf16.mxu0 0
        %1341 = vmatpush1.bf16.msra.mxu0 %v1268
        %1342 = vmatprep.subr.bf16.mxu0 0
        %1343 = vmatpush1.bf16.msra.mxu0 %v1269
        %1344 = vmatprep.subr.bf16.mxu0 0
        %1345 = vmatpush1.bf16.msra.mxu0 %v1270
        %1346 = vmatprep.subr.bf16.mxu0 0
        %1347 = vmatpush1.bf16.msra.mxu0 %v1271
        %1348 = vmatprep.subr.bf16.mxu0 0
        %1349 = vmatpush1.bf16.msra.mxu0 %v1272
        %1350 = vmatprep.subr.bf16.mxu0 0
        %1351 = vmatpush1.bf16.msra.mxu0 %v1273
        %1352 = vmatprep.subr.bf16.mxu0 0
        %1353 = vmatpush1.bf16.msra.mxu0 %v1274
        %1354 = vmatprep.subr.bf16.mxu0 0
        %1355 = vmatpush1.bf16.msra.mxu0 %v1275
        %1356 = vmatprep.subr.bf16.mxu0 0
        %1357 = vmatpush1.bf16.msra.mxu0 %v1276
        %1358 = vmatprep.subr.bf16.mxu0 0
        %1359 = vmatpush1.bf16.msra.mxu0 %v1277
        %1360 = vmatprep.subr.bf16.mxu0 0
        %1361 = vmatpush1.bf16.msra.mxu0 %v1278
        %1362 = vmatprep.subr.bf16.mxu0 0
        %1363 = vmatpush1.bf16.msra.mxu0 %v1279
        %1364 = vmatprep.subr.bf16.mxu0 0
        %1365 = vmatpush1.bf16.msra.mxu0 %v1280
        %1366 = vmatprep.subr.bf16.mxu0 0
        %1367 = vmatpush1.bf16.msra.mxu0 %v1281
        %1368 = vmatprep.subr.bf16.mxu0 0
        %1369 = vmatpush1.bf16.msra.mxu0 %v1282
        %1370 = vmatprep.mubr.bf16.mxu0 %v1086
        %1371 = vmatmul.mubr.bf16.gmra.mrb[0].mxu0 %v1085
        %v1372 = vpop.f32.mrb[0].mxu0
        %v1373 = vadd.f32 0.0, %v1372
        %v1374 = vpop.f32.mrb[0].mxu0
        %v1375 = vpop.f32.mrb[0].mxu0
        %v1376 = vadd.f32 0.0, %v1375
        %v1377 = vpop.f32.mrb[0].mxu0
        %1378 = vmatprep.mubr.bf16.mxu0 %v1090
        %1379 = vmatmul.mubr.bf16.gmra.mrb[0].mxu0 %v1089
        %v1380 = vpop.f32.mrb[0].mxu0
        %v1381 = vadd.f32 0.0, %v1380
        %v1382 = vpop.f32.mrb[0].mxu0
        %v1383 = vpop.f32.mrb[0].mxu0
        %v1384 = vadd.f32 0.0, %v1383
        %v1385 = vpop.f32.mrb[0].mxu0
        %1386 = vdwg.mxu0
        %1387 = vmatprep.subr.bf16.mxu0 0
        %1388 = vmatpush1.bf16.msra.mxu0 %v1283
        %1389 = vmatprep.subr.bf16.mxu0 0
        %1390 = vmatpush1.bf16.msra.mxu0 %v1284
        %1391 = vmatprep.subr.bf16.mxu0 0
        %1392 = vmatpush1.bf16.msra.mxu0 %v1285
        %1393 = vmatprep.subr.bf16.mxu0 0
        %1394 = vmatpush1.bf16.msra.mxu0 %v1286
        %1395 = vmatprep.subr.bf16.mxu0 0
        %1396 = vmatpush1.bf16.msra.mxu0 %v1287
        %1397 = vmatprep.subr.bf16.mxu0 0
        %1398 = vmatpush1.bf16.msra.mxu0 %v1288
        %1399 = vmatprep.subr.bf16.mxu0 0
        %1400 = vmatpush1.bf16.msra.mxu0 %v1289
        %1401 = vmatprep.subr.bf16.mxu0 0
        %1402 = vmatpush1.bf16.msra.mxu0 %v1290
        %1403 = vmatprep.subr.bf16.mxu0 0
        %1404 = vmatpush1.bf16.msra.mxu0 %v1291
        %1405 = vmatprep.subr.bf16.mxu0 0
        %1406 = vmatpush1.bf16.msra.mxu0 %v1292
        %1407 = vmatprep.subr.bf16.mxu0 0
        %1408 = vmatpush1.bf16.msra.mxu0 %v1293
        %1409 = vmatprep.subr.bf16.mxu0 0
        %1410 = vmatpush1.bf16.msra.mxu0 %v1294
        %1411 = vmatprep.subr.bf16.mxu0 0
        %1412 = vmatpush1.bf16.msra.mxu0 %v1336
        %1413 = vmatprep.subr.bf16.mxu0 0
        %1414 = vmatpush1.bf16.msra.mxu0 0
        %1415 = vmatprep.subr.bf16.mxu0 0
        %1416 = vmatpush1.bf16.msra.mxu0 0
        %1417 = vmatprep.subr.bf16.mxu0 0
        %1418 = vmatpush1.bf16.msra.mxu0 0
        %1419 = vmatprep.mubr.bf16.mxu0 %v1326
        %1420 = vmatmul.mubr.bf16.gmra.mrb[0].mxu0 %v1087
        %v1421 = vpop.f32.mrb[0].mxu0
        %v1422 = vadd.f32 %v1373, %v1421
        %v1423 = vpop.f32.mrb[0].mxu0
        %v1424 = vpop.f32.mrb[0].mxu0
        %v1425 = vadd.f32 %v1376, %v1424
        %v1426 = vpop.f32.mrb[0].mxu0
        %1427 = vmatprep.mubr.bf16.mxu0 %v1329
        %1428 = vmatmul.mubr.bf16.gmra.mrb[0].mxu0 %v1091
        %v1429 = vpop.f32.mrb[0].mxu0
        %v1430 = vadd.f32 %v1381, %v1429
        %v1431 = vpop.f32.mrb[0].mxu0
        %v1432 = vpop.f32.mrb[0].mxu0
        %v1433 = vadd.f32 %v1384, %v1432
        %v1434 = vpop.f32.mrb[0].mxu0
        %1435 = vdwg.mxu0
        %v1436 = vld [vmem:[%s3] sm:$0x1]
        %v1438 = vlaneseq
        %v1439 = vshrl.u32 %v1438, 7
        %v1440 = vsub.s32 0, %v1439
        %v1441 = vrot.slane %v1436, %v1440
        %v1443 = vmul.f32 %v1422, %v1441
        %v1444 = vmul.f32 %v1425, %v1441
        %v1445 = vmul.f32 %v1430, %v1441
        %v1446 = vmul.f32 %v1433, %v1441
        %v1447 = vld [vmem:[%s4] sm:$0x1]
        %v1449 = vlaneseq
        %v1450 = vshrl.u32 %v1449, 7
        %v1451 = vsub.s32 0, %v1450
        %v1452 = vrot.slane %v1447, %v1451
        %v1454 = vadd.f32 %v1443, %v1452
        %v1455 = vadd.f32 %v1444, %v1452
        %v1456 = vadd.f32 %v1445, %v1452
        %v1457 = vadd.f32 %v1446, %v1452
        %vm1458 = vcmp.gt.f32.partialorder %v1454, 0.0
        %vm1459 = vcmp.gt.f32.partialorder %v1455, 0.0
        %vm1460 = vcmp.gt.f32.partialorder %v1456, 0.0
        %vm1461 = vcmp.gt.f32.partialorder %v1457, 0.0
        %v1462 = vmul.f32 %v1454, 0.1
        %v1463 = vmul.f32 %v1455, 0.1
        %v1464 = vmul.f32 %v1456, 0.1
        %v1465 = vmul.f32 %v1457, 0.1
        %v1466 = vsel %vm1458, %v1454, %v1462
        %v1467 = vsel %vm1459, %v1455, %v1463
        %v1468 = vsel %vm1460, %v1456, %v1464
        %v1469 = vsel %vm1461, %v1457, %v1465
        %vm1470 = vcmask 130048
        %1471 = vst.msk [vmem:[%s246] sm:$0xff] %vm1470, %v1466
        %1472 = vst.msk [vmem:[%s246 + $0x8] sm:$0xff] %vm1470, %v1467
        %1473 = vst.msk [vmem:[%s246 + $0x10] sm:$0xff] %vm1470, %v1468
        %1474 = vst.msk [vmem:[%s246 + $0x18] sm:$0xff] %vm1470, %v1469
        %s1475 = sand.u32 %s156, 1
        %s1476 = scalar_lea.sflag [#allocation4], %s1475
        %s1477 = sand.u32 %s156, 1
        %s1478 = smul.addr %s1477, 32
        %s1479 = scalar_lea.vmem [#allocation3], %s1478
        // Predicated region
        $region41: #{tpu_custom_call.1} parent=39 // pred_check
          %p1480 = pneg %p166
        $region42: #{tpu_custom_call.1} parent=39 // pred_check_branch
          %1482 = sbr.rel (%p1480) target = $region44
        $region43: #{tpu_custom_call.1} parent=39 // pred_region
          %s1483 = smul.u32 4, %s24
          %s1485 = ssub.s32 512, 512
          %1486 = vsyncadd %s1476, %s1485
          %s1487 = smul.addr %s23, 8
          %s1488 = sadd.s32 %s1483, %s1487
          %s1489 = smul.addr %s1488, 128
          %s1490 = scalar_lea.hbm %s5, %s1489
          %s1491 = sshll.u32 %s1479, 4
          %s1492 = int_to_ptr.vmem [resolvable:$true] %s1491
          %1497 = dma.vmem_to_hbm [thread:$0]  %s1492, 512, %s1490, %s1476, 128, 128, 8
        $region44: #{tpu_custom_call.1} parent=39 // pred_fallthru
          _
      $region40: #{tpu_custom_call.1} parent=5 // pred_fallthru
        _
      %p1498 = scmp.le.s32.totalorder 2, %s14
      // Predicated region
      $region45: #{tpu_custom_call.1} parent=5 // pred_check
        %p1499 = pneg %p1498
      $region46: #{tpu_custom_call.1} parent=5 // pred_check_branch
        %1501 = sbr.rel (%p1499) target = $region48
      $region47: #{tpu_custom_call.1} parent=5 // pred_region
        %s1502 = ssub.s32 %s14, 2
        // Predicated region
        $region49: #{tpu_custom_call.1} parent=47 // pred_check
          %p1503 = pneg %p172
        $region50: #{tpu_custom_call.1} parent=47 // pred_check_branch
          %1505 = sbr.rel (%p1503) target = $region52
        $region51: #{tpu_custom_call.1} parent=47 // pred_region
          %s1506 = sand.u32 %s157, 1
          %s1507 = scalar_lea.sflag [#allocation4], %s1506
          %s1508 = sand.u32 %s157, 1
          %s1509 = smul.addr %s1508, 32
          %s1510 = scalar_lea.vmem [#allocation3], %s1509
          %1511 = dma.done %s1507, 512
        $region52: #{tpu_custom_call.1} parent=47 // pred_fallthru
          _
      $region48: #{tpu_custom_call.1} parent=5 // pred_fallthru
        _
    $region6: #{tpu_custom_call.1} parent=1 // loop_footer
      %s18 = sadd.s32 1, %s14
    $region7: #{tpu_custom_call.1} parent=1 // loop_footer_branch
      %13 = sbr.rel target = $region3
    $region8: #{tpu_custom_call.1} parent=1 // loop_exit
      _
    %1512 = vsyncpa [#allocation4], 1
    %s1513 = scalar_lea.sflag [#allocation4], 1
    %1514 = vsyncpa %s1513, 1

// kernel: tpu_custom_call.1
$region0: #{tpu_custom_call.1}
  #allocation0 [shape = 'u32[]', space=smem, size = 0x4, offset = 0x4, fixed_abs, tag = 'smem constant byte address 0x4 - core index']
  #allocation1 [shape = 'u32[144,128]{1,0:T(1,128)}', space=vmem, size = 0x12000, scoped, tag = 'internal scratch']
  %s0 = inlined_call_operand.vmem [shape: bf16[2,18,18,5], index: 0, kind: input, shape index: {}]
  %s1 = inlined_call_operand.vmem [shape: bf16[9,5,48], index: 1, kind: input, shape index: {}]
  %s2 = inlined_call_operand.vmem [shape: f32[1,48], index: 2, kind: input, shape index: {}]
  %s3 = inlined_call_operand.vmem [shape: f32[1,48], index: 3, kind: input, shape index: {}]
  %s4 = inlined_call_operand.hbm [shape: f32[2,16,16,48], index: 4, kind: output, shape index: {}]
  %s5 = sld [smem:[#allocation0]]
  $region49: #{tpu_custom_call.1} parent=0
    _
  %s7 = ssub.s32 1, %s5
  %s8 = scalar_select 0, %s7, %s5
  $region1: #{tpu_custom_call.1} parent=0
    #allocation2 [shape = 'u8[131072]{0}', space=vmem, size = 0x20000, scoped, tag = 'output window, operand 0']
    #allocation3 [shape = 's32[2]{0}', space=sflag, size = 0x8, scoped, tag = 'scoped memory for tpu_custom_call.1']
    %9 = vsyncpa [#allocation3], 0
    %s10 = scalar_lea.sflag [#allocation3], 1
    %11 = vsyncpa %s10, 0
    loop: start=0, step=1, limit=6
    $region2: #{tpu_custom_call.1} parent=1 // loop_pre_header
      _
    $region3: #{tpu_custom_call.1} parent=1 // loop_header
      %s13 = sphi 0, %s17
      %p14 = scmp.ge.s32.totalorder %s13, 6
      %s20 = sphi 0, %s32
      %s21 = sphi 0, %s28
      %s22 = sphi 0, %s20
      %s23 = sphi 0, %s21
      %s24 = sphi 0, %s22
      %s25 = sphi 0, %s23
      %s35 = sphi 0, %s37
      %s38 = sphi 0, %s35
      %s39 = sphi 0, %s38
      %s55 = sphi 0, %s39
      %s59 = sphi 0, %s59
      %s61 = sphi 0, %s59
      %s62 = sphi 0, %s61
      %s76 = sphi 0, %s62
      %s80 = sphi 0, %s80
      %s82 = sphi 0, %s80
      %s83 = sphi 0, %s82
      %s97 = sphi 0, %s83
      %s101 = sphi 0, %s101
      %s103 = sphi 0, %s101
      %s104 = sphi 0, %s103
      %s118 = sphi 0, %s104
      %s126 = sphi 0, %s128
      %s129 = sphi 0, %s126
      %s130 = sphi 0, %s129
      %s146 = sphi 0, %s130
    $region4: #{tpu_custom_call.1} parent=1 // loop_header_branch
      %16 = sbr.rel (%p14) target = $region8
    $region5: #{tpu_custom_call.1} parent=1 // loop_body
      %s18 = ssub.s32 %s13, 1
      %s19 = ssub.s32 %s13, 2
      %s26 = sadd.s32 1, %s21
      %p27 = scmp.ge.s32.totalorder %s26, 2
      %s28 = scalar_select %p27, 0, %s26
      %s29 = sadd.s32 1, %s20
      %s30 = scalar_select %p27, %s29, %s20
      %p31 = scmp.ge.s32.totalorder %s30, 2
      %s32 = scalar_select %p31, 0, %s30
      %s33 = ssub.s32 %s20, %s32
      %p34 = scmp.eq.s32.totalorder %s33, 0
      %s36 = sadd.s32 %s35, 1
      %s37 = scalar_select %p34, %s35, %s36
      %p40 = pneg %p34
      %p41 = scmp.eq.s32.totalorder %s13, 3
      %p42 = por %p40, %p41
      %p43 = scmp.ne.s32.totalorder %s35, %s38
      %p44 = scmp.eq.s32.totalorder %s13, 0
      %p45 = por %p43, %p44
      %p46 = scmp.ne.s32.totalorder %s35, %s38
      %p47 = scmp.eq.s32.totalorder %s18, 3
      %p48 = por %p46, %p47
      %p49 = scmp.ne.s32.totalorder %s38, %s39
      %p50 = scmp.eq.s32.totalorder %s18, 0
      %p51 = por %p49, %p50
      %p52 = scmp.ne.s32.totalorder %s38, %s39
      %p53 = scmp.eq.s32.totalorder %s19, 3
      %p54 = por %p52, %p53
      %p56 = scmp.ne.s32.totalorder %s39, %s55
      %p57 = scmp.eq.s32.totalorder %s19, 0
      %p58 = por %p56, %p57
      %s60 = sadd.s32 %s59, 1
      %p63 = scmp.eq.s32.totalorder %s13, 3
      %p64 = scmp.ne.s32.totalorder %s59, %s61
      %p65 = scmp.eq.s32.totalorder %s13, 0
      %p66 = por %p64, %p65
      %p67 = scmp.ne.s32.totalorder %s59, %s61
      %p68 = scmp.eq.s32.totalorder %s18, 3
      %p69 = por %p67, %p68
      %p70 = scmp.ne.s32.totalorder %s61, %s62
      %p71 = scmp.eq.s32.totalorder %s18, 0
      %p72 = por %p70, %p71
      %p73 = scmp.ne.s32.totalorder %s61, %s62
      %p74 = scmp.eq.s32.totalorder %s19, 3
      %p75 = por %p73, %p74
      %p77 = scmp.ne.s32.totalorder %s62, %s76
      %p78 = scmp.eq.s32.totalorder %s19, 0
      %p79 = por %p77, %p78
      %s81 = sadd.s32 %s80, 1
      %p84 = scmp.eq.s32.totalorder %s13, 3
      %p85 = scmp.ne.s32.totalorder %s80, %s82
      %p86 = scmp.eq.s32.totalorder %s13, 0
      %p87 = por %p85, %p86
      %p88 = scmp.ne.s32.totalorder %s80, %s82
      %p89 = scmp.eq.s32.totalorder %s18, 3
      %p90 = por %p88, %p89
      %p91 = scmp.ne.s32.totalorder %s82, %s83
      %p92 = scmp.eq.s32.totalorder %s18, 0
      %p93 = por %p91, %p92
      %p94 = scmp.ne.s32.totalorder %s82, %s83
      %p95 = scmp.eq.s32.totalorder %s19, 3
      %p96 = por %p94, %p95
      %p98 = scmp.ne.s32.totalorder %s83, %s97
      %p99 = scmp.eq.s32.totalorder %s19, 0
      %p100 = por %p98, %p99
      %s102 = sadd.s32 %s101, 1
      %p105 = scmp.eq.s32.totalorder %s13, 3
      %p106 = scmp.ne.s32.totalorder %s101, %s103
      %p107 = scmp.eq.s32.totalorder %s13, 0
      %p108 = por %p106, %p107
      %p109 = scmp.ne.s32.totalorder %s101, %s103
      %p110 = scmp.eq.s32.totalorder %s18, 3
      %p111 = por %p109, %p110
      %p112 = scmp.ne.s32.totalorder %s103, %s104
      %p113 = scmp.eq.s32.totalorder %s18, 0
      %p114 = por %p112, %p113
      %p115 = scmp.ne.s32.totalorder %s103, %s104
      %p116 = scmp.eq.s32.totalorder %s19, 3
      %p117 = por %p115, %p116
      %p119 = scmp.ne.s32.totalorder %s104, %s118
      %p120 = scmp.eq.s32.totalorder %s19, 0
      %p121 = por %p119, %p120
      %s122 = ssub.s32 %s20, %s32
      %s123 = ssub.s32 %s21, %s28
      %s124 = sor.u32 %s122, %s123
      %p125 = scmp.eq.s32.totalorder %s124, 0
      %s127 = sadd.s32 %s126, 1
      %s128 = scalar_select %p125, %s126, %s127
      %p131 = pneg %p125
      %p132 = scmp.eq.s32.totalorder %s13, 3
      %p133 = por %p131, %p132
      %p134 = scmp.ne.s32.totalorder %s126, %s129
      %p135 = scmp.eq.s32.totalorder %s13, 0
      %p136 = por %p134, %p135
      %p137 = scmp.ne.s32.totalorder %s126, %s129
      %p138 = scmp.eq.s32.totalorder %s18, 3
      %p139 = por %p137, %p138
      %p140 = scmp.ne.s32.totalorder %s129, %s130
      %p141 = scmp.eq.s32.totalorder %s18, 0
      %p142 = por %p140, %p141
      %p143 = scmp.ne.s32.totalorder %s129, %s130
      %p144 = scmp.eq.s32.totalorder %s19, 3
      %p145 = por %p143, %p144
      %p147 = scmp.ne.s32.totalorder %s130, %s146
      %p148 = scmp.eq.s32.totalorder %s19, 0
      %p149 = por %p147, %p148
      %p150 = scmp.le.s32.totalorder 1, %s13
      %p151 = scmp.lt.s32.totalorder %s13, 5
      %p152 = pnand %p150, %p151
      %p153 = pneg %p152
      // Predicated region
      $region9: #{tpu_custom_call.1} parent=5 // pred_check
        _
      $region10: #{tpu_custom_call.1} parent=5 // pred_check_branch
        %155 = sbr.rel (%p152) target = $region12
      $region11: #{tpu_custom_call.1} parent=5 // pred_region
        %s156 = ssub.s32 %s13, 1
        // Predicated region
        $region13: #{tpu_custom_call.1} parent=11 // pred_check
          %p157 = pneg %p72
        $region14: #{tpu_custom_call.1} parent=11 // pred_check_branch
          %159 = sbr.rel (%p157) target = $region16
        $region15: #{tpu_custom_call.1} parent=11 // pred_region
          _
        $region16: #{tpu_custom_call.1} parent=11 // pred_fallthru
          _
        // Predicated region
        $region17: #{tpu_custom_call.1} parent=11 // pred_check
          %p160 = pneg %p93
        $region18: #{tpu_custom_call.1} parent=11 // pred_check_branch
          %162 = sbr.rel (%p160) target = $region20
        $region19: #{tpu_custom_call.1} parent=11 // pred_region
          _
        $region20: #{tpu_custom_call.1} parent=11 // pred_fallthru
          _
        // Predicated region
        $region21: #{tpu_custom_call.1} parent=11 // pred_check
          %p163 = pneg %p114
        $region22: #{tpu_custom_call.1} parent=11 // pred_check_branch
          %165 = sbr.rel (%p163) target = $region24
        $region23: #{tpu_custom_call.1} parent=11 // pred_region
          _
        $region24: #{tpu_custom_call.1} parent=11 // pred_fallthru
          _
      $region12: #{tpu_custom_call.1} parent=5 // pred_fallthru
        _
      %p166 = scmp.lt.s32.totalorder %s13, 4
      // Predicated region
      $region25: #{tpu_custom_call.1} parent=5 // pred_check
        %p167 = pneg %p166
      $region26: #{tpu_custom_call.1} parent=5 // pred_check_branch
        %169 = sbr.rel (%p167) target = $region28
      $region27: #{tpu_custom_call.1} parent=5 // pred_region
        // Predicated region
        $region29: #{tpu_custom_call.1} parent=27 // pred_check
          %p170 = pneg %p45
        $region30: #{tpu_custom_call.1} parent=27 // pred_check_branch
          %172 = sbr.rel (%p170) target = $region32
        $region31: #{tpu_custom_call.1} parent=27 // pred_region
          %p173 = scmp.lt.s32.totalorder %s20, 1
          %s174 = scalar_select %p173, %s20, 1
          %s175 = smul.addr %s174, 54
          %s176 = smul.addr %s175, 4
          %s177 = scalar_lea.vmem %s0, %s176
        $region32: #{tpu_custom_call.1} parent=27 // pred_fallthru
          _
      $region28: #{tpu_custom_call.1} parent=5 // pred_fallthru
        _
      %p178 = scmp.le.s32.totalorder 1, %s13
      %p179 = scmp.lt.s32.totalorder %s13, 5
      %p180 = pnand %p178, %p179
      %p181 = pneg %p180
      // Predicated region
      $region33: #{tpu_custom_call.1} parent=5 // pred_check
        _
      $region34: #{tpu_custom_call.1} parent=5 // pred_check_branch
        %183 = sbr.rel (%p180) target = $region36
      $region35: #{tpu_custom_call.1} parent=5 // pred_region
        %s184 = ssub.s32 %s13, 1
        %p185 = scmp.lt.s32.totalorder %s22, 1
        %s186 = scalar_select %p185, %s22, 1
        %s187 = smul.addr %s186, 54
        %s188 = smul.addr %s187, 4
        %s189 = scalar_lea.vmem %s0, %s188
        %p190 = pneg %p51
        %p191 = pneg %p48
        %p192 = pneg %p72
        %p193 = pneg %p69
        %p194 = pneg %p93
        %p195 = pneg %p90
        %p196 = pneg %p114
        %p197 = pneg %p111
        %p198 = pneg %p142
        %p199 = pneg %p139
        %s200 = sand.u32 %s129, 1
        %s201 = scalar_lea.sflag [#allocation3], %s200
        %s202 = sand.u32 %s129, 1
        %s203 = smul.addr %s202, 128
        %s204 = scalar_lea.vmem [#allocation2], %s203
        %p205 = scmp.lt.s32.totalorder %s22, 1
        %s206 = scalar_select %p205, %s22, 1
        %s207 = smul.addr %s206, 54
        %s208 = smul.addr %s207, 4
        %s209 = scalar_lea.vmem %s0, %s208
        %s210 = smul.u32 8, %s23
        %s212 = smul.u32 %s23, 8
        %s213 = smul.u32 %s212, 3
        %s214 = smul.addr %s213, 4
        %s215 = scalar_lea.vmem %s209, %s214
        %v216 = vld [vmem:[%s215] sm:$0xf]
        %v217 = vld [vmem:[%s215 + $0x4] sm:$0xf]
        %v218 = vld [vmem:[%s215 + $0x8] sm:$0x1]
        %v219 = vld [vmem:[%s215 + $0xc] sm:$0xf]
        %v220 = vld [vmem:[%s215 + $0x10] sm:$0xf]
        %v221 = vld [vmem:[%s215 + $0x14] sm:$0x1]
        %v222 = vld [vmem:[%s215 + $0x18] sm:$0xf]
        %v223 = vld [vmem:[%s215 + $0x1c] sm:$0xf]
        %v224 = vld [vmem:[%s215 + $0x20] sm:$0x1]
        %v225 = vld [vmem:[%s215 + $0x24] sm:$0xf]
        %v226 = vld [vmem:[%s215 + $0x28] sm:$0xf]
        %v227 = vld [vmem:[%s215 + $0x2c] sm:$0x1]
        %v228 = vld [vmem:[%s215 + $0x30] sm:$0xf]
        %v229 = vld [vmem:[%s215 + $0x34] sm:$0xf]
        %v230 = vld [vmem:[%s215 + $0x38] sm:$0x1]
        %v231 = vld [vmem:[%s215 + $0x3c] sm:$0xf]
        %v232 = vld [vmem:[%s215 + $0x40] sm:$0xf]
        %v233 = vld [vmem:[%s215 + $0x44] sm:$0x1]
        %v234 = vld [vmem:[%s215 + $0x48] sm:$0xf]
        %v235 = vld [vmem:[%s215 + $0x4c] sm:$0xf]
        %v236 = vld [vmem:[%s215 + $0x50] sm:$0x1]
        %v237 = vld [vmem:[%s215 + $0x54] sm:$0xf]
        %v238 = vld [vmem:[%s215 + $0x58] sm:$0xf]
        %v239 = vld [vmem:[%s215 + $0x5c] sm:$0x1]
        %v240 = vld [vmem:[%s1] sm:$0x7]
        %vm241 = vsmask.f32 3328
        %vm242 = vsmask.f32 7440
        %vm243 = vmor %vm241, %vm242
        %v245 = vshrl.u32 %v216, 16
        %v247 = vrot.slane %v245, 4
        %v248 = vshll.u32 %v216, 16
        %v250 = vrot.slane %v248, 5
        %v251 = vor.u32 %v247, %v250
        %v252 = vrot.slane %v251, 4
        %v254 = vshll.u32 %v217, 16
        %v256 = vrot.slane %v254, 5
        %v257 = vsel %vm243, %v252, %v256
        %v258 = vshrl.u32 %v217, 16
        %v260 = vrot.slane %v258, 4
        %v261 = vor.u32 %v260, %v256
        %v262 = vrot.slane %v261, 4
        %v264 = vshll.u32 %v218, 16
        %v266 = vrot.slane %v264, 5
        %v267 = vsel %vm243, %v262, %v266
        %v269 = vshrl.u32 %v219, 16
        %v271 = vrot.slane %v269, 4
        %v272 = vshll.u32 %v219, 16
        %v274 = vrot.slane %v272, 5
        %v275 = vor.u32 %v271, %v274
        %v276 = vrot.slane %v275, 4
        %v278 = vshll.u32 %v220, 16
        %v280 = vrot.slane %v278, 5
        %v281 = vsel %vm243, %v276, %v280
        %v282 = vshrl.u32 %v220, 16
        %v284 = vrot.slane %v282, 4
        %v285 = vor.u32 %v284, %v280
        %v286 = vrot.slane %v285, 4
        %v288 = vshll.u32 %v221, 16
        %v290 = vrot.slane %v288, 5
        %v291 = vsel %vm243, %v286, %v290
        %v293 = vshrl.u32 %v222, 16
        %v295 = vrot.slane %v293, 4
        %v296 = vshll.u32 %v222, 16
        %v298 = vrot.slane %v296, 5
        %v299 = vor.u32 %v295, %v298
        %v300 = vrot.slane %v299, 4
        %v302 = vshll.u32 %v223, 16
        %v304 = vrot.slane %v302, 5
        %v305 = vsel %vm243, %v300, %v304
        %v306 = vshrl.u32 %v223, 16
        %v308 = vrot.slane %v306, 4
        %v309 = vor.u32 %v308, %v304
        %v310 = vrot.slane %v309, 4
        %v312 = vshll.u32 %v224, 16
        %v314 = vrot.slane %v312, 5
        %v315 = vsel %vm243, %v310, %v314
        %v317 = vshrl.u32 %v225, 16
        %v319 = vrot.slane %v317, 4
        %v320 = vshll.u32 %v225, 16
        %v322 = vrot.slane %v320, 5
        %v323 = vor.u32 %v319, %v322
        %v324 = vrot.slane %v323, 4
        %v326 = vshll.u32 %v226, 16
        %v328 = vrot.slane %v326, 5
        %v329 = vsel %vm243, %v324, %v328
        %v330 = vshrl.u32 %v226, 16
        %v332 = vrot.slane %v330, 4
        %v333 = vor.u32 %v332, %v328
        %v334 = vrot.slane %v333, 4
        %v336 = vshll.u32 %v227, 16
        %v338 = vrot.slane %v336, 5
        %v339 = vsel %vm243, %v334, %v338
        %v341 = vshrl.u32 %v228, 16
        %v343 = vrot.slane %v341, 4
        %v344 = vshll.u32 %v228, 16
        %v346 = vrot.slane %v344, 5
        %v347 = vor.u32 %v343, %v346
        %v348 = vrot.slane %v347, 4
        %v350 = vshll.u32 %v229, 16
        %v352 = vrot.slane %v350, 5
        %v353 = vsel %vm243, %v348, %v352
        %v354 = vshrl.u32 %v229, 16
        %v356 = vrot.slane %v354, 4
        %v357 = vor.u32 %v356, %v352
        %v358 = vrot.slane %v357, 4
        %v360 = vshll.u32 %v230, 16
        %v362 = vrot.slane %v360, 5
        %v363 = vsel %vm243, %v358, %v362
        %v365 = vshrl.u32 %v231, 16
        %v367 = vrot.slane %v365, 4
        %v368 = vshll.u32 %v231, 16
        %v370 = vrot.slane %v368, 5
        %v371 = vor.u32 %v367, %v370
        %v372 = vrot.slane %v371, 4
        %v374 = vshll.u32 %v232, 16
        %v376 = vrot.slane %v374, 5
        %v377 = vsel %vm243, %v372, %v376
        %v378 = vshrl.u32 %v232, 16
        %v380 = vrot.slane %v378, 4
        %v381 = vor.u32 %v380, %v376
        %v382 = vrot.slane %v381, 4
        %v384 = vshll.u32 %v233, 16
        %v386 = vrot.slane %v384, 5
        %v387 = vsel %vm243, %v382, %v386
        %v389 = vshrl.u32 %v234, 16
        %v391 = vrot.slane %v389, 4
        %v392 = vshll.u32 %v234, 16
        %v394 = vrot.slane %v392, 5
        %v395 = vor.u32 %v391, %v394
        %v396 = vrot.slane %v395, 4
        %v398 = vshll.u32 %v235, 16
        %v400 = vrot.slane %v398, 5
        %v401 = vsel %vm243, %v396, %v400
        %v402 = vshrl.u32 %v235, 16
        %v404 = vrot.slane %v402, 4
        %v405 = vor.u32 %v404, %v400
        %v406 = vrot.slane %v405, 4
        %v408 = vshll.u32 %v236, 16
        %v410 = vrot.slane %v408, 5
        %v411 = vsel %vm243, %v406, %v410
        %v413 = vshrl.u32 %v237, 16
        %v415 = vrot.slane %v413, 4
        %v416 = vshll.u32 %v237, 16
        %v418 = vrot.slane %v416, 5
        %v419 = vor.u32 %v415, %v418
        %v420 = vrot.slane %v419, 4
        %v422 = vshll.u32 %v238, 16
        %v424 = vrot.slane %v422, 5
        %v425 = vsel %vm243, %v420, %v424
        %v426 = vshrl.u32 %v238, 16
        %v428 = vrot.slane %v426, 4
        %v429 = vor.u32 %v428, %v424
        %v430 = vrot.slane %v429, 4
        %v432 = vshll.u32 %v239, 16
        %v434 = vrot.slane %v432, 5
        %v435 = vsel %vm243, %v430, %v434
        %s436 = scalar_lea.vmem %s1, 4
        %v437 = vld [vmem:[%s436] sm:$0x7]
        %v438 = vunpack.c.l.b16 %v257
        %v439 = vunpack.c.l.b16 %v267
        %v440 = vunpack.c.l.b16 %v281
        %v441 = vunpack.c.l.b16 %v291
        %v442 = vunpack.c.l.b16 %v305
        %v443 = vunpack.c.l.b16 %v315
        %v444 = vunpack.c.l.b16 %v329
        %v445 = vunpack.c.l.b16 %v339
        %v446 = vunpack.c.l.b16 %v353
        %v447 = vunpack.c.l.b16 %v363
        %v448 = vunpack.c.l.b16 %v377
        %v449 = vunpack.c.l.b16 %v387
        %v450 = vunpack.c.l.b16 %v401
        %v451 = vunpack.c.l.b16 %v411
        %v452 = vunpack.c.l.b16 %v425
        %v453 = vunpack.c.l.b16 %v435
        %v454 = vpack.c.b16 %v439, %v438
        %v455 = vpack.c.b16 %v441, %v440
        %v456 = vpack.c.b16 %v443, %v442
        %v457 = vpack.c.b16 %v445, %v444
        %v458 = vpack.c.b16 %v447, %v446
        %v459 = vpack.c.b16 %v449, %v448
        %v460 = vpack.c.b16 %v451, %v450
        %v461 = vpack.c.b16 %v453, %v452
        %vm462 = vcmask 39936
        %v464 = vsel %vm462, %v454, 0
        %v467 = vsel %vm462, %v455, 0
        %v470 = vsel %vm462, %v456, 0
        %v473 = vsel %vm462, %v457, 0
        %v476 = vsel %vm462, %v458, 0
        %v479 = vsel %vm462, %v459, 0
        %v482 = vsel %vm462, %v460, 0
        %v485 = vsel %vm462, %v461, 0
        %vm487 = vcmask 1041408
        %vm488 = vcmask 1042432
        %v489 = vsel %vm487, 4294967295, 65535
        %v490 = vsel %vm488, %v489, 0
        %v492 = vand.u32 %v437, %v490
        %494 = vmatprep.subr.bf16.mxu0 0
        %495 = vmatpush1.bf16.msra.mxu0 %v492
        %496 = vmatprep.subr.bf16.mxu0 0
        %497 = vmatpush1.bf16.msra.mxu0 0
        %498 = vmatprep.subr.bf16.mxu0 0
        %499 = vmatpush1.bf16.msra.mxu0 0
        %500 = vmatprep.subr.bf16.mxu0 0
        %501 = vmatpush1.bf16.msra.mxu0 0
        %502 = vmatprep.subr.bf16.mxu0 0
        %503 = vmatpush1.bf16.msra.mxu0 0
        %504 = vmatprep.subr.bf16.mxu0 0
        %505 = vmatpush1.bf16.msra.mxu0 0
        %506 = vmatprep.subr.bf16.mxu0 0
        %507 = vmatpush1.bf16.msra.mxu0 0
        %508 = vmatprep.subr.bf16.mxu0 0
        %509 = vmatpush1.bf16.msra.mxu0 0
        %510 = vmatprep.subr.bf16.mxu0 0
        %511 = vmatpush1.bf16.msra.mxu0 0
        %512 = vmatprep.subr.bf16.mxu0 0
        %513 = vmatpush1.bf16.msra.mxu0 0
        %514 = vmatprep.subr.bf16.mxu0 0
        %515 = vmatpush1.bf16.msra.mxu0 0
        %516 = vmatprep.subr.bf16.mxu0 0
        %517 = vmatpush1.bf16.msra.mxu0 0
        %518 = vmatprep.subr.bf16.mxu0 0
        %519 = vmatpush1.bf16.msra.mxu0 0
        %520 = vmatprep.subr.bf16.mxu0 0
        %521 = vmatpush1.bf16.msra.mxu0 0
        %522 = vmatprep.subr.bf16.mxu0 0
        %523 = vmatpush1.bf16.msra.mxu0 0
        %524 = vmatprep.subr.bf16.mxu0 0
        %525 = vmatpush1.bf16.msra.mxu0 0
        %526 = vmatprep.mubr.bf16.mxu0 0
        %527 = vmatmul.mubr.bf16.gmra.mrb[0].mxu0 %v464
        %v528 = vpop.f32.mrb[0].mxu0
        %v529 = vadd.f32 0.0, %v528
        %v530 = vpop.f32.mrb[0].mxu0
        %v531 = vpop.f32.mrb[0].mxu0
        %v532 = vadd.f32 0.0, %v531
        %v533 = vpop.f32.mrb[0].mxu0
        %534 = vmatprep.mubr.bf16.mxu0 0
        %535 = vmatmul.mubr.bf16.gmra.mrb[0].mxu0 %v467
        %v536 = vpop.f32.mrb[0].mxu0
        %v537 = vadd.f32 0.0, %v536
        %v538 = vpop.f32.mrb[0].mxu0
        %v539 = vpop.f32.mrb[0].mxu0
        %v540 = vadd.f32 0.0, %v539
        %v541 = vpop.f32.mrb[0].mxu0
        %542 = vmatprep.mubr.bf16.mxu0 0
        %543 = vmatmul.mubr.bf16.gmra.mrb[0].mxu0 %v470
        %v544 = vpop.f32.mrb[0].mxu0
        %v545 = vadd.f32 0.0, %v544
        %v546 = vpop.f32.mrb[0].mxu0
        %v547 = vpop.f32.mrb[0].mxu0
        %v548 = vadd.f32 0.0, %v547
        %v549 = vpop.f32.mrb[0].mxu0
        %550 = vmatprep.mubr.bf16.mxu0 0
        %551 = vmatmul.mubr.bf16.gmra.mrb[0].mxu0 %v473
        %v552 = vpop.f32.mrb[0].mxu0
        %v553 = vadd.f32 0.0, %v552
        %v554 = vpop.f32.mrb[0].mxu0
        %v555 = vpop.f32.mrb[0].mxu0
        %v556 = vadd.f32 0.0, %v555
        %v557 = vpop.f32.mrb[0].mxu0
        %558 = vmatprep.mubr.bf16.mxu0 0
        %559 = vmatmul.mubr.bf16.gmra.mrb[0].mxu0 %v476
        %v560 = vpop.f32.mrb[0].mxu0
        %v561 = vadd.f32 0.0, %v560
        %v562 = vpop.f32.mrb[0].mxu0
        %v563 = vpop.f32.mrb[0].mxu0
        %v564 = vadd.f32 0.0, %v563
        %v565 = vpop.f32.mrb[0].mxu0
        %566 = vmatprep.mubr.bf16.mxu0 0
        %567 = vmatmul.mubr.bf16.gmra.mrb[0].mxu0 %v479
        %v568 = vpop.f32.mrb[0].mxu0
        %v569 = vadd.f32 0.0, %v568
        %v570 = vpop.f32.mrb[0].mxu0
        %v571 = vpop.f32.mrb[0].mxu0
        %v572 = vadd.f32 0.0, %v571
        %v573 = vpop.f32.mrb[0].mxu0
        %574 = vmatprep.mubr.bf16.mxu0 0
        %575 = vmatmul.mubr.bf16.gmra.mrb[0].mxu0 %v482
        %v576 = vpop.f32.mrb[0].mxu0
        %v577 = vadd.f32 0.0, %v576
        %v578 = vpop.f32.mrb[0].mxu0
        %v579 = vpop.f32.mrb[0].mxu0
        %v580 = vadd.f32 0.0, %v579
        %v581 = vpop.f32.mrb[0].mxu0
        %582 = vmatprep.mubr.bf16.mxu0 0
        %583 = vmatmul.mubr.bf16.gmra.mrb[0].mxu0 %v485
        %v584 = vpop.f32.mrb[0].mxu0
        %v585 = vadd.f32 0.0, %v584
        %v586 = vpop.f32.mrb[0].mxu0
        %v587 = vpop.f32.mrb[0].mxu0
        %v588 = vadd.f32 0.0, %v587
        %v589 = vpop.f32.mrb[0].mxu0
        %590 = vdwg.mxu0
        %v607 = vunpack.c.l.b16 %v216
        %v608 = vunpack.c.l.b16 %v217
        %v609 = vunpack.c.l.b16 %v219
        %v610 = vunpack.c.l.b16 %v220
        %v611 = vunpack.c.l.b16 %v222
        %v612 = vunpack.c.l.b16 %v223
        %v613 = vunpack.c.l.b16 %v225
        %v614 = vunpack.c.l.b16 %v226
        %v615 = vunpack.c.l.b16 %v228
        %v616 = vunpack.c.l.b16 %v229
        %v617 = vunpack.c.l.b16 %v231
        %v618 = vunpack.c.l.b16 %v232
        %v619 = vunpack.c.l.b16 %v234
        %v620 = vunpack.c.l.b16 %v235
        %v621 = vunpack.c.l.b16 %v237
        %v622 = vunpack.c.l.b16 %v238
        %v623 = vpack.c.b16 %v608, %v607
        %v624 = vpack.c.b16 %v610, %v609
        %v625 = vpack.c.b16 %v612, %v611
        %v626 = vpack.c.b16 %v614, %v613
        %v627 = vpack.c.b16 %v616, %v615
        %v628 = vpack.c.b16 %v618, %v617
        %v629 = vpack.c.b16 %v620, %v619
        %v630 = vpack.c.b16 %v622, %v621
        %v632 = vsel %vm462, %v623, 0
        %v635 = vsel %vm462, %v624, 0
        %v638 = vsel %vm462, %v625, 0
        %v641 = vsel %vm462, %v626, 0
        %v644 = vsel %vm462, %v627, 0
        %v647 = vsel %vm462, %v628, 0
        %v650 = vsel %vm462, %v629, 0
        %v653 = vsel %vm462, %v630, 0
        %v656 = vand.u32 %v240, %v490
        %658 = vmatprep.subr.bf16.mxu0 0
        %659 = vmatpush1.bf16.msra.mxu0 %v656
        %660 = vmatprep.subr.bf16.mxu0 0
        %661 = vmatpush1.bf16.msra.mxu0 0
        %662 = vmatprep.subr.bf16.mxu0 0
        %663 = vmatpush1.bf16.msra.mxu0 0
        %664 = vmatprep.subr.bf16.mxu0 0
        %665 = vmatpush1.bf16.msra.mxu0 0
        %666 = vmatprep.subr.bf16.mxu0 0
        %667 = vmatpush1.bf16.msra.mxu0 0
        %668 = vmatprep.subr.bf16.mxu0 0
        %669 = vmatpush1.bf16.msra.mxu0 0
        %670 = vmatprep.subr.bf16.mxu0 0
        %671 = vmatpush1.bf16.msra.mxu0 0
        %672 = vmatprep.subr.bf16.mxu0 0
        %673 = vmatpush1.bf16.msra.mxu0 0
        %674 = vmatprep.subr.bf16.mxu0 0
        %675 = vmatpush1.bf16.msra.mxu0 0
        %676 = vmatprep.subr.bf16.mxu0 0
        %677 = vmatpush1.bf16.msra.mxu0 0
        %678 = vmatprep.subr.bf16.mxu0 0
        %679 = vmatpush1.bf16.msra.mxu0 0
        %680 = vmatprep.subr.bf16.mxu0 0
        %681 = vmatpush1.bf16.msra.mxu0 0
        %682 = vmatprep.subr.bf16.mxu0 0
        %683 = vmatpush1.bf16.msra.mxu0 0
        %684 = vmatprep.subr.bf16.mxu0 0
        %685 = vmatpush1.bf16.msra.mxu0 0
        %686 = vmatprep.subr.bf16.mxu0 0
        %687 = vmatpush1.bf16.msra.mxu0 0
        %688 = vmatprep.subr.bf16.mxu0 0
        %689 = vmatpush1.bf16.msra.mxu0 0
        %690 = vmatprep.mubr.bf16.mxu0 0
        %691 = vmatmul.mubr.bf16.gmra.mrb[0].mxu0 %v632
        %v692 = vpop.f32.mrb[0].mxu0
        %v693 = vadd.f32 %v529, %v692
        %v694 = vpop.f32.mrb[0].mxu0
        %v695 = vpop.f32.mrb[0].mxu0
        %v696 = vadd.f32 %v532, %v695
        %v697 = vpop.f32.mrb[0].mxu0
        %698 = vmatprep.mubr.bf16.mxu0 0
        %699 = vmatmul.mubr.bf16.gmra.mrb[0].mxu0 %v635
        %v700 = vpop.f32.mrb[0].mxu0
        %v701 = vadd.f32 %v537, %v700
        %v702 = vpop.f32.mrb[0].mxu0
        %v703 = vpop.f32.mrb[0].mxu0
        %v704 = vadd.f32 %v540, %v703
        %v705 = vpop.f32.mrb[0].mxu0
        %706 = vmatprep.mubr.bf16.mxu0 0
        %707 = vmatmul.mubr.bf16.gmra.mrb[0].mxu0 %v638
        %v708 = vpop.f32.mrb[0].mxu0
        %v709 = vadd.f32 %v545, %v708
        %v710 = vpop.f32.mrb[0].mxu0
        %v711 = vpop.f32.mrb[0].mxu0
        %v712 = vadd.f32 %v548, %v711
        %v713 = vpop.f32.mrb[0].mxu0
        %714 = vmatprep.mubr.bf16.mxu0 0
        %715 = vmatmul.mubr.bf16.gmra.mrb[0].mxu0 %v641
        %v716 = vpop.f32.mrb[0].mxu0
        %v717 = vadd.f32 %v553, %v716
        %v718 = vpop.f32.mrb[0].mxu0
        %v719 = vpop.f32.mrb[0].mxu0
        %v720 = vadd.f32 %v556, %v719
        %v721 = vpop.f32.mrb[0].mxu0
        %722 = vmatprep.mubr.bf16.mxu0 0
        %723 = vmatmul.mubr.bf16.gmra.mrb[0].mxu0 %v644
        %v724 = vpop.f32.mrb[0].mxu0
        %v725 = vadd.f32 %v561, %v724
        %v726 = vpop.f32.mrb[0].mxu0
        %v727 = vpop.f32.mrb[0].mxu0
        %v728 = vadd.f32 %v564, %v727
        %v729 = vpop.f32.mrb[0].mxu0
        %730 = vmatprep.mubr.bf16.mxu0 0
        %731 = vmatmul.mubr.bf16.gmra.mrb[0].mxu0 %v647
        %v732 = vpop.f32.mrb[0].mxu0
        %v733 = vadd.f32 %v569, %v732
        %v734 = vpop.f32.mrb[0].mxu0
        %v735 = vpop.f32.mrb[0].mxu0
        %v736 = vadd.f32 %v572, %v735
        %v737 = vpop.f32.mrb[0].mxu0
        %738 = vmatprep.mubr.bf16.mxu0 0
        %739 = vmatmul.mubr.bf16.gmra.mrb[0].mxu0 %v650
        %v740 = vpop.f32.mrb[0].mxu0
        %v741 = vadd.f32 %v577, %v740
        %v742 = vpop.f32.mrb[0].mxu0
        %v743 = vpop.f32.mrb[0].mxu0
        %v744 = vadd.f32 %v580, %v743
        %v745 = vpop.f32.mrb[0].mxu0
        %746 = vmatprep.mubr.bf16.mxu0 0
        %747 = vmatmul.mubr.bf16.gmra.mrb[0].mxu0 %v653
        %v748 = vpop.f32.mrb[0].mxu0
        %v749 = vadd.f32 %v585, %v748
        %v750 = vpop.f32.mrb[0].mxu0
        %v751 = vpop.f32.mrb[0].mxu0
        %v752 = vadd.f32 %v588, %v751
        %v753 = vpop.f32.mrb[0].mxu0
        %754 = vdwg.mxu0
        %vm763 = vcmask 1042432
        %vm764 = vcmask 1046532
        %vm765 = vmor %vm763, %vm764
        %v766 = vrot.slane %v216, 5
        %v767 = vrot.slane %v766, 4
        %v768 = vrot.slane %v217, 5
        %v769 = vsel %vm765, %v767, %v768
        %v770 = vrot.slane %v768, 4
        %v771 = vrot.slane %v218, 5
        %v772 = vsel %vm765, %v770, %v771
        %v773 = vrot.slane %v219, 5
        %v774 = vrot.slane %v773, 4
        %v775 = vrot.slane %v220, 5
        %v776 = vsel %vm765, %v774, %v775
        %v777 = vrot.slane %v775, 4
        %v778 = vrot.slane %v221, 5
        %v779 = vsel %vm765, %v777, %v778
        %v780 = vrot.slane %v222, 5
        %v781 = vrot.slane %v780, 4
        %v782 = vrot.slane %v223, 5
        %v783 = vsel %vm765, %v781, %v782
        %v784 = vrot.slane %v782, 4
        %v785 = vrot.slane %v224, 5
        %v786 = vsel %vm765, %v784, %v785
        %v787 = vrot.slane %v225, 5
        %v788 = vrot.slane %v787, 4
        %v789 = vrot.slane %v226, 5
        %v790 = vsel %vm765, %v788, %v789
        %v791 = vrot.slane %v789, 4
        %v792 = vrot.slane %v227, 5
        %v793 = vsel %vm765, %v791, %v792
        %v794 = vrot.slane %v228, 5
        %v795 = vrot.slane %v794, 4
        %v796 = vrot.slane %v229, 5
        %v797 = vsel %vm765, %v795, %v796
        %v798 = vrot.slane %v796, 4
        %v799 = vrot.slane %v230, 5
        %v800 = vsel %vm765, %v798, %v799
        %v801 = vrot.slane %v231, 5
        %v802 = vrot.slane %v801, 4
        %v803 = vrot.slane %v232, 5
        %v804 = vsel %vm765, %v802, %v803
        %v805 = vrot.slane %v803, 4
        %v806 = vrot.slane %v233, 5
        %v807 = vsel %vm765, %v805, %v806
        %v808 = vrot.slane %v234, 5
        %v809 = vrot.slane %v808, 4
        %v810 = vrot.slane %v235, 5
        %v811 = vsel %vm765, %v809, %v810
        %v812 = vrot.slane %v810, 4
        %v813 = vrot.slane %v236, 5
        %v814 = vsel %vm765, %v812, %v813
        %v815 = vrot.slane %v237, 5
        %v816 = vrot.slane %v815, 4
        %v817 = vrot.slane %v238, 5
        %v818 = vsel %vm765, %v816, %v817
        %v819 = vrot.slane %v817, 4
        %v820 = vrot.slane %v239, 5
        %v821 = vsel %vm765, %v819, %v820
        %s822 = scalar_lea.vmem %s1, 8
        %v823 = vld [vmem:[%s822] sm:$0x7]
        %v824 = vunpack.c.l.b16 %v769
        %v825 = vunpack.c.l.b16 %v772
        %v826 = vunpack.c.l.b16 %v776
        %v827 = vunpack.c.l.b16 %v779
        %v828 = vunpack.c.l.b16 %v783
        %v829 = vunpack.c.l.b16 %v786
        %v830 = vunpack.c.l.b16 %v790
        %v831 = vunpack.c.l.b16 %v793
        %v832 = vunpack.c.l.b16 %v797
        %v833 = vunpack.c.l.b16 %v800
        %v834 = vunpack.c.l.b16 %v804
        %v835 = vunpack.c.l.b16 %v807
        %v836 = vunpack.c.l.b16 %v811
        %v837 = vunpack.c.l.b16 %v814
        %v838 = vunpack.c.l.b16 %v818
        %v839 = vunpack.c.l.b16 %v821
        %v840 = vpack.c.b16 %v825, %v824
        %v841 = vpack.c.b16 %v827, %v826
        %v842 = vpack.c.b16 %v829, %v828
        %v843 = vpack.c.b16 %v831, %v830
        %v844 = vpack.c.b16 %v833, %v832
        %v845 = vpack.c.b16 %v835, %v834
        %v846 = vpack.c.b16 %v837, %v836
        %v847 = vpack.c.b16 %v839, %v838
        %v849 = vsel %vm462, %v840, 0
        %v852 = vsel %vm462, %v841, 0
        %v855 = vsel %vm462, %v842, 0
        %v858 = vsel %vm462, %v843, 0
        %v861 = vsel %vm462, %v844, 0
        %v864 = vsel %vm462, %v845, 0
        %v867 = vsel %vm462, %v846, 0
        %v870 = vsel %vm462, %v847, 0
        %v873 = vand.u32 %v823, %v490
        %875 = vmatprep.subr.bf16.mxu0 0
        %876 = vmatpush1.bf16.msra.mxu0 %v873
        %877 = vmatprep.subr.bf16.mxu0 0
        %878 = vmatpush1.bf16.msra.mxu0 0
        %879 = vmatprep.subr.bf16.mxu0 0
        %880 = vmatpush1.bf16.msra.mxu0 0
        %881 = vmatprep.subr.bf16.mxu0 0
        %882 = vmatpush1.bf16.msra.mxu0 0
        %883 = vmatprep.subr.bf16.mxu0 0
        %884 = vmatpush1.bf16.msra.mxu0 0
        %885 = vmatprep.subr.bf16.mxu0 0
        %886 = vmatpush1.bf16.msra.mxu0 0
        %887 = vmatprep.subr.bf16.mxu0 0
        %888 = vmatpush1.bf16.msra.mxu0 0
        %889 = vmatprep.subr.bf16.mxu0 0
        %890 = vmatpush1.bf16.msra.mxu0 0
        %891 = vmatprep.subr.bf16.mxu0 0
        %892 = vmatpush1.bf16.msra.mxu0 0
        %893 = vmatprep.subr.bf16.mxu0 0
        %894 = vmatpush1.bf16.msra.mxu0 0
        %895 = vmatprep.subr.bf16.mxu0 0
        %896 = vmatpush1.bf16.msra.mxu0 0
        %897 = vmatprep.subr.bf16.mxu0 0
        %898 = vmatpush1.bf16.msra.mxu0 0
        %899 = vmatprep.subr.bf16.mxu0 0
        %900 = vmatpush1.bf16.msra.mxu0 0
        %901 = vmatprep.subr.bf16.mxu0 0
        %902 = vmatpush1.bf16.msra.mxu0 0
        %903 = vmatprep.subr.bf16.mxu0 0
        %904 = vmatpush1.bf16.msra.mxu0 0
        %905 = vmatprep.subr.bf16.mxu0 0
        %906 = vmatpush1.bf16.msra.mxu0 0
        %907 = vmatprep.mubr.bf16.mxu0 0
        %908 = vmatmul.mubr.bf16.gmra.mrb[0].mxu0 %v849
        %v909 = vpop.f32.mrb[0].mxu0
        %v910 = vadd.f32 0.0, %v909
        %v911 = vpop.f32.mrb[0].mxu0
        %v912 = vpop.f32.mrb[0].mxu0
        %v913 = vadd.f32 0.0, %v912
        %v914 = vpop.f32.mrb[0].mxu0
        %915 = vmatprep.mubr.bf16.mxu0 0
        %916 = vmatmul.mubr.bf16.gmra.mrb[0].mxu0 %v852
        %v917 = vpop.f32.mrb[0].mxu0
        %v918 = vadd.f32 0.0, %v917
        %v919 = vpop.f32.mrb[0].mxu0
        %v920 = vpop.f32.mrb[0].mxu0
        %v921 = vadd.f32 0.0, %v920
        %v922 = vpop.f32.mrb[0].mxu0
        %923 = vmatprep.mubr.bf16.mxu0 0
        %924 = vmatmul.mubr.bf16.gmra.mrb[0].mxu0 %v855
        %v925 = vpop.f32.mrb[0].mxu0
        %v926 = vadd.f32 0.0, %v925
        %v927 = vpop.f32.mrb[0].mxu0
        %v928 = vpop.f32.mrb[0].mxu0
        %v929 = vadd.f32 0.0, %v928
        %v930 = vpop.f32.mrb[0].mxu0
        %931 = vmatprep.mubr.bf16.mxu0 0
        %932 = vmatmul.mubr.bf16.gmra.mrb[0].mxu0 %v858
        %v933 = vpop.f32.mrb[0].mxu0
        %v934 = vadd.f32 0.0, %v933
        %v935 = vpop.f32.mrb[0].mxu0
        %v936 = vpop.f32.mrb[0].mxu0
        %v937 = vadd.f32 0.0, %v936
        %v938 = vpop.f32.mrb[0].mxu0
        %939 = vmatprep.mubr.bf16.mxu0 0
        %940 = vmatmul.mubr.bf16.gmra.mrb[0].mxu0 %v861
        %v941 = vpop.f32.mrb[0].mxu0
        %v942 = vadd.f32 0.0, %v941
        %v943 = vpop.f32.mrb[0].mxu0
        %v944 = vpop.f32.mrb[0].mxu0
        %v945 = vadd.f32 0.0, %v944
        %v946 = vpop.f32.mrb[0].mxu0
        %947 = vmatprep.mubr.bf16.mxu0 0
        %948 = vmatmul.mubr.bf16.gmra.mrb[0].mxu0 %v864
        %v949 = vpop.f32.mrb[0].mxu0
        %v950 = vadd.f32 0.0, %v949
        %v951 = vpop.f32.mrb[0].mxu0
        %v952 = vpop.f32.mrb[0].mxu0
        %v953 = vadd.f32 0.0, %v952
        %v954 = vpop.f32.mrb[0].mxu0
        %955 = vmatprep.mubr.bf16.mxu0 0
        %956 = vmatmul.mubr.bf16.gmra.mrb[0].mxu0 %v867
        %v957 = vpop.f32.mrb[0].mxu0
        %v958 = vadd.f32 0.0, %v957
        %v959 = vpop.f32.mrb[0].mxu0
        %v960 = vpop.f32.mrb[0].mxu0
        %v961 = vadd.f32 0.0, %v960
        %v962 = vpop.f32.mrb[0].mxu0
        %963 = vmatprep.mubr.bf16.mxu0 0
        %964 = vmatmul.mubr.bf16.gmra.mrb[0].mxu0 %v870
        %v965 = vpop.f32.mrb[0].mxu0
        %v966 = vadd.f32 0.0, %v965
        %v967 = vpop.f32.mrb[0].mxu0
        %v968 = vpop.f32.mrb[0].mxu0
        %v969 = vadd.f32 0.0, %v968
        %v970 = vpop.f32.mrb[0].mxu0
        %971 = vdwg.mxu0
        %v972 = vadd.f32 %v693, %v910
        %v973 = vadd.f32 %v696, %v913
        %v974 = vadd.f32 %v701, %v918
        %v975 = vadd.f32 %v704, %v921
        %v976 = vadd.f32 %v709, %v926
        %v977 = vadd.f32 %v712, %v929
        %v978 = vadd.f32 %v717, %v934
        %v979 = vadd.f32 %v720, %v937
        %v980 = vadd.f32 %v725, %v942
        %v981 = vadd.f32 %v728, %v945
        %v982 = vadd.f32 %v733, %v950
        %v983 = vadd.f32 %v736, %v953
        %v984 = vadd.f32 %v741, %v958
        %v985 = vadd.f32 %v744, %v961
        %v986 = vadd.f32 %v749, %v966
        %v987 = vadd.f32 %v752, %v969
        %s988 = sadd.s32 %s212, 1
        %s989 = smul.u32 %s988, 3
        %s990 = smul.addr %s989, 4
        %s991 = scalar_lea.vmem %s209, %s990
        %v992 = vld [vmem:[%s991] sm:$0xf]
        %v993 = vld [vmem:[%s991 + $0x4] sm:$0xf]
        %v994 = vld [vmem:[%s991 + $0x8] sm:$0x1]
        %v995 = vld [vmem:[%s991 + $0xc] sm:$0xf]
        %v996 = vld [vmem:[%s991 + $0x10] sm:$0xf]
        %v997 = vld [vmem:[%s991 + $0x14] sm:$0x1]
        %v998 = vld [vmem:[%s991 + $0x18] sm:$0xf]
        %v999 = vld [vmem:[%s991 + $0x1c] sm:$0xf]
        %v1000 = vld [vmem:[%s991 + $0x20] sm:$0x1]
        %v1001 = vld [vmem:[%s991 + $0x24] sm:$0xf]
        %v1002 = vld [vmem:[%s991 + $0x28] sm:$0xf]
        %v1003 = vld [vmem:[%s991 + $0x2c] sm:$0x1]
        %v1004 = vld [vmem:[%s991 + $0x30] sm:$0xf]
        %v1005 = vld [vmem:[%s991 + $0x34] sm:$0xf]
        %v1006 = vld [vmem:[%s991 + $0x38] sm:$0x1]
        %v1007 = vld [vmem:[%s991 + $0x3c] sm:$0xf]
        %v1008 = vld [vmem:[%s991 + $0x40] sm:$0xf]
        %v1009 = vld [vmem:[%s991 + $0x44] sm:$0x1]
        %v1010 = vld [vmem:[%s991 + $0x48] sm:$0xf]
        %v1011 = vld [vmem:[%s991 + $0x4c] sm:$0xf]
        %v1012 = vld [vmem:[%s991 + $0x50] sm:$0x1]
        %v1013 = vld [vmem:[%s991 + $0x54] sm:$0xf]
        %v1014 = vld [vmem:[%s991 + $0x58] sm:$0xf]
        %v1015 = vld [vmem:[%s991 + $0x5c] sm:$0x1]
        %s1016 = scalar_lea.vmem %s1, 12
        %v1017 = vld [vmem:[%s1016] sm:$0x7]
        %v1034 = vunpack.c.l.b16 %v992
        %v1035 = vunpack.c.l.b16 %v993
        %v1036 = vunpack.c.l.b16 %v995
        %v1037 = vunpack.c.l.b16 %v996
        %v1038 = vunpack.c.l.b16 %v998
        %v1039 = vunpack.c.l.b16 %v999
        %v1040 = vunpack.c.l.b16 %v1001
        %v1041 = vunpack.c.l.b16 %v1002
        %v1042 = vunpack.c.l.b16 %v1004
        %v1043 = vunpack.c.l.b16 %v1005
        %v1044 = vunpack.c.l.b16 %v1007
        %v1045 = vunpack.c.l.b16 %v1008
        %v1046 = vunpack.c.l.b16 %v1010
        %v1047 = vunpack.c.l.b16 %v1011
        %v1048 = vunpack.c.l.b16 %v1013
        %v1049 = vunpack.c.l.b16 %v1014
        %v1050 = vpack.c.b16 %v1035, %v1034
        %v1051 = vpack.c.b16 %v1037, %v1036
        %v1052 = vpack.c.b16 %v1039, %v1038
        %v1053 = vpack.c.b16 %v1041, %v1040
        %v1054 = vpack.c.b16 %v1043, %v1042
        %v1055 = vpack.c.b16 %v1045, %v1044
        %v1056 = vpack.c.b16 %v1047, %v1046
        %v1057 = vpack.c.b16 %v1049, %v1048
        %v1059 = vsel %vm462, %v1050, 0
        %v1062 = vsel %vm462, %v1051, 0
        %v1065 = vsel %vm462, %v1052, 0
        %v1068 = vsel %vm462, %v1053, 0
        %v1071 = vsel %vm462, %v1054, 0
        %v1074 = vsel %vm462, %v1055, 0
        %v1077 = vsel %vm462, %v1056, 0
        %v1080 = vsel %vm462, %v1057, 0
        %v1083 = vand.u32 %v1017, %v490
        %1085 = vmatprep.subr.bf16.mxu0 0
        %1086 = vmatpush1.bf16.msra.mxu0 %v1083
        %1087 = vmatprep.subr.bf16.mxu0 0
        %1088 = vmatpush1.bf16.msra.mxu0 0
        %1089 = vmatprep.subr.bf16.mxu0 0
        %1090 = vmatpush1.bf16.msra.mxu0 0
        %1091 = vmatprep.subr.bf16.mxu0 0
        %1092 = vmatpush1.bf16.msra.mxu0 0
        %1093 = vmatprep.subr.bf16.mxu0 0
        %1094 = vmatpush1.bf16.msra.mxu0 0
        %1095 = vmatprep.subr.bf16.mxu0 0
        %1096 = vmatpush1.bf16.msra.mxu0 0
        %1097 = vmatprep.subr.bf16.mxu0 0
        %1098 = vmatpush1.bf16.msra.mxu0 0
        %1099 = vmatprep.subr.bf16.mxu0 0
        %1100 = vmatpush1.bf16.msra.mxu0 0
        %1101 = vmatprep.subr.bf16.mxu0 0
        %1102 = vmatpush1.bf16.msra.mxu0 0
        %1103 = vmatprep.subr.bf16.mxu0 0
        %1104 = vmatpush1.bf16.msra.mxu0 0
        %1105 = vmatprep.subr.bf16.mxu0 0
        %1106 = vmatpush1.bf16.msra.mxu0 0
        %1107 = vmatprep.subr.bf16.mxu0 0
        %1108 = vmatpush1.bf16.msra.mxu0 0
        %1109 = vmatprep.subr.bf16.mxu0 0
        %1110 = vmatpush1.bf16.msra.mxu0 0
        %1111 = vmatprep.subr.bf16.mxu0 0
        %1112 = vmatpush1.bf16.msra.mxu0 0
        %1113 = vmatprep.subr.bf16.mxu0 0
        %1114 = vmatpush1.bf16.msra.mxu0 0
        %1115 = vmatprep.subr.bf16.mxu0 0
        %1116 = vmatpush1.bf16.msra.mxu0 0
        %1117 = vmatprep.mubr.bf16.mxu0 0
        %1118 = vmatmul.mubr.bf16.gmra.mrb[0].mxu0 %v1059
        %v1119 = vpop.f32.mrb[0].mxu0
        %v1120 = vadd.f32 0.0, %v1119
        %v1121 = vpop.f32.mrb[0].mxu0
        %v1122 = vpop.f32.mrb[0].mxu0
        %v1123 = vadd.f32 0.0, %v1122
        %v1124 = vpop.f32.mrb[0].mxu0
        %1125 = vmatprep.mubr.bf16.mxu0 0
        %1126 = vmatmul.mubr.bf16.gmra.mrb[0].mxu0 %v1062
        %v1127 = vpop.f32.mrb[0].mxu0
        %v1128 = vadd.f32 0.0, %v1127
        %v1129 = vpop.f32.mrb[0].mxu0
        %v1130 = vpop.f32.mrb[0].mxu0
        %v1131 = vadd.f32 0.0, %v1130
        %v1132 = vpop.f32.mrb[0].mxu0
        %1133 = vmatprep.mubr.bf16.mxu0 0
        %1134 = vmatmul.mubr.bf16.gmra.mrb[0].mxu0 %v1065
        %v1135 = vpop.f32.mrb[0].mxu0
        %v1136 = vadd.f32 0.0, %v1135
        %v1137 = vpop.f32.mrb[0].mxu0
        %v1138 = vpop.f32.mrb[0].mxu0
        %v1139 = vadd.f32 0.0, %v1138
        %v1140 = vpop.f32.mrb[0].mxu0
        %1141 = vmatprep.mubr.bf16.mxu0 0
        %1142 = vmatmul.mubr.bf16.gmra.mrb[0].mxu0 %v1068
        %v1143 = vpop.f32.mrb[0].mxu0
        %v1144 = vadd.f32 0.0, %v1143
        %v1145 = vpop.f32.mrb[0].mxu0
        %v1146 = vpop.f32.mrb[0].mxu0
        %v1147 = vadd.f32 0.0, %v1146
        %v1148 = vpop.f32.mrb[0].mxu0
        %1149 = vmatprep.mubr.bf16.mxu0 0
        %1150 = vmatmul.mubr.bf16.gmra.mrb[0].mxu0 %v1071
        %v1151 = vpop.f32.mrb[0].mxu0
        %v1152 = vadd.f32 0.0, %v1151
        %v1153 = vpop.f32.mrb[0].mxu0
        %v1154 = vpop.f32.mrb[0].mxu0
        %v1155 = vadd.f32 0.0, %v1154
        %v1156 = vpop.f32.mrb[0].mxu0
        %1157 = vmatprep.mubr.bf16.mxu0 0
        %1158 = vmatmul.mubr.bf16.gmra.mrb[0].mxu0 %v1074
        %v1159 = vpop.f32.mrb[0].mxu0
        %v1160 = vadd.f32 0.0, %v1159
        %v1161 = vpop.f32.mrb[0].mxu0
        %v1162 = vpop.f32.mrb[0].mxu0
        %v1163 = vadd.f32 0.0, %v1162
        %v1164 = vpop.f32.mrb[0].mxu0
        %1165 = vmatprep.mubr.bf16.mxu0 0
        %1166 = vmatmul.mubr.bf16.gmra.mrb[0].mxu0 %v1077
        %v1167 = vpop.f32.mrb[0].mxu0
        %v1168 = vadd.f32 0.0, %v1167
        %v1169 = vpop.f32.mrb[0].mxu0
        %v1170 = vpop.f32.mrb[0].mxu0
        %v1171 = vadd.f32 0.0, %v1170
        %v1172 = vpop.f32.mrb[0].mxu0
        %1173 = vmatprep.mubr.bf16.mxu0 0
        %1174 = vmatmul.mubr.bf16.gmra.mrb[0].mxu0 %v1080
        %v1175 = vpop.f32.mrb[0].mxu0
        %v1176 = vadd.f32 0.0, %v1175
        %v1177 = vpop.f32.mrb[0].mxu0
        %v1178 = vpop.f32.mrb[0].mxu0
        %v1179 = vadd.f32 0.0, %v1178
        %v1180 = vpop.f32.mrb[0].mxu0
        %1181 = vdwg.mxu0
        %v1182 = vadd.f32 %v972, %v1120
        %v1183 = vadd.f32 %v973, %v1123
        %v1184 = vadd.f32 %v974, %v1128
        %v1185 = vadd.f32 %v975, %v1131
        %v1186 = vadd.f32 %v976, %v1136
        %v1187 = vadd.f32 %v977, %v1139
        %v1188 = vadd.f32 %v978, %v1144
        %v1189 = vadd.f32 %v979, %v1147
        %v1190 = vadd.f32 %v980, %v1152
        %v1191 = vadd.f32 %v981, %v1155
        %v1192 = vadd.f32 %v982, %v1160
        %v1193 = vadd.f32 %v983, %v1163
        %v1194 = vadd.f32 %v984, %v1168
        %v1195 = vadd.f32 %v985, %v1171
        %v1196 = vadd.f32 %v986, %v1176
        %v1197 = vadd.f32 %v987, %v1179
        %v1199 = vshrl.u32 %v992, 16
        %v1201 = vrot.slane %v1199, 4
        %v1202 = vshll.u32 %v992, 16
        %v1204 = vrot.slane %v1202, 5
        %v1205 = vor.u32 %v1201, %v1204
        %v1206 = vrot.slane %v1205, 4
        %v1208 = vshll.u32 %v993, 16
        %v1210 = vrot.slane %v1208, 5
        %v1211 = vsel %vm243, %v1206, %v1210
        %v1212 = vshrl.u32 %v993, 16
        %v1214 = vrot.slane %v1212, 4
        %v1215 = vor.u32 %v1214, %v1210
        %v1216 = vrot.slane %v1215, 4
        %v1218 = vshll.u32 %v994, 16
        %v1220 = vrot.slane %v1218, 5
        %v1221 = vsel %vm243, %v1216, %v1220
        %v1223 = vshrl.u32 %v995, 16
        %v1225 = vrot.slane %v1223, 4
        %v1226 = vshll.u32 %v995, 16
        %v1228 = vrot.slane %v1226, 5
        %v1229 = vor.u32 %v1225, %v1228
        %v1230 = vrot.slane %v1229, 4
        %v1232 = vshll.u32 %v996, 16
        %v1234 = vrot.slane %v1232, 5
        %v1235 = vsel %vm243, %v1230, %v1234
        %v1236 = vshrl.u32 %v996, 16
        %v1238 = vrot.slane %v1236, 4
        %v1239 = vor.u32 %v1238, %v1234
        %v1240 = vrot.slane %v1239, 4
        %v1242 = vshll.u32 %v997, 16
        %v1244 = vrot.slane %v1242, 5
        %v1245 = vsel %vm243, %v1240, %v1244
        %v1247 = vshrl.u32 %v998, 16
        %v1249 = vrot.slane %v1247, 4
        %v1250 = vshll.u32 %v998, 16
        %v1252 = vrot.slane %v1250, 5
        %v1253 = vor.u32 %v1249, %v1252
        %v1254 = vrot.slane %v1253, 4
        %v1256 = vshll.u32 %v999, 16
        %v1258 = vrot.slane %v1256, 5
        %v1259 = vsel %vm243, %v1254, %v1258
        %v1260 = vshrl.u32 %v999, 16
        %v1262 = vrot.slane %v1260, 4
        %v1263 = vor.u32 %v1262, %v1258
        %v1264 = vrot.slane %v1263, 4
        %v1266 = vshll.u32 %v1000, 16
        %v1268 = vrot.slane %v1266, 5
        %v1269 = vsel %vm243, %v1264, %v1268
        %v1271 = vshrl.u32 %v1001, 16
        %v1273 = vrot.slane %v1271, 4
        %v1274 = vshll.u32 %v1001, 16
        %v1276 = vrot.slane %v1274, 5
        %v1277 = vor.u32 %v1273, %v1276
        %v1278 = vrot.slane %v1277, 4
        %v1280 = vshll.u32 %v1002, 16
        %v1282 = vrot.slane %v1280, 5
        %v1283 = vsel %vm243, %v1278, %v1282
        %v1284 = vshrl.u32 %v1002, 16
        %v1286 = vrot.slane %v1284, 4
        %v1287 = vor.u32 %v1286, %v1282
        %v1288 = vrot.slane %v1287, 4
        %v1290 = vshll.u32 %v1003, 16
        %v1292 = vrot.slane %v1290, 5
        %v1293 = vsel %vm243, %v1288, %v1292
        %v1295 = vshrl.u32 %v1004, 16
        %v1297 = vrot.slane %v1295, 4
        %v1298 = vshll.u32 %v1004, 16
        %v1300 = vrot.slane %v1298, 5
        %v1301 = vor.u32 %v1297, %v1300
        %v1302 = vrot.slane %v1301, 4
        %v1304 = vshll.u32 %v1005, 16
        %v1306 = vrot.slane %v1304, 5
        %v1307 = vsel %vm243, %v1302, %v1306
        %v1308 = vshrl.u32 %v1005, 16
        %v1310 = vrot.slane %v1308, 4
        %v1311 = vor.u32 %v1310, %v1306
        %v1312 = vrot.slane %v1311, 4
        %v1314 = vshll.u32 %v1006, 16
        %v1316 = vrot.slane %v1314, 5
        %v1317 = vsel %vm243, %v1312, %v1316
        %v1319 = vshrl.u32 %v1007, 16
        %v1321 = vrot.slane %v1319, 4
        %v1322 = vshll.u32 %v1007, 16
        %v1324 = vrot.slane %v1322, 5
        %v1325 = vor.u32 %v1321, %v1324
        %v1326 = vrot.slane %v1325, 4
        %v1328 = vshll.u32 %v1008, 16
        %v1330 = vrot.slane %v1328, 5
        %v1331 = vsel %vm243, %v1326, %v1330
        %v1332 = vshrl.u32 %v1008, 16
        %v1334 = vrot.slane %v1332, 4
        %v1335 = vor.u32 %v1334, %v1330
        %v1336 = vrot.slane %v1335, 4
        %v1338 = vshll.u32 %v1009, 16
        %v1340 = vrot.slane %v1338, 5
        %v1341 = vsel %vm243, %v1336, %v1340
        %v1343 = vshrl.u32 %v1010, 16
        %v1345 = vrot.slane %v1343, 4
        %v1346 = vshll.u32 %v1010, 16
        %v1348 = vrot.slane %v1346, 5
        %v1349 = vor.u32 %v1345, %v1348
        %v1350 = vrot.slane %v1349, 4
        %v1352 = vshll.u32 %v1011, 16
        %v1354 = vrot.slane %v1352, 5
        %v1355 = vsel %vm243, %v1350, %v1354
        %v1356 = vshrl.u32 %v1011, 16
        %v1358 = vrot.slane %v1356, 4
        %v1359 = vor.u32 %v1358, %v1354
        %v1360 = vrot.slane %v1359, 4
        %v1362 = vshll.u32 %v1012, 16
        %v1364 = vrot.slane %v1362, 5
        %v1365 = vsel %vm243, %v1360, %v1364
        %v1367 = vshrl.u32 %v1013, 16
        %v1369 = vrot.slane %v1367, 4
        %v1370 = vshll.u32 %v1013, 16
        %v1372 = vrot.slane %v1370, 5
        %v1373 = vor.u32 %v1369, %v1372
        %v1374 = vrot.slane %v1373, 4
        %v1376 = vshll.u32 %v1014, 16
        %v1378 = vrot.slane %v1376, 5
        %v1379 = vsel %vm243, %v1374, %v1378
        %v1380 = vshrl.u32 %v1014, 16
        %v1382 = vrot.slane %v1380, 4
        %v1383 = vor.u32 %v1382, %v1378
        %v1384 = vrot.slane %v1383, 4
        %v1386 = vshll.u32 %v1015, 16
        %v1388 = vrot.slane %v1386, 5
        %v1389 = vsel %vm243, %v1384, %v1388
        %s1390 = scalar_lea.vmem %s1, 16
        %v1391 = vld [vmem:[%s1390] sm:$0x7]
        %v1392 = vunpack.c.l.b16 %v1211
        %v1393 = vunpack.c.l.b16 %v1221
        %v1394 = vunpack.c.l.b16 %v1235
        %v1395 = vunpack.c.l.b16 %v1245
        %v1396 = vunpack.c.l.b16 %v1259
        %v1397 = vunpack.c.l.b16 %v1269
        %v1398 = vunpack.c.l.b16 %v1283
        %v1399 = vunpack.c.l.b16 %v1293
        %v1400 = vunpack.c.l.b16 %v1307
        %v1401 = vunpack.c.l.b16 %v1317
        %v1402 = vunpack.c.l.b16 %v1331
        %v1403 = vunpack.c.l.b16 %v1341
        %v1404 = vunpack.c.l.b16 %v1355
        %v1405 = vunpack.c.l.b16 %v1365
        %v1406 = vunpack.c.l.b16 %v1379
        %v1407 = vunpack.c.l.b16 %v1389
        %v1408 = vpack.c.b16 %v1393, %v1392
        %v1409 = vpack.c.b16 %v1395, %v1394
        %v1410 = vpack.c.b16 %v1397, %v1396
        %v1411 = vpack.c.b16 %v1399, %v1398
        %v1412 = vpack.c.b16 %v1401, %v1400
        %v1413 = vpack.c.b16 %v1403, %v1402
        %v1414 = vpack.c.b16 %v1405, %v1404
        %v1415 = vpack.c.b16 %v1407, %v1406
        %v1417 = vsel %vm462, %v1408, 0
        %v1420 = vsel %vm462, %v1409, 0
        %v1423 = vsel %vm462, %v1410, 0
        %v1426 = vsel %vm462, %v1411, 0
        %v1429 = vsel %vm462, %v1412, 0
        %v1432 = vsel %vm462, %v1413, 0
        %v1435 = vsel %vm462, %v1414, 0
        %v1438 = vsel %vm462, %v1415, 0
        %v1441 = vand.u32 %v1391, %v490
        %1443 = vmatprep.subr.bf16.mxu0 0
        %1444 = vmatpush1.bf16.msra.mxu0 %v1441
        %1445 = vmatprep.subr.bf16.mxu0 0
        %1446 = vmatpush1.bf16.msra.mxu0 0
        %1447 = vmatprep.subr.bf16.mxu0 0
        %1448 = vmatpush1.bf16.msra.mxu0 0
        %1449 = vmatprep.subr.bf16.mxu0 0
        %1450 = vmatpush1.bf16.msra.mxu0 0
        %1451 = vmatprep.subr.bf16.mxu0 0
        %1452 = vmatpush1.bf16.msra.mxu0 0
        %1453 = vmatprep.subr.bf16.mxu0 0
        %1454 = vmatpush1.bf16.msra.mxu0 0
        %1455 = vmatprep.subr.bf16.mxu0 0
        %1456 = vmatpush1.bf16.msra.mxu0 0
        %1457 = vmatprep.subr.bf16.mxu0 0
        %1458 = vmatpush1.bf16.msra.mxu0 0
        %1459 = vmatprep.subr.bf16.mxu0 0
        %1460 = vmatpush1.bf16.msra.mxu0 0
        %1461 = vmatprep.subr.bf16.mxu0 0
        %1462 = vmatpush1.bf16.msra.mxu0 0
        %1463 = vmatprep.subr.bf16.mxu0 0
        %1464 = vmatpush1.bf16.msra.mxu0 0
        %1465 = vmatprep.subr.bf16.mxu0 0
        %1466 = vmatpush1.bf16.msra.mxu0 0
        %1467 = vmatprep.subr.bf16.mxu0 0
        %1468 = vmatpush1.bf16.msra.mxu0 0
        %1469 = vmatprep.subr.bf16.mxu0 0
        %1470 = vmatpush1.bf16.msra.mxu0 0
        %1471 = vmatprep.subr.bf16.mxu0 0
        %1472 = vmatpush1.bf16.msra.mxu0 0
        %1473 = vmatprep.subr.bf16.mxu0 0
        %1474 = vmatpush1.bf16.msra.mxu0 0
        %1475 = vmatprep.mubr.bf16.mxu0 0
        %1476 = vmatmul.mubr.bf16.gmra.mrb[0].mxu0 %v1417
        %v1477 = vpop.f32.mrb[0].mxu0
        %v1478 = vadd.f32 0.0, %v1477
        %v1479 = vpop.f32.mrb[0].mxu0
        %v1480 = vpop.f32.mrb[0].mxu0
        %v1481 = vadd.f32 0.0, %v1480
        %v1482 = vpop.f32.mrb[0].mxu0
        %1483 = vmatprep.mubr.bf16.mxu0 0
        %1484 = vmatmul.mubr.bf16.gmra.mrb[0].mxu0 %v1420
        %v1485 = vpop.f32.mrb[0].mxu0
        %v1486 = vadd.f32 0.0, %v1485
        %v1487 = vpop.f32.mrb[0].mxu0
        %v1488 = vpop.f32.mrb[0].mxu0
        %v1489 = vadd.f32 0.0, %v1488
        %v1490 = vpop.f32.mrb[0].mxu0
        %1491 = vmatprep.mubr.bf16.mxu0 0
        %1492 = vmatmul.mubr.bf16.gmra.mrb[0].mxu0 %v1423
        %v1493 = vpop.f32.mrb[0].mxu0
        %v1494 = vadd.f32 0.0, %v1493
        %v1495 = vpop.f32.mrb[0].mxu0
        %v1496 = vpop.f32.mrb[0].mxu0
        %v1497 = vadd.f32 0.0, %v1496
        %v1498 = vpop.f32.mrb[0].mxu0
        %1499 = vmatprep.mubr.bf16.mxu0 0
        %1500 = vmatmul.mubr.bf16.gmra.mrb[0].mxu0 %v1426
        %v1501 = vpop.f32.mrb[0].mxu0
        %v1502 = vadd.f32 0.0, %v1501
        %v1503 = vpop.f32.mrb[0].mxu0
        %v1504 = vpop.f32.mrb[0].mxu0
        %v1505 = vadd.f32 0.0, %v1504
        %v1506 = vpop.f32.mrb[0].mxu0
        %1507 = vmatprep.mubr.bf16.mxu0 0
        %1508 = vmatmul.mubr.bf16.gmra.mrb[0].mxu0 %v1429
        %v1509 = vpop.f32.mrb[0].mxu0
        %v1510 = vadd.f32 0.0, %v1509
        %v1511 = vpop.f32.mrb[0].mxu0
        %v1512 = vpop.f32.mrb[0].mxu0
        %v1513 = vadd.f32 0.0, %v1512
        %v1514 = vpop.f32.mrb[0].mxu0
        %1515 = vmatprep.mubr.bf16.mxu0 0
        %1516 = vmatmul.mubr.bf16.gmra.mrb[0].mxu0 %v1432
        %v1517 = vpop.f32.mrb[0].mxu0
        %v1518 = vadd.f32 0.0, %v1517
        %v1519 = vpop.f32.mrb[0].mxu0
        %v1520 = vpop.f32.mrb[0].mxu0
        %v1521 = vadd.f32 0.0, %v1520
        %v1522 = vpop.f32.mrb[0].mxu0
        %1523 = vmatprep.mubr.bf16.mxu0 0
        %1524 = vmatmul.mubr.bf16.gmra.mrb[0].mxu0 %v1435
        %v1525 = vpop.f32.mrb[0].mxu0
        %v1526 = vadd.f32 0.0, %v1525
        %v1527 = vpop.f32.mrb[0].mxu0
        %v1528 = vpop.f32.mrb[0].mxu0
        %v1529 = vadd.f32 0.0, %v1528
        %v1530 = vpop.f32.mrb[0].mxu0
        %1531 = vmatprep.mubr.bf16.mxu0 0
        %1532 = vmatmul.mubr.bf16.gmra.mrb[0].mxu0 %v1438
        %v1533 = vpop.f32.mrb[0].mxu0
        %v1534 = vadd.f32 0.0, %v1533
        %v1535 = vpop.f32.mrb[0].mxu0
        %v1536 = vpop.f32.mrb[0].mxu0
        %v1537 = vadd.f32 0.0, %v1536
        %v1538 = vpop.f32.mrb[0].mxu0
        %1539 = vdwg.mxu0
        %v1540 = vadd.f32 %v1182, %v1478
        %v1541 = vadd.f32 %v1183, %v1481
        %v1542 = vadd.f32 %v1184, %v1486
        %v1543 = vadd.f32 %v1185, %v1489
        %v1544 = vadd.f32 %v1186, %v1494
        %v1545 = vadd.f32 %v1187, %v1497
        %v1546 = vadd.f32 %v1188, %v1502
        %v1547 = vadd.f32 %v1189, %v1505
        %v1548 = vadd.f32 %v1190, %v1510
        %v1549 = vadd.f32 %v1191, %v1513
        %v1550 = vadd.f32 %v1192, %v1518
        %v1551 = vadd.f32 %v1193, %v1521
        %v1552 = vadd.f32 %v1194, %v1526
        %v1553 = vadd.f32 %v1195, %v1529
        %v1554 = vadd.f32 %v1196, %v1534
        %v1555 = vadd.f32 %v1197, %v1537
        %v1564 = vrot.slane %v992, 5
        %v1565 = vrot.slane %v1564, 4
        %v1566 = vrot.slane %v993, 5
        %v1567 = vsel %vm765, %v1565, %v1566
        %v1568 = vrot.slane %v1566, 4
        %v1569 = vrot.slane %v994, 5
        %v1570 = vsel %vm765, %v1568, %v1569
        %v1571 = vrot.slane %v995, 5
        %v1572 = vrot.slane %v1571, 4
        %v1573 = vrot.slane %v996, 5
        %v1574 = vsel %vm765, %v1572, %v1573
        %v1575 = vrot.slane %v1573, 4
        %v1576 = vrot.slane %v997, 5
        %v1577 = vsel %vm765, %v1575, %v1576
        %v1578 = vrot.slane %v998, 5
        %v1579 = vrot.slane %v1578, 4
        %v1580 = vrot.slane %v999, 5
        %v1581 = vsel %vm765, %v1579, %v1580
        %v1582 = vrot.slane %v1580, 4
        %v1583 = vrot.slane %v1000, 5
        %v1584 = vsel %vm765, %v1582, %v1583
        %v1585 = vrot.slane %v1001, 5
        %v1586 = vrot.slane %v1585, 4
        %v1587 = vrot.slane %v1002, 5
        %v1588 = vsel %vm765, %v1586, %v1587
        %v1589 = vrot.slane %v1587, 4
        %v1590 = vrot.slane %v1003, 5
        %v1591 = vsel %vm765, %v1589, %v1590
        %v1592 = vrot.slane %v1004, 5
        %v1593 = vrot.slane %v1592, 4
        %v1594 = vrot.slane %v1005, 5
        %v1595 = vsel %vm765, %v1593, %v1594
        %v1596 = vrot.slane %v1594, 4
        %v1597 = vrot.slane %v1006, 5
        %v1598 = vsel %vm765, %v1596, %v1597
        %v1599 = vrot.slane %v1007, 5
        %v1600 = vrot.slane %v1599, 4
        %v1601 = vrot.slane %v1008, 5
        %v1602 = vsel %vm765, %v1600, %v1601
        %v1603 = vrot.slane %v1601, 4
        %v1604 = vrot.slane %v1009, 5
        %v1605 = vsel %vm765, %v1603, %v1604
        %v1606 = vrot.slane %v1010, 5
        %v1607 = vrot.slane %v1606, 4
        %v1608 = vrot.slane %v1011, 5
        %v1609 = vsel %vm765, %v1607, %v1608
        %v1610 = vrot.slane %v1608, 4
        %v1611 = vrot.slane %v1012, 5
        %v1612 = vsel %vm765, %v1610, %v1611
        %v1613 = vrot.slane %v1013, 5
        %v1614 = vrot.slane %v1613, 4
        %v1615 = vrot.slane %v1014, 5
        %v1616 = vsel %vm765, %v1614, %v1615
        %v1617 = vrot.slane %v1615, 4
        %v1618 = vrot.slane %v1015, 5
        %v1619 = vsel %vm765, %v1617, %v1618
        %s1620 = scalar_lea.vmem %s1, 20
        %v1621 = vld [vmem:[%s1620] sm:$0x7]
        %v1622 = vunpack.c.l.b16 %v1567
        %v1623 = vunpack.c.l.b16 %v1570
        %v1624 = vunpack.c.l.b16 %v1574
        %v1625 = vunpack.c.l.b16 %v1577
        %v1626 = vunpack.c.l.b16 %v1581
        %v1627 = vunpack.c.l.b16 %v1584
        %v1628 = vunpack.c.l.b16 %v1588
        %v1629 = vunpack.c.l.b16 %v1591
        %v1630 = vunpack.c.l.b16 %v1595
        %v1631 = vunpack.c.l.b16 %v1598
        %v1632 = vunpack.c.l.b16 %v1602
        %v1633 = vunpack.c.l.b16 %v1605
        %v1634 = vunpack.c.l.b16 %v1609
        %v1635 = vunpack.c.l.b16 %v1612
        %v1636 = vunpack.c.l.b16 %v1616
        %v1637 = vunpack.c.l.b16 %v1619
        %v1638 = vpack.c.b16 %v1623, %v1622
        %v1639 = vpack.c.b16 %v1625, %v1624
        %v1640 = vpack.c.b16 %v1627, %v1626
        %v1641 = vpack.c.b16 %v1629, %v1628
        %v1642 = vpack.c.b16 %v1631, %v1630
        %v1643 = vpack.c.b16 %v1633, %v1632
        %v1644 = vpack.c.b16 %v1635, %v1634
        %v1645 = vpack.c.b16 %v1637, %v1636
        %v1647 = vsel %vm462, %v1638, 0
        %v1650 = vsel %vm462, %v1639, 0
        %v1653 = vsel %vm462, %v1640, 0
        %v1656 = vsel %vm462, %v1641, 0
        %v1659 = vsel %vm462, %v1642, 0
        %v1662 = vsel %vm462, %v1643, 0
        %v1665 = vsel %vm462, %v1644, 0
        %v1668 = vsel %vm462, %v1645, 0
        %v1671 = vand.u32 %v1621, %v490
        %1673 = vmatprep.subr.bf16.mxu0 0
        %1674 = vmatpush1.bf16.msra.mxu0 %v1671
        %1675 = vmatprep.subr.bf16.mxu0 0
        %1676 = vmatpush1.bf16.msra.mxu0 0
        %1677 = vmatprep.subr.bf16.mxu0 0
        %1678 = vmatpush1.bf16.msra.mxu0 0
        %1679 = vmatprep.subr.bf16.mxu0 0
        %1680 = vmatpush1.bf16.msra.mxu0 0
        %1681 = vmatprep.subr.bf16.mxu0 0
        %1682 = vmatpush1.bf16.msra.mxu0 0
        %1683 = vmatprep.subr.bf16.mxu0 0
        %1684 = vmatpush1.bf16.msra.mxu0 0
        %1685 = vmatprep.subr.bf16.mxu0 0
        %1686 = vmatpush1.bf16.msra.mxu0 0
        %1687 = vmatprep.subr.bf16.mxu0 0
        %1688 = vmatpush1.bf16.msra.mxu0 0
        %1689 = vmatprep.subr.bf16.mxu0 0
        %1690 = vmatpush1.bf16.msra.mxu0 0
        %1691 = vmatprep.subr.bf16.mxu0 0
        %1692 = vmatpush1.bf16.msra.mxu0 0
        %1693 = vmatprep.subr.bf16.mxu0 0
        %1694 = vmatpush1.bf16.msra.mxu0 0
        %1695 = vmatprep.subr.bf16.mxu0 0
        %1696 = vmatpush1.bf16.msra.mxu0 0
        %1697 = vmatprep.subr.bf16.mxu0 0
        %1698 = vmatpush1.bf16.msra.mxu0 0
        %1699 = vmatprep.subr.bf16.mxu0 0
        %1700 = vmatpush1.bf16.msra.mxu0 0
        %1701 = vmatprep.subr.bf16.mxu0 0
        %1702 = vmatpush1.bf16.msra.mxu0 0
        %1703 = vmatprep.subr.bf16.mxu0 0
        %1704 = vmatpush1.bf16.msra.mxu0 0
        %1705 = vmatprep.mubr.bf16.mxu0 0
        %1706 = vmatmul.mubr.bf16.gmra.mrb[0].mxu0 %v1647
        %v1707 = vpop.f32.mrb[0].mxu0
        %v1708 = vadd.f32 0.0, %v1707
        %v1709 = vpop.f32.mrb[0].mxu0
        %v1710 = vpop.f32.mrb[0].mxu0
        %v1711 = vadd.f32 0.0, %v1710
        %v1712 = vpop.f32.mrb[0].mxu0
        %1713 = vmatprep.mubr.bf16.mxu0 0
        %1714 = vmatmul.mubr.bf16.gmra.mrb[0].mxu0 %v1650
        %v1715 = vpop.f32.mrb[0].mxu0
        %v1716 = vadd.f32 0.0, %v1715
        %v1717 = vpop.f32.mrb[0].mxu0
        %v1718 = vpop.f32.mrb[0].mxu0
        %v1719 = vadd.f32 0.0, %v1718
        %v1720 = vpop.f32.mrb[0].mxu0
        %1721 = vmatprep.mubr.bf16.mxu0 0
        %1722 = vmatmul.mubr.bf16.gmra.mrb[0].mxu0 %v1653
        %v1723 = vpop.f32.mrb[0].mxu0
        %v1724 = vadd.f32 0.0, %v1723
        %v1725 = vpop.f32.mrb[0].mxu0
        %v1726 = vpop.f32.mrb[0].mxu0
        %v1727 = vadd.f32 0.0, %v1726
        %v1728 = vpop.f32.mrb[0].mxu0
        %1729 = vmatprep.mubr.bf16.mxu0 0
        %1730 = vmatmul.mubr.bf16.gmra.mrb[0].mxu0 %v1656
        %v1731 = vpop.f32.mrb[0].mxu0
        %v1732 = vadd.f32 0.0, %v1731
        %v1733 = vpop.f32.mrb[0].mxu0
        %v1734 = vpop.f32.mrb[0].mxu0
        %v1735 = vadd.f32 0.0, %v1734
        %v1736 = vpop.f32.mrb[0].mxu0
        %1737 = vmatprep.mubr.bf16.mxu0 0
        %1738 = vmatmul.mubr.bf16.gmra.mrb[0].mxu0 %v1659
        %v1739 = vpop.f32.mrb[0].mxu0
        %v1740 = vadd.f32 0.0, %v1739
        %v1741 = vpop.f32.mrb[0].mxu0
        %v1742 = vpop.f32.mrb[0].mxu0
        %v1743 = vadd.f32 0.0, %v1742
        %v1744 = vpop.f32.mrb[0].mxu0
        %1745 = vmatprep.mubr.bf16.mxu0 0
        %1746 = vmatmul.mubr.bf16.gmra.mrb[0].mxu0 %v1662
        %v1747 = vpop.f32.mrb[0].mxu0
        %v1748 = vadd.f32 0.0, %v1747
        %v1749 = vpop.f32.mrb[0].mxu0
        %v1750 = vpop.f32.mrb[0].mxu0
        %v1751 = vadd.f32 0.0, %v1750
        %v1752 = vpop.f32.mrb[0].mxu0
        %1753 = vmatprep.mubr.bf16.mxu0 0
        %1754 = vmatmul.mubr.bf16.gmra.mrb[0].mxu0 %v1665
        %v1755 = vpop.f32.mrb[0].mxu0
        %v1756 = vadd.f32 0.0, %v1755
        %v1757 = vpop.f32.mrb[0].mxu0
        %v1758 = vpop.f32.mrb[0].mxu0
        %v1759 = vadd.f32 0.0, %v1758
        %v1760 = vpop.f32.mrb[0].mxu0
        %1761 = vmatprep.mubr.bf16.mxu0 0
        %1762 = vmatmul.mubr.bf16.gmra.mrb[0].mxu0 %v1668
        %v1763 = vpop.f32.mrb[0].mxu0
        %v1764 = vadd.f32 0.0, %v1763
        %v1765 = vpop.f32.mrb[0].mxu0
        %v1766 = vpop.f32.mrb[0].mxu0
        %v1767 = vadd.f32 0.0, %v1766
        %v1768 = vpop.f32.mrb[0].mxu0
        %1769 = vdwg.mxu0
        %v1770 = vadd.f32 %v1540, %v1708
        %v1771 = vadd.f32 %v1541, %v1711
        %v1772 = vadd.f32 %v1542, %v1716
        %v1773 = vadd.f32 %v1543, %v1719
        %v1774 = vadd.f32 %v1544, %v1724
        %v1775 = vadd.f32 %v1545, %v1727
        %v1776 = vadd.f32 %v1546, %v1732
        %v1777 = vadd.f32 %v1547, %v1735
        %v1778 = vadd.f32 %v1548, %v1740
        %v1779 = vadd.f32 %v1549, %v1743
        %v1780 = vadd.f32 %v1550, %v1748
        %v1781 = vadd.f32 %v1551, %v1751
        %v1782 = vadd.f32 %v1552, %v1756
        %v1783 = vadd.f32 %v1553, %v1759
        %v1784 = vadd.f32 %v1554, %v1764
        %v1785 = vadd.f32 %v1555, %v1767
        %s1786 = sadd.s32 %s212, 2
        %s1787 = smul.u32 %s1786, 3
        %s1788 = smul.addr %s1787, 4
        %s1789 = scalar_lea.vmem %s209, %s1788
        %v1790 = vld [vmem:[%s1789] sm:$0xf]
        %v1791 = vld [vmem:[%s1789 + $0x4] sm:$0xf]
        %v1792 = vld [vmem:[%s1789 + $0x8] sm:$0x1]
        %v1793 = vld [vmem:[%s1789 + $0xc] sm:$0xf]
        %v1794 = vld [vmem:[%s1789 + $0x10] sm:$0xf]
        %v1795 = vld [vmem:[%s1789 + $0x14] sm:$0x1]
        %v1796 = vld [vmem:[%s1789 + $0x18] sm:$0xf]
        %v1797 = vld [vmem:[%s1789 + $0x1c] sm:$0xf]
        %v1798 = vld [vmem:[%s1789 + $0x20] sm:$0x1]
        %v1799 = vld [vmem:[%s1789 + $0x24] sm:$0xf]
        %v1800 = vld [vmem:[%s1789 + $0x28] sm:$0xf]
        %v1801 = vld [vmem:[%s1789 + $0x2c] sm:$0x1]
        %v1802 = vld [vmem:[%s1789 + $0x30] sm:$0xf]
        %v1803 = vld [vmem:[%s1789 + $0x34] sm:$0xf]
        %v1804 = vld [vmem:[%s1789 + $0x38] sm:$0x1]
        %v1805 = vld [vmem:[%s1789 + $0x3c] sm:$0xf]
        %v1806 = vld [vmem:[%s1789 + $0x40] sm:$0xf]
        %v1807 = vld [vmem:[%s1789 + $0x44] sm:$0x1]
        %v1808 = vld [vmem:[%s1789 + $0x48] sm:$0xf]
        %v1809 = vld [vmem:[%s1789 + $0x4c] sm:$0xf]
        %v1810 = vld [vmem:[%s1789 + $0x50] sm:$0x1]
        %v1811 = vld [vmem:[%s1789 + $0x54] sm:$0xf]
        %v1812 = vld [vmem:[%s1789 + $0x58] sm:$0xf]
        %v1813 = vld [vmem:[%s1789 + $0x5c] sm:$0x1]
        %s1814 = scalar_lea.vmem %s1, 24
        %v1815 = vld [vmem:[%s1814] sm:$0x7]
        %v1832 = vunpack.c.l.b16 %v1790
        %v1833 = vunpack.c.l.b16 %v1791
        %v1834 = vunpack.c.l.b16 %v1793
        %v1835 = vunpack.c.l.b16 %v1794
        %v1836 = vunpack.c.l.b16 %v1796
        %v1837 = vunpack.c.l.b16 %v1797
        %v1838 = vunpack.c.l.b16 %v1799
        %v1839 = vunpack.c.l.b16 %v1800
        %v1840 = vunpack.c.l.b16 %v1802
        %v1841 = vunpack.c.l.b16 %v1803
        %v1842 = vunpack.c.l.b16 %v1805
        %v1843 = vunpack.c.l.b16 %v1806
        %v1844 = vunpack.c.l.b16 %v1808
        %v1845 = vunpack.c.l.b16 %v1809
        %v1846 = vunpack.c.l.b16 %v1811
        %v1847 = vunpack.c.l.b16 %v1812
        %v1848 = vpack.c.b16 %v1833, %v1832
        %v1849 = vpack.c.b16 %v1835, %v1834
        %v1850 = vpack.c.b16 %v1837, %v1836
        %v1851 = vpack.c.b16 %v1839, %v1838
        %v1852 = vpack.c.b16 %v1841, %v1840
        %v1853 = vpack.c.b16 %v1843, %v1842
        %v1854 = vpack.c.b16 %v1845, %v1844
        %v1855 = vpack.c.b16 %v1847, %v1846
        %v1857 = vsel %vm462, %v1848, 0
        %v1860 = vsel %vm462, %v1849, 0
        %v1863 = vsel %vm462, %v1850, 0
        %v1866 = vsel %vm462, %v1851, 0
        %v1869 = vsel %vm462, %v1852, 0
        %v1872 = vsel %vm462, %v1853, 0
        %v1875 = vsel %vm462, %v1854, 0
        %v1878 = vsel %vm462, %v1855, 0
        %v1881 = vand.u32 %v1815, %v490
        %1883 = vmatprep.subr.bf16.mxu0 0
        %1884 = vmatpush1.bf16.msra.mxu0 %v1881
        %1885 = vmatprep.subr.bf16.mxu0 0
        %1886 = vmatpush1.bf16.msra.mxu0 0
        %1887 = vmatprep.subr.bf16.mxu0 0
        %1888 = vmatpush1.bf16.msra.mxu0 0
        %1889 = vmatprep.subr.bf16.mxu0 0
        %1890 = vmatpush1.bf16.msra.mxu0 0
        %1891 = vmatprep.subr.bf16.mxu0 0
        %1892 = vmatpush1.bf16.msra.mxu0 0
        %1893 = vmatprep.subr.bf16.mxu0 0
        %1894 = vmatpush1.bf16.msra.mxu0 0
        %1895 = vmatprep.subr.bf16.mxu0 0
        %1896 = vmatpush1.bf16.msra.mxu0 0
        %1897 = vmatprep.subr.bf16.mxu0 0
        %1898 = vmatpush1.bf16.msra.mxu0 0
        %1899 = vmatprep.subr.bf16.mxu0 0
        %1900 = vmatpush1.bf16.msra.mxu0 0
        %1901 = vmatprep.subr.bf16.mxu0 0
        %1902 = vmatpush1.bf16.msra.mxu0 0
        %1903 = vmatprep.subr.bf16.mxu0 0
        %1904 = vmatpush1.bf16.msra.mxu0 0
        %1905 = vmatprep.subr.bf16.mxu0 0
        %1906 = vmatpush1.bf16.msra.mxu0 0
        %1907 = vmatprep.subr.bf16.mxu0 0
        %1908 = vmatpush1.bf16.msra.mxu0 0
        %1909 = vmatprep.subr.bf16.mxu0 0
        %1910 = vmatpush1.bf16.msra.mxu0 0
        %1911 = vmatprep.subr.bf16.mxu0 0
        %1912 = vmatpush1.bf16.msra.mxu0 0
        %1913 = vmatprep.subr.bf16.mxu0 0
        %1914 = vmatpush1.bf16.msra.mxu0 0
        %1915 = vmatprep.mubr.bf16.mxu0 0
        %1916 = vmatmul.mubr.bf16.gmra.mrb[0].mxu0 %v1857
        %v1917 = vpop.f32.mrb[0].mxu0
        %v1918 = vadd.f32 0.0, %v1917
        %v1919 = vpop.f32.mrb[0].mxu0
        %v1920 = vpop.f32.mrb[0].mxu0
        %v1921 = vadd.f32 0.0, %v1920
        %v1922 = vpop.f32.mrb[0].mxu0
        %1923 = vmatprep.mubr.bf16.mxu0 0
        %1924 = vmatmul.mubr.bf16.gmra.mrb[0].mxu0 %v1860
        %v1925 = vpop.f32.mrb[0].mxu0
        %v1926 = vadd.f32 0.0, %v1925
        %v1927 = vpop.f32.mrb[0].mxu0
        %v1928 = vpop.f32.mrb[0].mxu0
        %v1929 = vadd.f32 0.0, %v1928
        %v1930 = vpop.f32.mrb[0].mxu0
        %1931 = vmatprep.mubr.bf16.mxu0 0
        %1932 = vmatmul.mubr.bf16.gmra.mrb[0].mxu0 %v1863
        %v1933 = vpop.f32.mrb[0].mxu0
        %v1934 = vadd.f32 0.0, %v1933
        %v1935 = vpop.f32.mrb[0].mxu0
        %v1936 = vpop.f32.mrb[0].mxu0
        %v1937 = vadd.f32 0.0, %v1936
        %v1938 = vpop.f32.mrb[0].mxu0
        %1939 = vmatprep.mubr.bf16.mxu0 0
        %1940 = vmatmul.mubr.bf16.gmra.mrb[0].mxu0 %v1866
        %v1941 = vpop.f32.mrb[0].mxu0
        %v1942 = vadd.f32 0.0, %v1941
        %v1943 = vpop.f32.mrb[0].mxu0
        %v1944 = vpop.f32.mrb[0].mxu0
        %v1945 = vadd.f32 0.0, %v1944
        %v1946 = vpop.f32.mrb[0].mxu0
        %1947 = vmatprep.mubr.bf16.mxu0 0
        %1948 = vmatmul.mubr.bf16.gmra.mrb[0].mxu0 %v1869
        %v1949 = vpop.f32.mrb[0].mxu0
        %v1950 = vadd.f32 0.0, %v1949
        %v1951 = vpop.f32.mrb[0].mxu0
        %v1952 = vpop.f32.mrb[0].mxu0
        %v1953 = vadd.f32 0.0, %v1952
        %v1954 = vpop.f32.mrb[0].mxu0
        %1955 = vmatprep.mubr.bf16.mxu0 0
        %1956 = vmatmul.mubr.bf16.gmra.mrb[0].mxu0 %v1872
        %v1957 = vpop.f32.mrb[0].mxu0
        %v1958 = vadd.f32 0.0, %v1957
        %v1959 = vpop.f32.mrb[0].mxu0
        %v1960 = vpop.f32.mrb[0].mxu0
        %v1961 = vadd.f32 0.0, %v1960
        %v1962 = vpop.f32.mrb[0].mxu0
        %1963 = vmatprep.mubr.bf16.mxu0 0
        %1964 = vmatmul.mubr.bf16.gmra.mrb[0].mxu0 %v1875
        %v1965 = vpop.f32.mrb[0].mxu0
        %v1966 = vadd.f32 0.0, %v1965
        %v1967 = vpop.f32.mrb[0].mxu0
        %v1968 = vpop.f32.mrb[0].mxu0
        %v1969 = vadd.f32 0.0, %v1968
        %v1970 = vpop.f32.mrb[0].mxu0
        %1971 = vmatprep.mubr.bf16.mxu0 0
        %1972 = vmatmul.mubr.bf16.gmra.mrb[0].mxu0 %v1878
        %v1973 = vpop.f32.mrb[0].mxu0
        %v1974 = vadd.f32 0.0, %v1973
        %v1975 = vpop.f32.mrb[0].mxu0
        %v1976 = vpop.f32.mrb[0].mxu0
        %v1977 = vadd.f32 0.0, %v1976
        %v1978 = vpop.f32.mrb[0].mxu0
        %1979 = vdwg.mxu0
        %v1980 = vadd.f32 %v1770, %v1918
        %v1981 = vadd.f32 %v1771, %v1921
        %v1982 = vadd.f32 %v1772, %v1926
        %v1983 = vadd.f32 %v1773, %v1929
        %v1984 = vadd.f32 %v1774, %v1934
        %v1985 = vadd.f32 %v1775, %v1937
        %v1986 = vadd.f32 %v1776, %v1942
        %v1987 = vadd.f32 %v1777, %v1945
        %v1988 = vadd.f32 %v1778, %v1950
        %v1989 = vadd.f32 %v1779, %v1953
        %v1990 = vadd.f32 %v1780, %v1958
        %v1991 = vadd.f32 %v1781, %v1961
        %v1992 = vadd.f32 %v1782, %v1966
        %v1993 = vadd.f32 %v1783, %v1969
        %v1994 = vadd.f32 %v1784, %v1974
        %v1995 = vadd.f32 %v1785, %v1977
        %v1997 = vshrl.u32 %v1790, 16
        %v1999 = vrot.slane %v1997, 4
        %v2000 = vshll.u32 %v1790, 16
        %v2002 = vrot.slane %v2000, 5
        %v2003 = vor.u32 %v1999, %v2002
        %v2004 = vrot.slane %v2003, 4
        %v2006 = vshll.u32 %v1791, 16
        %v2008 = vrot.slane %v2006, 5
        %v2009 = vsel %vm243, %v2004, %v2008
        %v2010 = vshrl.u32 %v1791, 16
        %v2012 = vrot.slane %v2010, 4
        %v2013 = vor.u32 %v2012, %v2008
        %v2014 = vrot.slane %v2013, 4
        %v2016 = vshll.u32 %v1792, 16
        %v2018 = vrot.slane %v2016, 5
        %v2019 = vsel %vm243, %v2014, %v2018
        %v2021 = vshrl.u32 %v1793, 16
        %v2023 = vrot.slane %v2021, 4
        %v2024 = vshll.u32 %v1793, 16
        %v2026 = vrot.slane %v2024, 5
        %v2027 = vor.u32 %v2023, %v2026
        %v2028 = vrot.slane %v2027, 4
        %v2030 = vshll.u32 %v1794, 16
        %v2032 = vrot.slane %v2030, 5
        %v2033 = vsel %vm243, %v2028, %v2032
        %v2034 = vshrl.u32 %v1794, 16
        %v2036 = vrot.slane %v2034, 4
        %v2037 = vor.u32 %v2036, %v2032
        %v2038 = vrot.slane %v2037, 4
        %v2040 = vshll.u32 %v1795, 16
        %v2042 = vrot.slane %v2040, 5
        %v2043 = vsel %vm243, %v2038, %v2042
        %v2045 = vshrl.u32 %v1796, 16
        %v2047 = vrot.slane %v2045, 4
        %v2048 = vshll.u32 %v1796, 16
        %v2050 = vrot.slane %v2048, 5
        %v2051 = vor.u32 %v2047, %v2050
        %v2052 = vrot.slane %v2051, 4
        %v2054 = vshll.u32 %v1797, 16
        %v2056 = vrot.slane %v2054, 5
        %v2057 = vsel %vm243, %v2052, %v2056
        %v2058 = vshrl.u32 %v1797, 16
        %v2060 = vrot.slane %v2058, 4
        %v2061 = vor.u32 %v2060, %v2056
        %v2062 = vrot.slane %v2061, 4
        %v2064 = vshll.u32 %v1798, 16
        %v2066 = vrot.slane %v2064, 5
        %v2067 = vsel %vm243, %v2062, %v2066
        %v2069 = vshrl.u32 %v1799, 16
        %v2071 = vrot.slane %v2069, 4
        %v2072 = vshll.u32 %v1799, 16
        %v2074 = vrot.slane %v2072, 5
        %v2075 = vor.u32 %v2071, %v2074
        %v2076 = vrot.slane %v2075, 4
        %v2078 = vshll.u32 %v1800, 16
        %v2080 = vrot.slane %v2078, 5
        %v2081 = vsel %vm243, %v2076, %v2080
        %v2082 = vshrl.u32 %v1800, 16
        %v2084 = vrot.slane %v2082, 4
        %v2085 = vor.u32 %v2084, %v2080
        %v2086 = vrot.slane %v2085, 4
        %v2088 = vshll.u32 %v1801, 16
        %v2090 = vrot.slane %v2088, 5
        %v2091 = vsel %vm243, %v2086, %v2090
        %v2093 = vshrl.u32 %v1802, 16
        %v2095 = vrot.slane %v2093, 4
        %v2096 = vshll.u32 %v1802, 16
        %v2098 = vrot.slane %v2096, 5
        %v2099 = vor.u32 %v2095, %v2098
        %v2100 = vrot.slane %v2099, 4
        %v2102 = vshll.u32 %v1803, 16
        %v2104 = vrot.slane %v2102, 5
        %v2105 = vsel %vm243, %v2100, %v2104
        %v2106 = vshrl.u32 %v1803, 16
        %v2108 = vrot.slane %v2106, 4
        %v2109 = vor.u32 %v2108, %v2104
        %v2110 = vrot.slane %v2109, 4
        %v2112 = vshll.u32 %v1804, 16
        %v2114 = vrot.slane %v2112, 5
        %v2115 = vsel %vm243, %v2110, %v2114
        %v2117 = vshrl.u32 %v1805, 16
        %v2119 = vrot.slane %v2117, 4
        %v2120 = vshll.u32 %v1805, 16
        %v2122 = vrot.slane %v2120, 5
        %v2123 = vor.u32 %v2119, %v2122
        %v2124 = vrot.slane %v2123, 4
        %v2126 = vshll.u32 %v1806, 16
        %v2128 = vrot.slane %v2126, 5
        %v2129 = vsel %vm243, %v2124, %v2128
        %v2130 = vshrl.u32 %v1806, 16
        %v2132 = vrot.slane %v2130, 4
        %v2133 = vor.u32 %v2132, %v2128
        %v2134 = vrot.slane %v2133, 4
        %v2136 = vshll.u32 %v1807, 16
        %v2138 = vrot.slane %v2136, 5
        %v2139 = vsel %vm243, %v2134, %v2138
        %v2141 = vshrl.u32 %v1808, 16
        %v2143 = vrot.slane %v2141, 4
        %v2144 = vshll.u32 %v1808, 16
        %v2146 = vrot.slane %v2144, 5
        %v2147 = vor.u32 %v2143, %v2146
        %v2148 = vrot.slane %v2147, 4
        %v2150 = vshll.u32 %v1809, 16
        %v2152 = vrot.slane %v2150, 5
        %v2153 = vsel %vm243, %v2148, %v2152
        %v2154 = vshrl.u32 %v1809, 16
        %v2156 = vrot.slane %v2154, 4
        %v2157 = vor.u32 %v2156, %v2152
        %v2158 = vrot.slane %v2157, 4
        %v2160 = vshll.u32 %v1810, 16
        %v2162 = vrot.slane %v2160, 5
        %v2163 = vsel %vm243, %v2158, %v2162
        %v2165 = vshrl.u32 %v1811, 16
        %v2167 = vrot.slane %v2165, 4
        %v2168 = vshll.u32 %v1811, 16
        %v2170 = vrot.slane %v2168, 5
        %v2171 = vor.u32 %v2167, %v2170
        %v2172 = vrot.slane %v2171, 4
        %v2174 = vshll.u32 %v1812, 16
        %v2176 = vrot.slane %v2174, 5
        %v2177 = vsel %vm243, %v2172, %v2176
        %v2178 = vshrl.u32 %v1812, 16
        %v2180 = vrot.slane %v2178, 4
        %v2181 = vor.u32 %v2180, %v2176
        %v2182 = vrot.slane %v2181, 4
        %v2184 = vshll.u32 %v1813, 16
        %v2186 = vrot.slane %v2184, 5
        %v2187 = vsel %vm243, %v2182, %v2186
        %s2188 = scalar_lea.vmem %s1, 28
        %v2189 = vld [vmem:[%s2188] sm:$0x7]
        %v2190 = vunpack.c.l.b16 %v2009
        %v2191 = vunpack.c.l.b16 %v2019
        %v2192 = vunpack.c.l.b16 %v2033
        %v2193 = vunpack.c.l.b16 %v2043
        %v2194 = vunpack.c.l.b16 %v2057
        %v2195 = vunpack.c.l.b16 %v2067
        %v2196 = vunpack.c.l.b16 %v2081
        %v2197 = vunpack.c.l.b16 %v2091
        %v2198 = vunpack.c.l.b16 %v2105
        %v2199 = vunpack.c.l.b16 %v2115
        %v2200 = vunpack.c.l.b16 %v2129
        %v2201 = vunpack.c.l.b16 %v2139
        %v2202 = vunpack.c.l.b16 %v2153
        %v2203 = vunpack.c.l.b16 %v2163
        %v2204 = vunpack.c.l.b16 %v2177
        %v2205 = vunpack.c.l.b16 %v2187
        %v2206 = vpack.c.b16 %v2191, %v2190
        %v2207 = vpack.c.b16 %v2193, %v2192
        %v2208 = vpack.c.b16 %v2195, %v2194
        %v2209 = vpack.c.b16 %v2197, %v2196
        %v2210 = vpack.c.b16 %v2199, %v2198
        %v2211 = vpack.c.b16 %v2201, %v2200
        %v2212 = vpack.c.b16 %v2203, %v2202
        %v2213 = vpack.c.b16 %v2205, %v2204
        %v2215 = vsel %vm462, %v2206, 0
        %v2218 = vsel %vm462, %v2207, 0
        %v2221 = vsel %vm462, %v2208, 0
        %v2224 = vsel %vm462, %v2209, 0
        %v2227 = vsel %vm462, %v2210, 0
        %v2230 = vsel %vm462, %v2211, 0
        %v2233 = vsel %vm462, %v2212, 0
        %v2236 = vsel %vm462, %v2213, 0
        %v2239 = vand.u32 %v2189, %v490
        %2241 = vmatprep.subr.bf16.mxu0 0
        %2242 = vmatpush1.bf16.msra.mxu0 %v2239
        %2243 = vmatprep.subr.bf16.mxu0 0
        %2244 = vmatpush1.bf16.msra.mxu0 0
        %2245 = vmatprep.subr.bf16.mxu0 0
        %2246 = vmatpush1.bf16.msra.mxu0 0
        %2247 = vmatprep.subr.bf16.mxu0 0
        %2248 = vmatpush1.bf16.msra.mxu0 0
        %2249 = vmatprep.subr.bf16.mxu0 0
        %2250 = vmatpush1.bf16.msra.mxu0 0
        %2251 = vmatprep.subr.bf16.mxu0 0
        %2252 = vmatpush1.bf16.msra.mxu0 0
        %2253 = vmatprep.subr.bf16.mxu0 0
        %2254 = vmatpush1.bf16.msra.mxu0 0
        %2255 = vmatprep.subr.bf16.mxu0 0
        %2256 = vmatpush1.bf16.msra.mxu0 0
        %2257 = vmatprep.subr.bf16.mxu0 0
        %2258 = vmatpush1.bf16.msra.mxu0 0
        %2259 = vmatprep.subr.bf16.mxu0 0
        %2260 = vmatpush1.bf16.msra.mxu0 0
        %2261 = vmatprep.subr.bf16.mxu0 0
        %2262 = vmatpush1.bf16.msra.mxu0 0
        %2263 = vmatprep.subr.bf16.mxu0 0
        %2264 = vmatpush1.bf16.msra.mxu0 0
        %2265 = vmatprep.subr.bf16.mxu0 0
        %2266 = vmatpush1.bf16.msra.mxu0 0
        %2267 = vmatprep.subr.bf16.mxu0 0
        %2268 = vmatpush1.bf16.msra.mxu0 0
        %2269 = vmatprep.subr.bf16.mxu0 0
        %2270 = vmatpush1.bf16.msra.mxu0 0
        %2271 = vmatprep.subr.bf16.mxu0 0
        %2272 = vmatpush1.bf16.msra.mxu0 0
        %2273 = vmatprep.mubr.bf16.mxu0 0
        %2274 = vmatmul.mubr.bf16.gmra.mrb[0].mxu0 %v2215
        %v2275 = vpop.f32.mrb[0].mxu0
        %v2276 = vadd.f32 0.0, %v2275
        %v2277 = vpop.f32.mrb[0].mxu0
        %v2278 = vpop.f32.mrb[0].mxu0
        %v2279 = vadd.f32 0.0, %v2278
        %v2280 = vpop.f32.mrb[0].mxu0
        %2281 = vmatprep.mubr.bf16.mxu0 0
        %2282 = vmatmul.mubr.bf16.gmra.mrb[0].mxu0 %v2218
        %v2283 = vpop.f32.mrb[0].mxu0
        %v2284 = vadd.f32 0.0, %v2283
        %v2285 = vpop.f32.mrb[0].mxu0
        %v2286 = vpop.f32.mrb[0].mxu0
        %v2287 = vadd.f32 0.0, %v2286
        %v2288 = vpop.f32.mrb[0].mxu0
        %2289 = vmatprep.mubr.bf16.mxu0 0
        %2290 = vmatmul.mubr.bf16.gmra.mrb[0].mxu0 %v2221
        %v2291 = vpop.f32.mrb[0].mxu0
        %v2292 = vadd.f32 0.0, %v2291
        %v2293 = vpop.f32.mrb[0].mxu0
        %v2294 = vpop.f32.mrb[0].mxu0
        %v2295 = vadd.f32 0.0, %v2294
        %v2296 = vpop.f32.mrb[0].mxu0
        %2297 = vmatprep.mubr.bf16.mxu0 0
        %2298 = vmatmul.mubr.bf16.gmra.mrb[0].mxu0 %v2224
        %v2299 = vpop.f32.mrb[0].mxu0
        %v2300 = vadd.f32 0.0, %v2299
        %v2301 = vpop.f32.mrb[0].mxu0
        %v2302 = vpop.f32.mrb[0].mxu0
        %v2303 = vadd.f32 0.0, %v2302
        %v2304 = vpop.f32.mrb[0].mxu0
        %2305 = vmatprep.mubr.bf16.mxu0 0
        %2306 = vmatmul.mubr.bf16.gmra.mrb[0].mxu0 %v2227
        %v2307 = vpop.f32.mrb[0].mxu0
        %v2308 = vadd.f32 0.0, %v2307
        %v2309 = vpop.f32.mrb[0].mxu0
        %v2310 = vpop.f32.mrb[0].mxu0
        %v2311 = vadd.f32 0.0, %v2310
        %v2312 = vpop.f32.mrb[0].mxu0
        %2313 = vmatprep.mubr.bf16.mxu0 0
        %2314 = vmatmul.mubr.bf16.gmra.mrb[0].mxu0 %v2230
        %v2315 = vpop.f32.mrb[0].mxu0
        %v2316 = vadd.f32 0.0, %v2315
        %v2317 = vpop.f32.mrb[0].mxu0
        %v2318 = vpop.f32.mrb[0].mxu0
        %v2319 = vadd.f32 0.0, %v2318
        %v2320 = vpop.f32.mrb[0].mxu0
        %2321 = vmatprep.mubr.bf16.mxu0 0
        %2322 = vmatmul.mubr.bf16.gmra.mrb[0].mxu0 %v2233
        %v2323 = vpop.f32.mrb[0].mxu0
        %v2324 = vadd.f32 0.0, %v2323
        %v2325 = vpop.f32.mrb[0].mxu0
        %v2326 = vpop.f32.mrb[0].mxu0
        %v2327 = vadd.f32 0.0, %v2326
        %v2328 = vpop.f32.mrb[0].mxu0
        %2329 = vmatprep.mubr.bf16.mxu0 0
        %2330 = vmatmul.mubr.bf16.gmra.mrb[0].mxu0 %v2236
        %v2331 = vpop.f32.mrb[0].mxu0
        %v2332 = vadd.f32 0.0, %v2331
        %v2333 = vpop.f32.mrb[0].mxu0
        %v2334 = vpop.f32.mrb[0].mxu0
        %v2335 = vadd.f32 0.0, %v2334
        %v2336 = vpop.f32.mrb[0].mxu0
        %2337 = vdwg.mxu0
        %v2338 = vadd.f32 %v1980, %v2276
        %v2339 = vadd.f32 %v1981, %v2279
        %v2340 = vadd.f32 %v1982, %v2284
        %v2341 = vadd.f32 %v1983, %v2287
        %v2342 = vadd.f32 %v1984, %v2292
        %v2343 = vadd.f32 %v1985, %v2295
        %v2344 = vadd.f32 %v1986, %v2300
        %v2345 = vadd.f32 %v1987, %v2303
        %v2346 = vadd.f32 %v1988, %v2308
        %v2347 = vadd.f32 %v1989, %v2311
        %v2348 = vadd.f32 %v1990, %v2316
        %v2349 = vadd.f32 %v1991, %v2319
        %v2350 = vadd.f32 %v1992, %v2324
        %v2351 = vadd.f32 %v1993, %v2327
        %v2352 = vadd.f32 %v1994, %v2332
        %v2353 = vadd.f32 %v1995, %v2335
        %v2362 = vrot.slane %v1790, 5
        %v2363 = vrot.slane %v2362, 4
        %v2364 = vrot.slane %v1791, 5
        %v2365 = vsel %vm765, %v2363, %v2364
        %v2366 = vrot.slane %v2364, 4
        %v2367 = vrot.slane %v1792, 5
        %v2368 = vsel %vm765, %v2366, %v2367
        %v2369 = vrot.slane %v1793, 5
        %v2370 = vrot.slane %v2369, 4
        %v2371 = vrot.slane %v1794, 5
        %v2372 = vsel %vm765, %v2370, %v2371
        %v2373 = vrot.slane %v2371, 4
        %v2374 = vrot.slane %v1795, 5
        %v2375 = vsel %vm765, %v2373, %v2374
        %v2376 = vrot.slane %v1796, 5
        %v2377 = vrot.slane %v2376, 4
        %v2378 = vrot.slane %v1797, 5
        %v2379 = vsel %vm765, %v2377, %v2378
        %v2380 = vrot.slane %v2378, 4
        %v2381 = vrot.slane %v1798, 5
        %v2382 = vsel %vm765, %v2380, %v2381
        %v2383 = vrot.slane %v1799, 5
        %v2384 = vrot.slane %v2383, 4
        %v2385 = vrot.slane %v1800, 5
        %v2386 = vsel %vm765, %v2384, %v2385
        %v2387 = vrot.slane %v2385, 4
        %v2388 = vrot.slane %v1801, 5
        %v2389 = vsel %vm765, %v2387, %v2388
        %v2390 = vrot.slane %v1802, 5
        %v2391 = vrot.slane %v2390, 4
        %v2392 = vrot.slane %v1803, 5
        %v2393 = vsel %vm765, %v2391, %v2392
        %v2394 = vrot.slane %v2392, 4
        %v2395 = vrot.slane %v1804, 5
        %v2396 = vsel %vm765, %v2394, %v2395
        %v2397 = vrot.slane %v1805, 5
        %v2398 = vrot.slane %v2397, 4
        %v2399 = vrot.slane %v1806, 5
        %v2400 = vsel %vm765, %v2398, %v2399
        %v2401 = vrot.slane %v2399, 4
        %v2402 = vrot.slane %v1807, 5
        %v2403 = vsel %vm765, %v2401, %v2402
        %v2404 = vrot.slane %v1808, 5
        %v2405 = vrot.slane %v2404, 4
        %v2406 = vrot.slane %v1809, 5
        %v2407 = vsel %vm765, %v2405, %v2406
        %v2408 = vrot.slane %v2406, 4
        %v2409 = vrot.slane %v1810, 5
        %v2410 = vsel %vm765, %v2408, %v2409
        %v2411 = vrot.slane %v1811, 5
        %v2412 = vrot.slane %v2411, 4
        %v2413 = vrot.slane %v1812, 5
        %v2414 = vsel %vm765, %v2412, %v2413
        %v2415 = vrot.slane %v2413, 4
        %v2416 = vrot.slane %v1813, 5
        %v2417 = vsel %vm765, %v2415, %v2416
        %s2418 = scalar_lea.vmem %s1, 32
        %v2419 = vld [vmem:[%s2418] sm:$0x7]
        %v2420 = vunpack.c.l.b16 %v2365
        %v2421 = vunpack.c.l.b16 %v2368
        %v2422 = vunpack.c.l.b16 %v2372
        %v2423 = vunpack.c.l.b16 %v2375
        %v2424 = vunpack.c.l.b16 %v2379
        %v2425 = vunpack.c.l.b16 %v2382
        %v2426 = vunpack.c.l.b16 %v2386
        %v2427 = vunpack.c.l.b16 %v2389
        %v2428 = vunpack.c.l.b16 %v2393
        %v2429 = vunpack.c.l.b16 %v2396
        %v2430 = vunpack.c.l.b16 %v2400
        %v2431 = vunpack.c.l.b16 %v2403
        %v2432 = vunpack.c.l.b16 %v2407
        %v2433 = vunpack.c.l.b16 %v2410
        %v2434 = vunpack.c.l.b16 %v2414
        %v2435 = vunpack.c.l.b16 %v2417
        %v2436 = vpack.c.b16 %v2421, %v2420
        %v2437 = vpack.c.b16 %v2423, %v2422
        %v2438 = vpack.c.b16 %v2425, %v2424
        %v2439 = vpack.c.b16 %v2427, %v2426
        %v2440 = vpack.c.b16 %v2429, %v2428
        %v2441 = vpack.c.b16 %v2431, %v2430
        %v2442 = vpack.c.b16 %v2433, %v2432
        %v2443 = vpack.c.b16 %v2435, %v2434
        %v2445 = vsel %vm462, %v2436, 0
        %v2448 = vsel %vm462, %v2437, 0
        %v2451 = vsel %vm462, %v2438, 0
        %v2454 = vsel %vm462, %v2439, 0
        %v2457 = vsel %vm462, %v2440, 0
        %v2460 = vsel %vm462, %v2441, 0
        %v2463 = vsel %vm462, %v2442, 0
        %v2466 = vsel %vm462, %v2443, 0
        %v2469 = vand.u32 %v2419, %v490
        %2471 = vmatprep.subr.bf16.mxu0 0
        %2472 = vmatpush1.bf16.msra.mxu0 %v2469
        %2473 = vmatprep.subr.bf16.mxu0 0
        %2474 = vmatpush1.bf16.msra.mxu0 0
        %2475 = vmatprep.subr.bf16.mxu0 0
        %2476 = vmatpush1.bf16.msra.mxu0 0
        %2477 = vmatprep.subr.bf16.mxu0 0
        %2478 = vmatpush1.bf16.msra.mxu0 0
        %2479 = vmatprep.subr.bf16.mxu0 0
        %2480 = vmatpush1.bf16.msra.mxu0 0
        %2481 = vmatprep.subr.bf16.mxu0 0
        %2482 = vmatpush1.bf16.msra.mxu0 0
        %2483 = vmatprep.subr.bf16.mxu0 0
        %2484 = vmatpush1.bf16.msra.mxu0 0
        %2485 = vmatprep.subr.bf16.mxu0 0
        %2486 = vmatpush1.bf16.msra.mxu0 0
        %2487 = vmatprep.subr.bf16.mxu0 0
        %2488 = vmatpush1.bf16.msra.mxu0 0
        %2489 = vmatprep.subr.bf16.mxu0 0
        %2490 = vmatpush1.bf16.msra.mxu0 0
        %2491 = vmatprep.subr.bf16.mxu0 0
        %2492 = vmatpush1.bf16.msra.mxu0 0
        %2493 = vmatprep.subr.bf16.mxu0 0
        %2494 = vmatpush1.bf16.msra.mxu0 0
        %2495 = vmatprep.subr.bf16.mxu0 0
        %2496 = vmatpush1.bf16.msra.mxu0 0
        %2497 = vmatprep.subr.bf16.mxu0 0
        %2498 = vmatpush1.bf16.msra.mxu0 0
        %2499 = vmatprep.subr.bf16.mxu0 0
        %2500 = vmatpush1.bf16.msra.mxu0 0
        %2501 = vmatprep.subr.bf16.mxu0 0
        %2502 = vmatpush1.bf16.msra.mxu0 0
        %2503 = vmatprep.mubr.bf16.mxu0 0
        %2504 = vmatmul.mubr.bf16.gmra.mrb[0].mxu0 %v2445
        %v2505 = vpop.f32.mrb[0].mxu0
        %v2506 = vadd.f32 0.0, %v2505
        %v2507 = vpop.f32.mrb[0].mxu0
        %v2508 = vpop.f32.mrb[0].mxu0
        %v2509 = vadd.f32 0.0, %v2508
        %v2510 = vpop.f32.mrb[0].mxu0
        %2511 = vmatprep.mubr.bf16.mxu0 0
        %2512 = vmatmul.mubr.bf16.gmra.mrb[0].mxu0 %v2448
        %v2513 = vpop.f32.mrb[0].mxu0
        %v2514 = vadd.f32 0.0, %v2513
        %v2515 = vpop.f32.mrb[0].mxu0
        %v2516 = vpop.f32.mrb[0].mxu0
        %v2517 = vadd.f32 0.0, %v2516
        %v2518 = vpop.f32.mrb[0].mxu0
        %2519 = vmatprep.mubr.bf16.mxu0 0
        %2520 = vmatmul.mubr.bf16.gmra.mrb[0].mxu0 %v2451
        %v2521 = vpop.f32.mrb[0].mxu0
        %v2522 = vadd.f32 0.0, %v2521
        %v2523 = vpop.f32.mrb[0].mxu0
        %v2524 = vpop.f32.mrb[0].mxu0
        %v2525 = vadd.f32 0.0, %v2524
        %v2526 = vpop.f32.mrb[0].mxu0
        %2527 = vmatprep.mubr.bf16.mxu0 0
        %2528 = vmatmul.mubr.bf16.gmra.mrb[0].mxu0 %v2454
        %v2529 = vpop.f32.mrb[0].mxu0
        %v2530 = vadd.f32 0.0, %v2529
        %v2531 = vpop.f32.mrb[0].mxu0
        %v2532 = vpop.f32.mrb[0].mxu0
        %v2533 = vadd.f32 0.0, %v2532
        %v2534 = vpop.f32.mrb[0].mxu0
        %2535 = vmatprep.mubr.bf16.mxu0 0
        %2536 = vmatmul.mubr.bf16.gmra.mrb[0].mxu0 %v2457
        %v2537 = vpop.f32.mrb[0].mxu0
        %v2538 = vadd.f32 0.0, %v2537
        %v2539 = vpop.f32.mrb[0].mxu0
        %v2540 = vpop.f32.mrb[0].mxu0
        %v2541 = vadd.f32 0.0, %v2540
        %v2542 = vpop.f32.mrb[0].mxu0
        %2543 = vmatprep.mubr.bf16.mxu0 0
        %2544 = vmatmul.mubr.bf16.gmra.mrb[0].mxu0 %v2460
        %v2545 = vpop.f32.mrb[0].mxu0
        %v2546 = vadd.f32 0.0, %v2545
        %v2547 = vpop.f32.mrb[0].mxu0
        %v2548 = vpop.f32.mrb[0].mxu0
        %v2549 = vadd.f32 0.0, %v2548
        %v2550 = vpop.f32.mrb[0].mxu0
        %2551 = vmatprep.mubr.bf16.mxu0 0
        %2552 = vmatmul.mubr.bf16.gmra.mrb[0].mxu0 %v2463
        %v2553 = vpop.f32.mrb[0].mxu0
        %v2554 = vadd.f32 0.0, %v2553
        %v2555 = vpop.f32.mrb[0].mxu0
        %v2556 = vpop.f32.mrb[0].mxu0
        %v2557 = vadd.f32 0.0, %v2556
        %v2558 = vpop.f32.mrb[0].mxu0
        %2559 = vmatprep.mubr.bf16.mxu0 0
        %2560 = vmatmul.mubr.bf16.gmra.mrb[0].mxu0 %v2466
        %v2561 = vpop.f32.mrb[0].mxu0
        %v2562 = vadd.f32 0.0, %v2561
        %v2563 = vpop.f32.mrb[0].mxu0
        %v2564 = vpop.f32.mrb[0].mxu0
        %v2565 = vadd.f32 0.0, %v2564
        %v2566 = vpop.f32.mrb[0].mxu0
        %2567 = vdwg.mxu0
        %v2568 = vadd.f32 %v2338, %v2506
        %v2569 = vadd.f32 %v2339, %v2509
        %v2570 = vadd.f32 %v2340, %v2514
        %v2571 = vadd.f32 %v2341, %v2517
        %v2572 = vadd.f32 %v2342, %v2522
        %v2573 = vadd.f32 %v2343, %v2525
        %v2574 = vadd.f32 %v2344, %v2530
        %v2575 = vadd.f32 %v2345, %v2533
        %v2576 = vadd.f32 %v2346, %v2538
        %v2577 = vadd.f32 %v2347, %v2541
        %v2578 = vadd.f32 %v2348, %v2546
        %v2579 = vadd.f32 %v2349, %v2549
        %v2580 = vadd.f32 %v2350, %v2554
        %v2581 = vadd.f32 %v2351, %v2557
        %v2582 = vadd.f32 %v2352, %v2562
        %v2583 = vadd.f32 %v2353, %v2565
        %v2584 = vld [vmem:[%s2] sm:$0x1]
        %v2586 = vlaneseq
        %v2587 = vshrl.u32 %v2586, 7
        %v2588 = vsub.s32 0, %v2587
        %v2589 = vrot.slane %v2584, %v2588
        %v2591 = vmul.f32 %v2568, %v2589
        %v2592 = vmul.f32 %v2569, %v2589
        %v2593 = vmul.f32 %v2570, %v2589
        %v2594 = vmul.f32 %v2571, %v2589
        %v2595 = vmul.f32 %v2572, %v2589
        %v2596 = vmul.f32 %v2573, %v2589
        %v2597 = vmul.f32 %v2574, %v2589
        %v2598 = vmul.f32 %v2575, %v2589
        %v2599 = vmul.f32 %v2576, %v2589
        %v2600 = vmul.f32 %v2577, %v2589
        %v2601 = vmul.f32 %v2578, %v2589
        %v2602 = vmul.f32 %v2579, %v2589
        %v2603 = vmul.f32 %v2580, %v2589
        %v2604 = vmul.f32 %v2581, %v2589
        %v2605 = vmul.f32 %v2582, %v2589
        %v2606 = vmul.f32 %v2583, %v2589
        %v2607 = vld [vmem:[%s3] sm:$0x1]
        %v2609 = vlaneseq
        %v2610 = vshrl.u32 %v2609, 7
        %v2611 = vsub.s32 0, %v2610
        %v2612 = vrot.slane %v2607, %v2611
        %v2614 = vadd.f32 %v2591, %v2612
        %v2615 = vadd.f32 %v2592, %v2612
        %v2616 = vadd.f32 %v2593, %v2612
        %v2617 = vadd.f32 %v2594, %v2612
        %v2618 = vadd.f32 %v2595, %v2612
        %v2619 = vadd.f32 %v2596, %v2612
        %v2620 = vadd.f32 %v2597, %v2612
        %v2621 = vadd.f32 %v2598, %v2612
        %v2622 = vadd.f32 %v2599, %v2612
        %v2623 = vadd.f32 %v2600, %v2612
        %v2624 = vadd.f32 %v2601, %v2612
        %v2625 = vadd.f32 %v2602, %v2612
        %v2626 = vadd.f32 %v2603, %v2612
        %v2627 = vadd.f32 %v2604, %v2612
        %v2628 = vadd.f32 %v2605, %v2612
        %v2629 = vadd.f32 %v2606, %v2612
        %vm2630 = vcmp.gt.f32.partialorder %v2614, 0.0
        %vm2631 = vcmp.gt.f32.partialorder %v2615, 0.0
        %vm2632 = vcmp.gt.f32.partialorder %v2616, 0.0
        %vm2633 = vcmp.gt.f32.partialorder %v2617, 0.0
        %vm2634 = vcmp.gt.f32.partialorder %v2618, 0.0
        %vm2635 = vcmp.gt.f32.partialorder %v2619, 0.0
        %vm2636 = vcmp.gt.f32.partialorder %v2620, 0.0
        %vm2637 = vcmp.gt.f32.partialorder %v2621, 0.0
        %vm2638 = vcmp.gt.f32.partialorder %v2622, 0.0
        %vm2639 = vcmp.gt.f32.partialorder %v2623, 0.0
        %vm2640 = vcmp.gt.f32.partialorder %v2624, 0.0
        %vm2641 = vcmp.gt.f32.partialorder %v2625, 0.0
        %vm2642 = vcmp.gt.f32.partialorder %v2626, 0.0
        %vm2643 = vcmp.gt.f32.partialorder %v2627, 0.0
        %vm2644 = vcmp.gt.f32.partialorder %v2628, 0.0
        %vm2645 = vcmp.gt.f32.partialorder %v2629, 0.0
        %v2646 = vmul.f32 %v2614, 0.1
        %v2647 = vmul.f32 %v2615, 0.1
        %v2648 = vmul.f32 %v2616, 0.1
        %v2649 = vmul.f32 %v2617, 0.1
        %v2650 = vmul.f32 %v2618, 0.1
        %v2651 = vmul.f32 %v2619, 0.1
        %v2652 = vmul.f32 %v2620, 0.1
        %v2653 = vmul.f32 %v2621, 0.1
        %v2654 = vmul.f32 %v2622, 0.1
        %v2655 = vmul.f32 %v2623, 0.1
        %v2656 = vmul.f32 %v2624, 0.1
        %v2657 = vmul.f32 %v2625, 0.1
        %v2658 = vmul.f32 %v2626, 0.1
        %v2659 = vmul.f32 %v2627, 0.1
        %v2660 = vmul.f32 %v2628, 0.1
        %v2661 = vmul.f32 %v2629, 0.1
        %v2662 = vsel %vm2630, %v2614, %v2646
        %v2663 = vsel %vm2631, %v2615, %v2647
        %v2664 = vsel %vm2632, %v2616, %v2648
        %v2665 = vsel %vm2633, %v2617, %v2649
        %v2666 = vsel %vm2634, %v2618, %v2650
        %v2667 = vsel %vm2635, %v2619, %v2651
        %v2668 = vsel %vm2636, %v2620, %v2652
        %v2669 = vsel %vm2637, %v2621, %v2653
        %v2670 = vsel %vm2638, %v2622, %v2654
        %v2671 = vsel %vm2639, %v2623, %v2655
        %v2672 = vsel %vm2640, %v2624, %v2656
        %v2673 = vsel %vm2641, %v2625, %v2657
        %v2674 = vsel %vm2642, %v2626, %v2658
        %v2675 = vsel %vm2643, %v2627, %v2659
        %v2676 = vsel %vm2644, %v2628, %v2660
        %v2677 = vsel %vm2645, %v2629, %v2661
        %vm2678 = vcmask 392192
        %2679 = vst.msk [vmem:[%s204] sm:$0xff] %vm2678, %v2662
        %2680 = vst.msk [vmem:[%s204 + $0x8] sm:$0xff] %vm2678, %v2663
        %2681 = vst.msk [vmem:[%s204 + $0x10] sm:$0xff] %vm2678, %v2664
        %2682 = vst.msk [vmem:[%s204 + $0x18] sm:$0xff] %vm2678, %v2665
        %2683 = vst.msk [vmem:[%s204 + $0x20] sm:$0xff] %vm2678, %v2666
        %2684 = vst.msk [vmem:[%s204 + $0x28] sm:$0xff] %vm2678, %v2667
        %2685 = vst.msk [vmem:[%s204 + $0x30] sm:$0xff] %vm2678, %v2668
        %2686 = vst.msk [vmem:[%s204 + $0x38] sm:$0xff] %vm2678, %v2669
        %2687 = vst.msk [vmem:[%s204 + $0x40] sm:$0xff] %vm2678, %v2670
        %2688 = vst.msk [vmem:[%s204 + $0x48] sm:$0xff] %vm2678, %v2671
        %2689 = vst.msk [vmem:[%s204 + $0x50] sm:$0xff] %vm2678, %v2672
        %2690 = vst.msk [vmem:[%s204 + $0x58] sm:$0xff] %vm2678, %v2673
        %2691 = vst.msk [vmem:[%s204 + $0x60] sm:$0xff] %vm2678, %v2674
        %2692 = vst.msk [vmem:[%s204 + $0x68] sm:$0xff] %vm2678, %v2675
        %2693 = vst.msk [vmem:[%s204 + $0x70] sm:$0xff] %vm2678, %v2676
        %2694 = vst.msk [vmem:[%s204 + $0x78] sm:$0xff] %vm2678, %v2677
        %s2695 = sand.u32 %s129, 1
        %s2696 = scalar_lea.sflag [#allocation3], %s2695
        %s2697 = sand.u32 %s129, 1
        %s2698 = smul.addr %s2697, 128
        %s2699 = scalar_lea.vmem [#allocation2], %s2698
        // Predicated region
        $region37: #{tpu_custom_call.1} parent=35 // pred_check
          %p2700 = pneg %p139
        $region38: #{tpu_custom_call.1} parent=35 // pred_check_branch
          %2702 = sbr.rel (%p2700) target = $region40
        $region39: #{tpu_custom_call.1} parent=35 // pred_region
          %s2703 = smul.u32 8, %s23
          %s2705 = ssub.s32 2048, 2048
          %2706 = vsyncadd %s2696, %s2705
          %s2707 = smul.addr %s2703, 2
          %s2708 = smul.addr %s22, 32
          %s2709 = sadd.s32 %s2707, %s2708
          %s2710 = smul.addr %s2709, 128
          %s2711 = scalar_lea.hbm %s4, %s2710
          %s2712 = sshll.u32 %s2699, 4
          %s2713 = int_to_ptr.vmem [resolvable:$true] %s2712
          %2718 = dma.vmem_to_hbm [thread:$0]  %s2713, 2048, %s2711, %s2696, 128, 128, 8
        $region40: #{tpu_custom_call.1} parent=35 // pred_fallthru
          _
      $region36: #{tpu_custom_call.1} parent=5 // pred_fallthru
        _
      %p2719 = scmp.le.s32.totalorder 2, %s13
      // Predicated region
      $region41: #{tpu_custom_call.1} parent=5 // pred_check
        %p2720 = pneg %p2719
      $region42: #{tpu_custom_call.1} parent=5 // pred_check_branch
        %2722 = sbr.rel (%p2720) target = $region44
      $region43: #{tpu_custom_call.1} parent=5 // pred_region
        %s2723 = ssub.s32 %s13, 2
        // Predicated region
        $region45: #{tpu_custom_call.1} parent=43 // pred_check
          %p2724 = pneg %p145
        $region46: #{tpu_custom_call.1} parent=43 // pred_check_branch
          %2726 = sbr.rel (%p2724) target = $region48
        $region47: #{tpu_custom_call.1} parent=43 // pred_region
          %s2727 = sand.u32 %s130, 1
          %s2728 = scalar_lea.sflag [#allocation3], %s2727
          %s2729 = sand.u32 %s130, 1
          %s2730 = smul.addr %s2729, 128
          %s2731 = scalar_lea.vmem [#allocation2], %s2730
          %2732 = dma.done %s2728, 2048
        $region48: #{tpu_custom_call.1} parent=43 // pred_fallthru
          _
      $region44: #{tpu_custom_call.1} parent=5 // pred_fallthru
        _
    $region6: #{tpu_custom_call.1} parent=1 // loop_footer
      %s17 = sadd.s32 1, %s13
    $region7: #{tpu_custom_call.1} parent=1 // loop_footer_branch
      %12 = sbr.rel target = $region3
    $region8: #{tpu_custom_call.1} parent=1 // loop_exit
      _
    %2733 = vsyncpa [#allocation3], 1
    %s2734 = scalar_lea.sflag [#allocation3], 1
    %2735 = vsyncpa %s2734, 1

</llo_original>
